<compile_context>
chip_gen: v6e
topology: v6e:2x2x1
jax: 0.10.0
libtpu: 0.0.40
codegen_flags: <defaults>
</compile_context>

<pallas_src>
import math
import functools

import jax
import jax.numpy as jnp
from jax import lax
from jax.experimental import pallas as pl
from jax.experimental.pallas import tpu as pltpu


# ---------------------------------------------------------------------------
# small helpers
# ---------------------------------------------------------------------------
def _round_up(x, m):
    return (x + m - 1) // m * m


def _row_tile(m, target=256):
    """Largest row tile <= target that divides m (multiple of 8 when possible)."""
    if m <= target:
        return m
    t = target
    while t >= 8:
        if m % t == 0:
            return t
        t -= 8
    return m


def _bcast_spec(shape):
    """BlockSpec for an operand that is the same full block at every grid step."""
    n = len(shape)
    return pl.BlockSpec(tuple(shape), lambda i, _n=n: (0,) * _n)


_PAR1 = pltpu.CompilerParams(dimension_semantics=("parallel",))


# ---------------------------------------------------------------------------
# Pallas kernels
# ---------------------------------------------------------------------------
def _proj_posenc_kernel(x_ref, w_ref, b_ref, pe_ref, o_ref, *, scale):
    # o = (x @ W + b) * sqrt(d_model) + pe
    x = x_ref[0]                                           # (T, F) f32
    y = jnp.dot(x.astype(jnp.bfloat16), w_ref[...],
                preferred_element_type=jnp.float32) + b_ref[...]
    o_ref[0] = y * scale + pe_ref[0]


def _mha_block_kernel(qin_ref, kvin_ref, wq_ref, bq_ref, wkv_ref, bkv_ref,
                      wo_ref, bo_ref, g_ref, beta_ref, o_ref, *, nhead, causal):
    # Full post-norm MHA sub-layer for one batch element:
    #   o = LayerNorm(q_in + MHA(q_in, kv_in))
    x = qin_ref[0]                                         # (Tq, D) f32
    src = kvin_ref[0]                                      # (Tk, D) f32
    Tq, D = x.shape
    Tk = src.shape[0]
    Dh = D // nhead
    scale = 1.0 / math.sqrt(Dh)

    # fused projections (bf16 operands, f32 accumulation)
    q = jnp.dot(x.astype(jnp.bfloat16), wq_ref[...],
                preferred_element_type=jnp.float32) + bq_ref[...]          # (Tq, D)
    kv = jnp.dot(src.astype(jnp.bfloat16), wkv_ref[...],
                 preferred_element_type=jnp.float32) + bkv_ref[...]        # (Tk, 2D)
    k = kv[:, :D]
    v = kv[:, D:]

    if causal:
        qi = lax.broadcasted_iota(jnp.int32, (Tq, Tk), 0)
        ki = lax.broadcasted_iota(jnp.int32, (Tq, Tk), 1)
        neg = jnp.where(ki <= qi, 0.0, -jnp.inf).astype(jnp.float32)

    wo = wo_ref[...]                                       # (D, D) bf16
    y = jnp.zeros((Tq, D), jnp.float32)
    for h in range(nhead):                                 # static unroll
        lo = h * Dh
        qh = (q[:, lo:lo + Dh] * scale).astype(jnp.bfloat16)
        kh = k[:, lo:lo + Dh].astype(jnp.bfloat16)
        vh = v[:, lo:lo + Dh].astype(jnp.bfloat16)
        s = lax.dot_general(qh, kh, (((1,), (1,)), ((), ())),
                            preferred_element_type=jnp.float32)            # (Tq, Tk)
        if causal:
            s = s + neg
        m = jnp.max(s, axis=-1, keepdims=True)
        p = jnp.exp(s - m)
        p = p * pl.reciprocal(jnp.sum(p, axis=-1, keepdims=True), approx=True)
        attn = jnp.dot(p.astype(jnp.bfloat16), vh,
                       preferred_element_type=jnp.float32)                 # (Tq, Dh)
        # concat(heads) @ Wo == sum_h attn_h @ Wo[h]
        y = y + jnp.dot(attn.astype(jnp.bfloat16), wo[lo:lo + Dh, :],
                        preferred_element_type=jnp.float32)
    y = y + bo_ref[...]

    # residual + LayerNorm (f32, eps = 1e-5 like PyTorch)
    z = x + y
    mu = jnp.mean(z, axis=-1, keepdims=True)
    var = jnp.mean(jnp.square(z - mu), axis=-1, keepdims=True)
    o_ref[0] = (z - mu) * lax.rsqrt(var + 1e-5) * g_ref[...] + beta_ref[...]


def _ffn_block_kernel(x_ref, w1_ref, b1_ref, w2_ref, b2_ref, g_ref, beta_ref, o_ref):
    # o = LayerNorm(x + relu(x@W1 + b1) @ W2 + b2)
    x = x_ref[...]                                         # (tm, D) f32
    h = jnp.dot(x.astype(jnp.bfloat16), w1_ref[...],
                preferred_element_type=jnp.float32) + b1_ref[...]
    h = jnp.maximum(h, 0.0)
    y = jnp.dot(h.astype(jnp.bfloat16), w2_ref[...],
                preferred_element_type=jnp.float32) + b2_ref[...]
    z = x + y
    mu = jnp.mean(z, axis=-1, keepdims=True)
    var = jnp.mean(jnp.square(z - mu), axis=-1, keepdims=True)
    o_ref[...] = (z - mu) * lax.rsqrt(var + 1e-5) * g_ref[...] + beta_ref[...]


def _ln_kernel(x_ref, g_ref, b_ref, o_ref):
    x = x_ref[...]
    mu = jnp.mean(x, axis=-1, keepdims=True)
    var = jnp.mean(jnp.square(x - mu), axis=-1, keepdims=True)
    o_ref[...] = (x - mu) * lax.rsqrt(var + 1e-5) * g_ref[...] + b_ref[...]


def _ln_linear_kernel(x_ref, g_ref, beta_ref, w_ref, b_ref, o_ref):
    # o = LayerNorm(x) @ W + b   (W padded to lane-dense N)
    x = x_ref[...]
    mu = jnp.mean(x, axis=-1, keepdims=True)
    var = jnp.mean(jnp.square(x - mu), axis=-1, keepdims=True)
    z = (x - mu) * lax.rsqrt(var + 1e-5) * g_ref[...] + beta_ref[...]
    o_ref[...] = jnp.dot(z.astype(jnp.bfloat16), w_ref[...],
                         preferred_element_type=jnp.float32) + b_ref[...]


# ---------------------------------------------------------------------------
# pallas_call wrappers
# ---------------------------------------------------------------------------
def proj_posenc(x, w, b, pe, d_model):
    """x: (B, T, F) -> (B, T, D) = (x @ W + b) * sqrt(d_model) + pe[:, :T]."""
    B, T, F = x.shape
    D = w.shape[1]
    pe_t = pe[:, :T, :]
    kern = functools.partial(_proj_posenc_kernel, scale=math.sqrt(d_model))
    return pl.pallas_call(
        kern,
        grid=(B,),
        in_specs=[
            pl.BlockSpec((1, T, F), lambda i: (i, 0, 0)),
            _bcast_spec((F, D)),
            _bcast_spec((1, D)),
            pl.BlockSpec((1, T, D), lambda i: (0, 0, 0)),
        ],
        out_specs=pl.BlockSpec((1, T, D), lambda i: (i, 0, 0)),
        out_shape=jax.ShapeDtypeStruct((B, T, D), jnp.float32),
        compiler_params=_PAR1,
    )(x, w, b, pe_t)


def mha_block(q_in, kv_in, p, nhead, *, causal):
    """Fused MHA sub-layer: LayerNorm(q_in + MHA(q_in, kv_in)).  (B, T, D)."""
    B, Tq, D = q_in.shape
    Tk = kv_in.shape[1]
    kern = functools.partial(_mha_block_kernel, nhead=nhead, causal=causal)
    return pl.pallas_call(
        kern,
        grid=(B,),
        in_specs=[
            pl.BlockSpec((1, Tq, D), lambda i: (i, 0, 0)),
            pl.BlockSpec((1, Tk, D), lambda i: (i, 0, 0)),
            _bcast_spec(p["wq"].shape),
            _bcast_spec(p["bq"].shape),
            _bcast_spec(p["wkv"].shape),
            _bcast_spec(p["bkv"].shape),
            _bcast_spec(p["wo"].shape),
            _bcast_spec(p["bo"].shape),
            _bcast_spec(p["ln_g"].shape),
            _bcast_spec(p["ln_b"].shape),
        ],
        out_specs=pl.BlockSpec((1, Tq, D), lambda i: (i, 0, 0)),
        out_shape=jax.ShapeDtypeStruct((B, Tq, D), jnp.float32),
        compiler_params=_PAR1,
    )(q_in, kv_in, p["wq"], p["bq"], p["wkv"], p["bkv"],
      p["wo"], p["bo"], p["ln_g"], p["ln_b"])


def ffn_block(x, p):
    """Fused FFN sub-layer: LayerNorm(x + FFN(x)).  Tiled over rows of B*T."""
    B, T, D = x.shape
    M = B * T
    tm = _row_tile(M)
    dff = p["w1"].shape[1]
    out = pl.pallas_call(
        _ffn_block_kernel,
        grid=(M // tm,),
        in_specs=[
            pl.BlockSpec((tm, D), lambda i: (i, 0)),
            _bcast_spec((D, dff)),
            _bcast_spec((1, dff)),
            _bcast_spec((dff, D)),
            _bcast_spec((1, D)),
            _bcast_spec((1, D)),
            _bcast_spec((1, D)),
        ],
        out_specs=pl.BlockSpec((tm, D), lambda i: (i, 0)),
        out_shape=jax.ShapeDtypeStruct((M, D), jnp.float32),
        compiler_params=_PAR1,
    )(x.reshape(M, D), p["w1"], p["b1"], p["w2"], p["b2"], p["ln_g"], p["ln_b"])
    return out.reshape(B, T, D)


def layer_norm(x, g, b):
    """Standalone LayerNorm over the last dim (no zero-residual DMA)."""
    B, T, D = x.shape
    M = B * T
    tm = _row_tile(M)
    out = pl.pallas_call(
        _ln_kernel,
        grid=(M // tm,),
        in_specs=[
            pl.BlockSpec((tm, D), lambda i: (i, 0)),
            _bcast_spec((1, D)),
            _bcast_spec((1, D)),
        ],
        out_specs=pl.BlockSpec((tm, D), lambda i: (i, 0)),
        out_shape=jax.ShapeDtypeStruct((M, D), jnp.float32),
        compiler_params=_PAR1,
    )(x.reshape(M, D), g, b)
    return out.reshape(B, T, D)


def ln_linear(x, g, beta, w_pad, b_pad, n_out):
    """Fused final LayerNorm + output projection (lane-padded N, sliced back)."""
    B, T, D = x.shape
    M = B * T
    tm = _row_tile(M)
    Np = w_pad.shape[1]
    out = pl.pallas_call(
        _ln_linear_kernel,
        grid=(M // tm,),
        in_specs=[
            pl.BlockSpec((tm, D), lambda i: (i, 0)),
            _bcast_spec((1, D)),
            _bcast_spec((1, D)),
            _bcast_spec((D, Np)),
            _bcast_spec((1, Np)),
        ],
        out_specs=pl.BlockSpec((tm, Np), lambda i: (i, 0)),
        out_shape=jax.ShapeDtypeStruct((M, Np), jnp.float32),
        compiler_params=_PAR1,
    )(x.reshape(M, D), g, beta, w_pad, b_pad)
    return out[:, :n_out].reshape(B, T, n_out)


# ---------------------------------------------------------------------------
# forward pass (matches nn.Transformer post-norm semantics, eval mode)
# ---------------------------------------------------------------------------
def transformer_forward(params, X, *, seq_len, d_model, nhead, n_features):
    src = X[:, :seq_len, :]
    tgt = X[:, seq_len - 1:-1, :]

    src = proj_posenc(src, params["proj_w"], params["proj_b"], params["pe"], d_model)
    tgt = proj_posenc(tgt, params["proj_w"], params["proj_b"], params["pe"], d_model)

    mem = src
    for lp in params["enc_layers"]:
        mem = mha_block(mem, mem, lp["attn"], nhead, causal=False)
        mem = ffn_block(mem, lp["ffn"])
    mem = layer_norm(mem, params["enc_norm_g"], params["enc_norm_b"])

    out = tgt
    for lp in params["dec_layers"]:
        out = mha_block(out, out, lp["self_attn"], nhead, causal=True)
        out = mha_block(out, mem, lp["cross_attn"], nhead, causal=False)
        out = ffn_block(out, lp["ffn"])

    # final decoder norm fused with the output projection
    return ln_linear(out, params["dec_norm_g"], params["dec_norm_b"],
                     params["out_w"], params["out_b"], n_features)


# ---------------------------------------------------------------------------
# deterministic parameter construction (weights pre-transposed to (in, out),
# matmul weights stored in bf16, biases / LayerNorm params in f32)
# ---------------------------------------------------------------------------
class _KeyGen:
    def __init__(self, key):
        self.key = key

    def __call__(self):
        self.key, sub = jax.random.split(self.key)
        return sub


def _dense(kg, in_dim, out_dim):
    return 0.05 * jax.random.normal(kg(), (in_dim, out_dim), jnp.float32)


def _init_mha(kg, d):
    wq = _dense(kg, d, d)
    wk = _dense(kg, d, d)
    wv = _dense(kg, d, d)
    wo = _dense(kg, d, d)
    return dict(
        wq=wq.astype(jnp.bfloat16),
        bq=jnp.zeros((1, d), jnp.float32),
        wkv=jnp.concatenate([wk, wv], axis=1).astype(jnp.bfloat16),   # (D, 2D)
        bkv=jnp.zeros((1, 2 * d), jnp.float32),
        wo=wo.astype(jnp.bfloat16),
        bo=jnp.zeros((1, d), jnp.float32),
        ln_g=jnp.ones((1, d), jnp.float32),
        ln_b=jnp.zeros((1, d), jnp.float32),
    )


def _init_ffn(kg, d, dff):
    return dict(
        w1=_dense(kg, d, dff).astype(jnp.bfloat16),
        b1=jnp.zeros((1, dff), jnp.float32),
        w2=_dense(kg, dff, d).astype(jnp.bfloat16),
        b2=jnp.zeros((1, d), jnp.float32),
        ln_g=jnp.ones((1, d), jnp.float32),
        ln_b=jnp.zeros((1, d), jnp.float32),
    )


def _make_pe(max_len, d_model):
    pos = jnp.arange(max_len, dtype=jnp.float32)[:, None]
    slope = jnp.exp(
        jnp.arange(0, d_model, 2, dtype=jnp.float32) * (-math.log(10000.0) / d_model)
    )
    pe = jnp.zeros((max_len, d_model), jnp.float32)
    pe = pe.at[:, 0::2].set(jnp.sin(pos * slope))
    pe = pe.at[:, 1::2].set(jnp.cos(pos * slope))
    return pe[None]  # (1, max_len, d_model)


def init_params(key, n_features, d_model, dff, num_layers, seq_len):
    kg = _KeyGen(key)
    n_pad = _round_up(n_features, 128)
    w_out = _dense(kg, d_model, n_features)
    w_out_pad = jnp.zeros((d_model, n_pad), jnp.float32).at[:, :n_features].set(w_out)
    return dict(
        proj_w=_dense(kg, n_features, d_model).astype(jnp.bfloat16),
        proj_b=jnp.zeros((1, d_model), jnp.float32),
        pe=_make_pe(seq_len, d_model),
        enc_layers=[dict(attn=_init_mha(kg, d_model), ffn=_init_ffn(kg, d_model, dff))
                    for _ in range(num_layers)],
        enc_norm_g=jnp.ones((1, d_model), jnp.float32),
        enc_norm_b=jnp.zeros((1, d_model), jnp.float32),
        dec_layers=[dict(self_attn=_init_mha(kg, d_model),
                         cross_attn=_init_mha(kg, d_model),
                         ffn=_init_ffn(kg, d_model, dff))
                    for _ in range(num_layers)],
        dec_norm_g=jnp.ones((1, d_model), jnp.float32),
        dec_norm_b=jnp.zeros((1, d_model), jnp.float32),
        out_w=w_out_pad.astype(jnp.bfloat16),          # (D, 128) lane-dense
        out_b=jnp.zeros((1, n_pad), jnp.float32),
    )


# ---------------------------------------------------------------------------
if __name__ == "__main__":
    # small shapes consistent with the module's forward
    n_features = 4
    hidden_dim = 32     # d_model
    seq_len = 8
    nhead = 2           # narrow_attn_heads (must divide d_model)
    num_layers = 2
    dff = 64            # feed-forward hidden dim (small stand-in for default 2048)
    batch = 2

    key = jax.random.PRNGKey(0)
    pkey, xkey = jax.random.split(key)
    params = init_params(pkey, n_features, hidden_dim, dff, num_layers, seq_len)

    # X needs length seq_len + tgt_len; use 2*seq_len so tgt_len == seq_len
    X = jax.random.normal(xkey, (batch, 2 * seq_len, n_features), jnp.float32)

    fwd = jax.jit(
        functools.partial(
            transformer_forward,
            seq_len=seq_len, d_model=hidden_dim, nhead=nhead, n_features=n_features,
        )
    )
    out = fwd(params, X)
    jax.block_until_ready(out)
    assert out.shape == (batch, seq_len, n_features)
    assert bool(jnp.all(jnp.isfinite(out)))
    # TODO(synk): dropout is eval-mode identity (inference forward only).
    print("KERNEL_OK")
</pallas_src>

<mosaic_0001>
module attributes {stable_mosaic.version = 11 : i64} {
  func.func @_proj_posenc_kernel(%arg0: i32, %arg1: memref<1x8x4xf32, #tpu.memory_space<vmem>>, %arg2: memref<4x32xbf16, #tpu.memory_space<vmem>>, %arg3: memref<1x32xf32, #tpu.memory_space<vmem>>, %arg4: memref<1x8x32xf32, #tpu.memory_space<vmem>>, %arg5: memref<1x8x32xf32, #tpu.memory_space<vmem>>) attributes {dimension_semantics = [#tpu.dimension_semantics<parallel>], iteration_bounds = array<i64: 2>, scalar_prefetch = 0 : i64, scratch_operands = 0 : i64, tpu.core_type = #tpu.core_type<tc>, window_params = [{transform_indices = @transform_0, window_bounds = array<i64: 1, 8, 4>}, {pipeline_mode = #tpu.pipeline_mode<synchronous>, transform_indices = @transform_1, window_bounds = array<i64: 4, 32>}, {pipeline_mode = #tpu.pipeline_mode<synchronous>, transform_indices = @transform_2, window_bounds = array<i64: 1, 32>}, {pipeline_mode = #tpu.pipeline_mode<synchronous>, transform_indices = @transform_3, window_bounds = array<i64: 1, 8, 32>}, {transform_indices = @transform_4, window_bounds = array<i64: 1, 8, 32>}]} {
    %c0 = arith.constant 0 : index
    %c0_0 = arith.constant 0 : index
    %c0_1 = arith.constant 0 : index
    %0 = vector.load %arg1[%c0, %c0_0, %c0_1] : memref<1x8x4xf32, #tpu.memory_space<vmem>>, vector<1x8x4xf32>
    %1 = vector.shape_cast %0 : vector<1x8x4xf32> to vector<8x4xf32>
    %2 = arith.truncf %1 : vector<8x4xf32> to vector<8x4xbf16>
    %c0_2 = arith.constant 0 : index
    %c0_3 = arith.constant 0 : index
    %3 = vector.load %arg2[%c0_2, %c0_3] : memref<4x32xbf16, #tpu.memory_space<vmem>>, vector<4x32xbf16>
    %cst = arith.constant dense<0.000000e+00> : vector<8x32xf32>
    %4 = tpu.matmul %2, %3, %cst {dimension_numbers = #tpu.dot_dimension_numbers<[1], [0], [0], [1], [0, 0, 1, 1], [], []>} : vector<8x4xbf16>, vector<4x32xbf16>, vector<8x32xf32> -> vector<8x32xf32>
    %c0_4 = arith.constant 0 : index
    %c0_5 = arith.constant 0 : index
    %5 = vector.load %arg3[%c0_4, %c0_5] : memref<1x32xf32, #tpu.memory_space<vmem>>, vector<1x32xf32>
    %6 = vector.broadcast %5 : vector<1x32xf32> to vector<8x32xf32>
    %7 = arith.addf %4, %6 : vector<8x32xf32>
    %cst_6 = arith.constant 5.65685415 : f32
    %8 = vector.broadcast %cst_6 : f32 to vector<8x32xf32>
    %9 = arith.mulf %7, %8 : vector<8x32xf32>
    %c0_7 = arith.constant 0 : index
    %c0_8 = arith.constant 0 : index
    %c0_9 = arith.constant 0 : index
    %10 = vector.load %arg4[%c0_7, %c0_8, %c0_9] : memref<1x8x32xf32, #tpu.memory_space<vmem>>, vector<1x8x32xf32>
    %11 = vector.shape_cast %10 : vector<1x8x32xf32> to vector<8x32xf32>
    %12 = arith.addf %9, %11 : vector<8x32xf32>
    %c0_10 = arith.constant 0 : index
    %c0_11 = arith.constant 0 : index
    %c0_12 = arith.constant 0 : index
    %13 = vector.load %arg5[%c0_10, %c0_11, %c0_12] : memref<1x8x32xf32, #tpu.memory_space<vmem>>, vector<1x8x32xf32>
    %14 = vector.shape_cast %13 : vector<1x8x32xf32> to vector<8x32xf32>
    %15 = vector.shape_cast %12 : vector<8x32xf32> to vector<1x8x32xf32>
    tpu.vector_store %arg5[%c0_10, %c0_11, %c0_12], %15 {strides = array<i32>} : memref<1x8x32xf32, #tpu.memory_space<vmem>>, vector<1x8x32xf32>,
    return
  }
  func.func @transform_0(%arg0: i32) -> (i32, i32, i32) {
    %c0_i32 = arith.constant 0 : i32
    %c0_i32_0 = arith.constant 0 : i32
    %c0_i32_1 = arith.constant 0 : i32
    return %arg0, %c0_i32, %c0_i32_0 : i32, i32, i32
  }
  func.func @transform_1(%arg0: i32) -> (i32, i32) {
    %c0_i32 = arith.constant 0 : i32
    %c0_i32_0 = arith.constant 0 : i32
    %c0_i32_1 = arith.constant 0 : i32
    return %c0_i32, %c0_i32_0 : i32, i32
  }
  func.func @transform_2(%arg0: i32) -> (i32, i32) {
    %c0_i32 = arith.constant 0 : i32
    %c0_i32_0 = arith.constant 0 : i32
    %c0_i32_1 = arith.constant 0 : i32
    return %c0_i32, %c0_i32_0 : i32, i32
  }
  func.func @transform_3(%arg0: i32) -> (i32, i32, i32) {
    %c0_i32 = arith.constant 0 : i32
    %c0_i32_0 = arith.constant 0 : i32
    %c0_i32_1 = arith.constant 0 : i32
    %c0_i32_2 = arith.constant 0 : i32
    return %c0_i32, %c0_i32_0, %c0_i32_1 : i32, i32, i32
  }
  func.func @transform_4(%arg0: i32) -> (i32, i32, i32) {
    %c0_i32 = arith.constant 0 : i32
    %c0_i32_0 = arith.constant 0 : i32
    %c0_i32_1 = arith.constant 0 : i32
    return %arg0, %c0_i32, %c0_i32_0 : i32, i32, i32
  }
}

module attributes {stable_mosaic.version = 11 : i64} {
  func.func @_ffn_block_kernel(%arg0: i32, %arg1: memref<16x32xf32, #tpu.memory_space<vmem>>, %arg2: memref<32x64xbf16, #tpu.memory_space<vmem>>, %arg3: memref<1x64xf32, #tpu.memory_space<vmem>>, %arg4: memref<64x32xbf16, #tpu.memory_space<vmem>>, %arg5: memref<1x32xf32, #tpu.memory_space<vmem>>, %arg6: memref<1x32xf32, #tpu.memory_space<vmem>>, %arg7: memref<1x32xf32, #tpu.memory_space<vmem>>, %arg8: memref<16x32xf32, #tpu.memory_space<vmem>>) attributes {dimension_semantics = [#tpu.dimension_semantics<parallel>], iteration_bounds = array<i64: 1>, scalar_prefetch = 0 : i64, scratch_operands = 0 : i64, tpu.core_type = #tpu.core_type<tc>, window_params = [{transform_indices = @transform_0, window_bounds = array<i64: 16, 32>}, {pipeline_mode = #tpu.pipeline_mode<synchronous>, transform_indices = @transform_1, window_bounds = array<i64: 32, 64>}, {pipeline_mode = #tpu.pipeline_mode<synchronous>, transform_indices = @transform_2, window_bounds = array<i64: 1, 64>}, {pipeline_mode = #tpu.pipeline_mode<synchronous>, transform_indices = @transform_3, window_bounds = array<i64: 64, 32>}, {pipeline_mode = #tpu.pipeline_mode<synchronous>, transform_indices = @transform_4, window_bounds = array<i64: 1, 32>}, {pipeline_mode = #tpu.pipeline_mode<synchronous>, transform_indices = @transform_5, window_bounds = array<i64: 1, 32>}, {pipeline_mode = #tpu.pipeline_mode<synchronous>, transform_indices = @transform_6, window_bounds = array<i64: 1, 32>}, {transform_indices = @transform_7, window_bounds = array<i64: 16, 32>}]} {
    %c0 = arith.constant 0 : index
    %c0_0 = arith.constant 0 : index
    %0 = vector.load %arg1[%c0, %c0_0] : memref<16x32xf32, #tpu.memory_space<vmem>>, vector<16x32xf32>
    %1 = arith.truncf %0 : vector<16x32xf32> to vector<16x32xbf16>
    %c0_1 = arith.constant 0 : index
    %c0_2 = arith.constant 0 : index
    %2 = vector.load %arg2[%c0_1, %c0_2] : memref<32x64xbf16, #tpu.memory_space<vmem>>, vector<32x64xbf16>
    %cst = arith.constant dense<0.000000e+00> : vector<16x64xf32>
    %3 = tpu.matmul %1, %2, %cst {dimension_numbers = #tpu.dot_dimension_numbers<[1], [0], [0], [1], [0, 0, 1, 1], [], []>} : vector<16x32xbf16>, vector<32x64xbf16>, vector<16x64xf32> -> vector<16x64xf32>
    %c0_3 = arith.constant 0 : index
    %c0_4 = arith.constant 0 : index
    %4 = vector.load %arg3[%c0_3, %c0_4] : memref<1x64xf32, #tpu.memory_space<vmem>>, vector<1x64xf32>
    %5 = vector.broadcast %4 : vector<1x64xf32> to vector<16x64xf32>
    %6 = arith.addf %3, %5 : vector<16x64xf32>
    %cst_5 = arith.constant 0.000000e+00 : f32
    %7 = vector.broadcast %cst_5 : f32 to vector<16x64xf32>
    %8 = arith.maximumf %6, %7 : vector<16x64xf32>
    %9 = arith.truncf %8 : vector<16x64xf32> to vector<16x64xbf16>
    %c0_6 = arith.constant 0 : index
    %c0_7 = arith.constant 0 : index
    %10 = vector.load %arg4[%c0_6, %c0_7] : memref<64x32xbf16, #tpu.memory_space<vmem>>, vector<64x32xbf16>
    %cst_8 = arith.constant dense<0.000000e+00> : vector<16x32xf32>
    %11 = tpu.matmul %9, %10, %cst_8 {dimension_numbers = #tpu.dot_dimension_numbers<[1], [0], [0], [1], [0, 0, 1, 1], [], []>} : vector<16x64xbf16>, vector<64x32xbf16>, vector<16x32xf32> -> vector<16x32xf32>
    %c0_9 = arith.constant 0 : index
    %c0_10 = arith.constant 0 : index
    %12 = vector.load %arg5[%c0_9, %c0_10] : memref<1x32xf32, #tpu.memory_space<vmem>>, vector<1x32xf32>
    %13 = vector.broadcast %12 : vector<1x32xf32> to vector<16x32xf32>
    %14 = arith.addf %11, %13 : vector<16x32xf32>
    %15 = arith.addf %0, %14 : vector<16x32xf32>
    %cst_11 = arith.constant dense<0.000000e+00> : vector<16xf32>
    %16 = vector.multi_reduction <add>, %15, %cst_11 [1] : vector<16x32xf32> to vector<16xf32>
    %17 = vector.shape_cast %16 : vector<16xf32> to vector<16x1xf32>
    %cst_12 = arith.constant 3.200000e+01 : f32
    %18 = vector.broadcast %cst_12 : f32 to vector<16x1xf32>
    %19 = arith.divf %17, %18 : vector<16x1xf32>
    %20 = vector.broadcast %19 : vector<16x1xf32> to vector<16x32xf32>
    %21 = arith.subf %15, %20 : vector<16x32xf32>
    %22 = arith.mulf %21, %21 : vector<16x32xf32>
    %cst_13 = arith.constant dense<0.000000e+00> : vector<16xf32>
    %23 = vector.multi_reduction <add>, %22, %cst_13 [1] : vector<16x32xf32> to vector<16xf32>
    %24 = vector.shape_cast %23 : vector<16xf32> to vector<16x1xf32>
    %cst_14 = arith.constant 3.200000e+01 : f32
    %25 = vector.broadcast %cst_14 : f32 to vector<16x1xf32>
    %26 = arith.divf %24, %25 : vector<16x1xf32>
    %27 = vector.broadcast %19 : vector<16x1xf32> to vector<16x32xf32>
    %28 = arith.subf %15, %27 : vector<16x32xf32>
    %cst_15 = arith.constant 9.99999974E-6 : f32
    %29 = vector.broadcast %cst_15 : f32 to vector<16x1xf32>
    %30 = arith.addf %26, %29 : vector<16x1xf32>
    %31 = math.rsqrt %30 : vector<16x1xf32>
    %32 = vector.broadcast %31 : vector<16x1xf32> to vector<16x32xf32>
    %33 = arith.mulf %28, %32 : vector<16x32xf32>
    %c0_16 = arith.constant 0 : index
    %c0_17 = arith.constant 0 : index
    %34 = vector.load %arg6[%c0_16, %c0_17] : memref<1x32xf32, #tpu.memory_space<vmem>>, vector<1x32xf32>
    %35 = vector.broadcast %34 : vector<1x32xf32> to vector<16x32xf32>
    %36 = arith.mulf %33, %35 : vector<16x32xf32>
    %c0_18 = arith.constant 0 : index
    %c0_19 = arith.constant 0 : index
    %37 = vector.load %arg7[%c0_18, %c0_19] : memref<1x32xf32, #tpu.memory_space<vmem>>, vector<1x32xf32>
    %38 = vector.broadcast %37 : vector<1x32xf32> to vector<16x32xf32>
    %39 = arith.addf %36, %38 : vector<16x32xf32>
    %c0_20 = arith.constant 0 : index
    %c0_21 = arith.constant 0 : index
    %40 = vector.load %arg8[%c0_20, %c0_21] : memref<16x32xf32, #tpu.memory_space<vmem>>, vector<16x32xf32>
    tpu.vector_store %arg8[%c0_20, %c0_21], %39 {strides = array<i32>} : memref<16x32xf32, #tpu.memory_space<vmem>>, vector<16x32xf32>,
    return
  }
  func.func @transform_0(%arg0: i32) -> (i32, i32) {
    %c0_i32 = arith.constant 0 : i32
    %c0_i32_0 = arith.constant 0 : i32
    return %arg0, %c0_i32 : i32, i32
  }
  func.func @transform_1(%arg0: i32) -> (i32, i32) {
    %c0_i32 = arith.constant 0 : i32
    %c0_i32_0 = arith.constant 0 : i32
    %c0_i32_1 = arith.constant 0 : i32
    return %c0_i32, %c0_i32_0 : i32, i32
  }
  func.func @transform_2(%arg0: i32) -> (i32, i32) {
    %c0_i32 = arith.constant 0 : i32
    %c0_i32_0 = arith.constant 0 : i32
    %c0_i32_1 = arith.constant 0 : i32
    return %c0_i32, %c0_i32_0 : i32, i32
  }
  func.func @transform_3(%arg0: i32) -> (i32, i32) {
    %c0_i32 = arith.constant 0 : i32
    %c0_i32_0 = arith.constant 0 : i32
    %c0_i32_1 = arith.constant 0 : i32
    return %c0_i32, %c0_i32_0 : i32, i32
  }
  func.func @transform_4(%arg0: i32) -> (i32, i32) {
    %c0_i32 = arith.constant 0 : i32
    %c0_i32_0 = arith.constant 0 : i32
    %c0_i32_1 = arith.constant 0 : i32
    return %c0_i32, %c0_i32_0 : i32, i32
  }
  func.func @transform_5(%arg0: i32) -> (i32, i32) {
    %c0_i32 = arith.constant 0 : i32
    %c0_i32_0 = arith.constant 0 : i32
    %c0_i32_1 = arith.constant 0 : i32
    return %c0_i32, %c0_i32_0 : i32, i32
  }
  func.func @transform_6(%arg0: i32) -> (i32, i32) {
    %c0_i32 = arith.constant 0 : i32
    %c0_i32_0 = arith.constant 0 : i32
    %c0_i32_1 = arith.constant 0 : i32
    return %c0_i32, %c0_i32_0 : i32, i32
  }
  func.func @transform_7(%arg0: i32) -> (i32, i32) {
    %c0_i32 = arith.constant 0 : i32
    %c0_i32_0 = arith.constant 0 : i32
    return %arg0, %c0_i32 : i32, i32
  }
}

module attributes {stable_mosaic.version = 11 : i64} {
  func.func @_mha_block_kernel(%arg0: i32, %arg1: memref<1x8x32xf32, #tpu.memory_space<vmem>>, %arg2: memref<1x8x32xf32, #tpu.memory_space<vmem>>, %arg3: memref<32x32xbf16, #tpu.memory_space<vmem>>, %arg4: memref<1x32xf32, #tpu.memory_space<vmem>>, %arg5: memref<32x64xbf16, #tpu.memory_space<vmem>>, %arg6: memref<1x64xf32, #tpu.memory_space<vmem>>, %arg7: memref<32x32xbf16, #tpu.memory_space<vmem>>, %arg8: memref<1x32xf32, #tpu.memory_space<vmem>>, %arg9: memref<1x32xf32, #tpu.memory_space<vmem>>, %arg10: memref<1x32xf32, #tpu.memory_space<vmem>>, %arg11: memref<1x8x32xf32, #tpu.memory_space<vmem>>) attributes {dimension_semantics = [#tpu.dimension_semantics<parallel>], iteration_bounds = array<i64: 2>, scalar_prefetch = 0 : i64, scratch_operands = 0 : i64, tpu.core_type = #tpu.core_type<tc>, window_params = [{transform_indices = @transform_0, window_bounds = array<i64: 1, 8, 32>}, {transform_indices = @transform_1, window_bounds = array<i64: 1, 8, 32>}, {pipeline_mode = #tpu.pipeline_mode<synchronous>, transform_indices = @transform_2, window_bounds = array<i64: 32, 32>}, {pipeline_mode = #tpu.pipeline_mode<synchronous>, transform_indices = @transform_3, window_bounds = array<i64: 1, 32>}, {pipeline_mode = #tpu.pipeline_mode<synchronous>, transform_indices = @transform_4, window_bounds = array<i64: 32, 64>}, {pipeline_mode = #tpu.pipeline_mode<synchronous>, transform_indices = @transform_5, window_bounds = array<i64: 1, 64>}, {pipeline_mode = #tpu.pipeline_mode<synchronous>, transform_indices = @transform_6, window_bounds = array<i64: 32, 32>}, {pipeline_mode = #tpu.pipeline_mode<synchronous>, transform_indices = @transform_7, window_bounds = array<i64: 1, 32>}, {pipeline_mode = #tpu.pipeline_mode<synchronous>, transform_indices = @transform_8, window_bounds = array<i64: 1, 32>}, {pipeline_mode = #tpu.pipeline_mode<synchronous>, transform_indices = @transform_9, window_bounds = array<i64: 1, 32>}, {transform_indices = @transform_10, window_bounds = array<i64: 1, 8, 32>}]} {
    %c0 = arith.constant 0 : index
    %c0_0 = arith.constant 0 : index
    %c0_1 = arith.constant 0 : index
    %0 = vector.load %arg1[%c0, %c0_0, %c0_1] : memref<1x8x32xf32, #tpu.memory_space<vmem>>, vector<1x8x32xf32>
    %1 = vector.shape_cast %0 : vector<1x8x32xf32> to vector<8x32xf32>
    %c0_2 = arith.constant 0 : index
    %c0_3 = arith.constant 0 : index
    %c0_4 = arith.constant 0 : index
    %2 = vector.load %arg2[%c0_2, %c0_3, %c0_4] : memref<1x8x32xf32, #tpu.memory_space<vmem>>, vector<1x8x32xf32>
    %3 = vector.shape_cast %2 : vector<1x8x32xf32> to vector<8x32xf32>
    %4 = arith.truncf %1 : vector<8x32xf32> to vector<8x32xbf16>
    %c0_5 = arith.constant 0 : index
    %c0_6 = arith.constant 0 : index
    %5 = vector.load %arg3[%c0_5, %c0_6] : memref<32x32xbf16, #tpu.memory_space<vmem>>, vector<32x32xbf16>
    %cst = arith.constant dense<0.000000e+00> : vector<8x32xf32>
    %6 = tpu.matmul %4, %5, %cst {dimension_numbers = #tpu.dot_dimension_numbers<[1], [0], [0], [1], [0, 0, 1, 1], [], []>} : vector<8x32xbf16>, vector<32x32xbf16>, vector<8x32xf32> -> vector<8x32xf32>
    %c0_7 = arith.constant 0 : index
    %c0_8 = arith.constant 0 : index
    %7 = vector.load %arg4[%c0_7, %c0_8] : memref<1x32xf32, #tpu.memory_space<vmem>>, vector<1x32xf32>
    %8 = vector.broadcast %7 : vector<1x32xf32> to vector<8x32xf32>
    %9 = arith.addf %6, %8 : vector<8x32xf32>
    %10 = arith.truncf %3 : vector<8x32xf32> to vector<8x32xbf16>
    %c0_9 = arith.constant 0 : index
    %c0_10 = arith.constant 0 : index
    %11 = vector.load %arg5[%c0_9, %c0_10] : memref<32x64xbf16, #tpu.memory_space<vmem>>, vector<32x64xbf16>
    %cst_11 = arith.constant dense<0.000000e+00> : vector<8x64xf32>
    %12 = tpu.matmul %10, %11, %cst_11 {dimension_numbers = #tpu.dot_dimension_numbers<[1], [0], [0], [1], [0, 0, 1, 1], [], []>} : vector<8x32xbf16>, vector<32x64xbf16>, vector<8x64xf32> -> vector<8x64xf32>
    %c0_12 = arith.constant 0 : index
    %c0_13 = arith.constant 0 : index
    %13 = vector.load %arg6[%c0_12, %c0_13] : memref<1x64xf32, #tpu.memory_space<vmem>>, vector<1x64xf32>
    %14 = vector.broadcast %13 : vector<1x64xf32> to vector<8x64xf32>
    %15 = arith.addf %12, %14 : vector<8x64xf32>
    %16 = vector.extract_strided_slice %15 {offsets = [0, 0], sizes = [8, 32], strides = [1, 1]} : vector<8x64xf32> to vector<8x32xf32>
    %17 = vector.extract_strided_slice %15 {offsets = [0, 32], sizes = [8, 32], strides = [1, 1]} : vector<8x64xf32> to vector<8x32xf32>
    %c0_14 = arith.constant 0 : index
    %c0_15 = arith.constant 0 : index
    %18 = vector.load %arg7[%c0_14, %c0_15] : memref<32x32xbf16, #tpu.memory_space<vmem>>, vector<32x32xbf16>
    %cst_16 = arith.constant 0.000000e+00 : f32
    %19 = vector.broadcast %cst_16 : f32 to vector<8x32xf32>
    %20 = vector.extract_strided_slice %9 {offsets = [0, 0], sizes = [8, 16], strides = [1, 1]} : vector<8x32xf32> to vector<8x16xf32>
    %cst_17 = arith.constant 2.500000e-01 : f32
    %21 = vector.broadcast %cst_17 : f32 to vector<8x16xf32>
    %22 = arith.mulf %20, %21 : vector<8x16xf32>
    %23 = arith.truncf %22 : vector<8x16xf32> to vector<8x16xbf16>
    %24 = vector.extract_strided_slice %16 {offsets = [0, 0], sizes = [8, 16], strides = [1, 1]} : vector<8x32xf32> to vector<8x16xf32>
    %25 = arith.truncf %24 : vector<8x16xf32> to vector<8x16xbf16>
    %26 = vector.extract_strided_slice %17 {offsets = [0, 0], sizes = [8, 16], strides = [1, 1]} : vector<8x32xf32> to vector<8x16xf32>
    %27 = arith.truncf %26 : vector<8x16xf32> to vector<8x16xbf16>
    %cst_18 = arith.constant dense<0.000000e+00> : vector<8x8xf32>
    %28 = tpu.matmul %23, %25, %cst_18 {dimension_numbers = #tpu.dot_dimension_numbers<[1], [1], [0], [0], [0, 0, 1, 0], [], []>} : vector<8x16xbf16>, vector<8x16xbf16>, vector<8x8xf32> -> vector<8x8xf32>
    %cst_19 = arith.constant dense<0xFF800000> : vector<8xf32>
    %29 = vector.multi_reduction <maximumf>, %28, %cst_19 [1] : vector<8x8xf32> to vector<8xf32>
    %30 = vector.shape_cast %29 : vector<8xf32> to vector<8x1xf32>
    %31 = vector.broadcast %30 : vector<8x1xf32> to vector<8x8xf32>
    %32 = arith.subf %28, %31 : vector<8x8xf32>
    %33 = math.exp %32 : vector<8x8xf32>
    %cst_20 = arith.constant dense<0.000000e+00> : vector<8xf32>
    %34 = vector.multi_reduction <add>, %33, %cst_20 [1] : vector<8x8xf32> to vector<8xf32>
    %35 = vector.shape_cast %34 : vector<8xf32> to vector<8x1xf32>
    %36 = tpu.reciprocal %35 {approx = true} : vector<8x1xf32> -> vector<8x1xf32>
    %37 = vector.broadcast %36 : vector<8x1xf32> to vector<8x8xf32>
    %38 = arith.mulf %33, %37 : vector<8x8xf32>
    %39 = arith.truncf %38 : vector<8x8xf32> to vector<8x8xbf16>
    %cst_21 = arith.constant dense<0.000000e+00> : vector<8x16xf32>
    %40 = tpu.matmul %39, %27, %cst_21 {dimension_numbers = #tpu.dot_dimension_numbers<[1], [0], [0], [1], [0, 0, 1, 1], [], []>} : vector<8x8xbf16>, vector<8x16xbf16>, vector<8x16xf32> -> vector<8x16xf32>
    %41 = arith.truncf %40 : vector<8x16xf32> to vector<8x16xbf16>
    %42 = vector.extract_strided_slice %18 {offsets = [0, 0], sizes = [16, 32], strides = [1, 1]} : vector<32x32xbf16> to vector<16x32xbf16>
    %cst_22 = arith.constant dense<0.000000e+00> : vector<8x32xf32>
    %43 = tpu.matmul %41, %42, %cst_22 {dimension_numbers = #tpu.dot_dimension_numbers<[1], [0], [0], [1], [0, 0, 1, 1], [], []>} : vector<8x16xbf16>, vector<16x32xbf16>, vector<8x32xf32> -> vector<8x32xf32>
    %44 = arith.addf %19, %43 : vector<8x32xf32>
    %45 = vector.extract_strided_slice %9 {offsets = [0, 16], sizes = [8, 16], strides = [1, 1]} : vector<8x32xf32> to vector<8x16xf32>
    %cst_23 = arith.constant 2.500000e-01 : f32
    %46 = vector.broadcast %cst_23 : f32 to vector<8x16xf32>
    %47 = arith.mulf %45, %46 : vector<8x16xf32>
    %48 = arith.truncf %47 : vector<8x16xf32> to vector<8x16xbf16>
    %49 = vector.extract_strided_slice %16 {offsets = [0, 16], sizes = [8, 16], strides = [1, 1]} : vector<8x32xf32> to vector<8x16xf32>
    %50 = arith.truncf %49 : vector<8x16xf32> to vector<8x16xbf16>
    %51 = vector.extract_strided_slice %17 {offsets = [0, 16], sizes = [8, 16], strides = [1, 1]} : vector<8x32xf32> to vector<8x16xf32>
    %52 = arith.truncf %51 : vector<8x16xf32> to vector<8x16xbf16>
    %cst_24 = arith.constant dense<0.000000e+00> : vector<8x8xf32>
    %53 = tpu.matmul %48, %50, %cst_24 {dimension_numbers = #tpu.dot_dimension_numbers<[1], [1], [0], [0], [0, 0, 1, 0], [], []>} : vector<8x16xbf16>, vector<8x16xbf16>, vector<8x8xf32> -> vector<8x8xf32>
    %cst_25 = arith.constant dense<0xFF800000> : vector<8xf32>
    %54 = vector.multi_reduction <maximumf>, %53, %cst_25 [1] : vector<8x8xf32> to vector<8xf32>
    %55 = vector.shape_cast %54 : vector<8xf32> to vector<8x1xf32>
    %56 = vector.broadcast %55 : vector<8x1xf32> to vector<8x8xf32>
    %57 = arith.subf %53, %56 : vector<8x8xf32>
    %58 = math.exp %57 : vector<8x8xf32>
    %cst_26 = arith.constant dense<0.000000e+00> : vector<8xf32>
    %59 = vector.multi_reduction <add>, %58, %cst_26 [1] : vector<8x8xf32> to vector<8xf32>
    %60 = vector.shape_cast %59 : vector<8xf32> to vector<8x1xf32>
    %61 = tpu.reciprocal %60 {approx = true} : vector<8x1xf32> -> vector<8x1xf32>
    %62 = vector.broadcast %61 : vector<8x1xf32> to vector<8x8xf32>
    %63 = arith.mulf %58, %62 : vector<8x8xf32>
    %64 = arith.truncf %63 : vector<8x8xf32> to vector<8x8xbf16>
    %cst_27 = arith.constant dense<0.000000e+00> : vector<8x16xf32>
    %65 = tpu.matmul %64, %52, %cst_27 {dimension_numbers = #tpu.dot_dimension_numbers<[1], [0], [0], [1], [0, 0, 1, 1], [], []>} : vector<8x8xbf16>, vector<8x16xbf16>, vector<8x16xf32> -> vector<8x16xf32>
    %66 = arith.truncf %65 : vector<8x16xf32> to vector<8x16xbf16>
    %67 = vector.extract_strided_slice %18 {offsets = [16, 0], sizes = [16, 32], strides = [1, 1]} : vector<32x32xbf16> to vector<16x32xbf16>
    %cst_28 = arith.constant dense<0.000000e+00> : vector<8x32xf32>
    %68 = tpu.matmul %66, %67, %cst_28 {dimension_numbers = #tpu.dot_dimension_numbers<[1], [0], [0], [1], [0, 0, 1, 1], [], []>} : vector<8x16xbf16>, vector<16x32xbf16>, vector<8x32xf32> -> vector<8x32xf32>
    %69 = arith.addf %44, %68 : vector<8x32xf32>
    %c0_29 = arith.constant 0 : index
    %c0_30 = arith.constant 0 : index
    %70 = vector.load %arg8[%c0_29, %c0_30] : memref<1x32xf32, #tpu.memory_space<vmem>>, vector<1x32xf32>
    %71 = vector.broadcast %70 : vector<1x32xf32> to vector<8x32xf32>
    %72 = arith.addf %69, %71 : vector<8x32xf32>
    %73 = arith.addf %1, %72 : vector<8x32xf32>
    %cst_31 = arith.constant dense<0.000000e+00> : vector<8xf32>
    %74 = vector.multi_reduction <add>, %73, %cst_31 [1] : vector<8x32xf32> to vector<8xf32>
    %75 = vector.shape_cast %74 : vector<8xf32> to vector<8x1xf32>
    %cst_32 = arith.constant 3.200000e+01 : f32
    %76 = vector.broadcast %cst_32 : f32 to vector<8x1xf32>
    %77 = arith.divf %75, %76 : vector<8x1xf32>
    %78 = vector.broadcast %77 : vector<8x1xf32> to vector<8x32xf32>
    %79 = arith.subf %73, %78 : vector<8x32xf32>
    %80 = arith.mulf %79, %79 : vector<8x32xf32>
    %cst_33 = arith.constant dense<0.000000e+00> : vector<8xf32>
    %81 = vector.multi_reduction <add>, %80, %cst_33 [1] : vector<8x32xf32> to vector<8xf32>
    %82 = vector.shape_cast %81 : vector<8xf32> to vector<8x1xf32>
    %cst_34 = arith.constant 3.200000e+01 : f32
    %83 = vector.broadcast %cst_34 : f32 to vector<8x1xf32>
    %84 = arith.divf %82, %83 : vector<8x1xf32>
    %85 = vector.broadcast %77 : vector<8x1xf32> to vector<8x32xf32>
    %86 = arith.subf %73, %85 : vector<8x32xf32>
    %cst_35 = arith.constant 9.99999974E-6 : f32
    %87 = vector.broadcast %cst_35 : f32 to vector<8x1xf32>
    %88 = arith.addf %84, %87 : vector<8x1xf32>
    %89 = math.rsqrt %88 : vector<8x1xf32>
    %90 = vector.broadcast %89 : vector<8x1xf32> to vector<8x32xf32>
    %91 = arith.mulf %86, %90 : vector<8x32xf32>
    %c0_36 = arith.constant 0 : index
    %c0_37 = arith.constant 0 : index
    %92 = vector.load %arg9[%c0_36, %c0_37] : memref<1x32xf32, #tpu.memory_space<vmem>>, vector<1x32xf32>
    %93 = vector.broadcast %92 : vector<1x32xf32> to vector<8x32xf32>
    %94 = arith.mulf %91, %93 : vector<8x32xf32>
    %c0_38 = arith.constant 0 : index
    %c0_39 = arith.constant 0 : index
    %95 = vector.load %arg10[%c0_38, %c0_39] : memref<1x32xf32, #tpu.memory_space<vmem>>, vector<1x32xf32>
    %96 = vector.broadcast %95 : vector<1x32xf32> to vector<8x32xf32>
    %97 = arith.addf %94, %96 : vector<8x32xf32>
    %c0_40 = arith.constant 0 : index
    %c0_41 = arith.constant 0 : index
    %c0_42 = arith.constant 0 : index
    %98 = vector.load %arg11[%c0_40, %c0_41, %c0_42] : memref<1x8x32xf32, #tpu.memory_space<vmem>>, vector<1x8x32xf32>
    %99 = vector.shape_cast %98 : vector<1x8x32xf32> to vector<8x32xf32>
    %100 = vector.shape_cast %97 : vector<8x32xf32> to vector<1x8x32xf32>
    tpu.vector_store %arg11[%c0_40, %c0_41, %c0_42], %100 {strides = array<i32>} : memref<1x8x32xf32, #tpu.memory_space<vmem>>, vector<1x8x32xf32>,
    return
  }
  func.func @transform_0(%arg0: i32) -> (i32, i32, i32) {
    %c0_i32 = arith.constant 0 : i32
    %c0_i32_0 = arith.constant 0 : i32
    %c0_i32_1 = arith.constant 0 : i32
    return %arg0, %c0_i32, %c0_i32_0 : i32, i32, i32
  }
  func.func @transform_1(%arg0: i32) -> (i32, i32, i32) {
    %c0_i32 = arith.constant 0 : i32
    %c0_i32_0 = arith.constant 0 : i32
    %c0_i32_1 = arith.constant 0 : i32
    return %arg0, %c0_i32, %c0_i32_0 : i32, i32, i32
  }
  func.func @transform_2(%arg0: i32) -> (i32, i32) {
    %c0_i32 = arith.constant 0 : i32
    %c0_i32_0 = arith.constant 0 : i32
    %c0_i32_1 = arith.constant 0 : i32
    return %c0_i32, %c0_i32_0 : i32, i32
  }
  func.func @transform_3(%arg0: i32) -> (i32, i32) {
    %c0_i32 = arith.constant 0 : i32
    %c0_i32_0 = arith.constant 0 : i32
    %c0_i32_1 = arith.constant 0 : i32
    return %c0_i32, %c0_i32_0 : i32, i32
  }
  func.func @transform_4(%arg0: i32) -> (i32, i32) {
    %c0_i32 = arith.constant 0 : i32
    %c0_i32_0 = arith.constant 0 : i32
    %c0_i32_1 = arith.constant 0 : i32
    return %c0_i32, %c0_i32_0 : i32, i32
  }
  func.func @transform_5(%arg0: i32) -> (i32, i32) {
    %c0_i32 = arith.constant 0 : i32
    %c0_i32_0 = arith.constant 0 : i32
    %c0_i32_1 = arith.constant 0 : i32
    return %c0_i32, %c0_i32_0 : i32, i32
  }
  func.func @transform_6(%arg0: i32) -> (i32, i32) {
    %c0_i32 = arith.constant 0 : i32
    %c0_i32_0 = arith.constant 0 : i32
    %c0_i32_1 = arith.constant 0 : i32
    return %c0_i32, %c0_i32_0 : i32, i32
  }
  func.func @transform_7(%arg0: i32) -> (i32, i32) {
    %c0_i32 = arith.constant 0 : i32
    %c0_i32_0 = arith.constant 0 : i32
    %c0_i32_1 = arith.constant 0 : i32
    return %c0_i32, %c0_i32_0 : i32, i32
  }
  func.func @transform_8(%arg0: i32) -> (i32, i32) {
    %c0_i32 = arith.constant 0 : i32
    %c0_i32_0 = arith.constant 0 : i32
    %c0_i32_1 = arith.constant 0 : i32
    return %c0_i32, %c0_i32_0 : i32, i32
  }
  func.func @transform_9(%arg0: i32) -> (i32, i32) {
    %c0_i32 = arith.constant 0 : i32
    %c0_i32_0 = arith.constant 0 : i32
    %c0_i32_1 = arith.constant 0 : i32
    return %c0_i32, %c0_i32_0 : i32, i32
  }
  func.func @transform_10(%arg0: i32) -> (i32, i32, i32) {
    %c0_i32 = arith.constant 0 : i32
    %c0_i32_0 = arith.constant 0 : i32
    %c0_i32_1 = arith.constant 0 : i32
    return %arg0, %c0_i32, %c0_i32_0 : i32, i32, i32
  }
}

module attributes {stable_mosaic.version = 11 : i64} {
  func.func @_ln_kernel(%arg0: i32, %arg1: memref<16x32xf32, #tpu.memory_space<vmem>>, %arg2: memref<1x32xf32, #tpu.memory_space<vmem>>, %arg3: memref<1x32xf32, #tpu.memory_space<vmem>>, %arg4: memref<16x32xf32, #tpu.memory_space<vmem>>) attributes {dimension_semantics = [#tpu.dimension_semantics<parallel>], iteration_bounds = array<i64: 1>, scalar_prefetch = 0 : i64, scratch_operands = 0 : i64, tpu.core_type = #tpu.core_type<tc>, window_params = [{transform_indices = @transform_0, window_bounds = array<i64: 16, 32>}, {pipeline_mode = #tpu.pipeline_mode<synchronous>, transform_indices = @transform_1, window_bounds = array<i64: 1, 32>}, {pipeline_mode = #tpu.pipeline_mode<synchronous>, transform_indices = @transform_2, window_bounds = array<i64: 1, 32>}, {transform_indices = @transform_3, window_bounds = array<i64: 16, 32>}]} {
    %c0 = arith.constant 0 : index
    %c0_0 = arith.constant 0 : index
    %0 = vector.load %arg1[%c0, %c0_0] : memref<16x32xf32, #tpu.memory_space<vmem>>, vector<16x32xf32>
    %cst = arith.constant dense<0.000000e+00> : vector<16xf32>
    %1 = vector.multi_reduction <add>, %0, %cst [1] : vector<16x32xf32> to vector<16xf32>
    %2 = vector.shape_cast %1 : vector<16xf32> to vector<16x1xf32>
    %cst_1 = arith.constant 3.200000e+01 : f32
    %3 = vector.broadcast %cst_1 : f32 to vector<16x1xf32>
    %4 = arith.divf %2, %3 : vector<16x1xf32>
    %5 = vector.broadcast %4 : vector<16x1xf32> to vector<16x32xf32>
    %6 = arith.subf %0, %5 : vector<16x32xf32>
    %7 = arith.mulf %6, %6 : vector<16x32xf32>
    %cst_2 = arith.constant dense<0.000000e+00> : vector<16xf32>
    %8 = vector.multi_reduction <add>, %7, %cst_2 [1] : vector<16x32xf32> to vector<16xf32>
    %9 = vector.shape_cast %8 : vector<16xf32> to vector<16x1xf32>
    %cst_3 = arith.constant 3.200000e+01 : f32
    %10 = vector.broadcast %cst_3 : f32 to vector<16x1xf32>
    %11 = arith.divf %9, %10 : vector<16x1xf32>
    %12 = vector.broadcast %4 : vector<16x1xf32> to vector<16x32xf32>
    %13 = arith.subf %0, %12 : vector<16x32xf32>
    %cst_4 = arith.constant 9.99999974E-6 : f32
    %14 = vector.broadcast %cst_4 : f32 to vector<16x1xf32>
    %15 = arith.addf %11, %14 : vector<16x1xf32>
    %16 = math.rsqrt %15 : vector<16x1xf32>
    %17 = vector.broadcast %16 : vector<16x1xf32> to vector<16x32xf32>
    %18 = arith.mulf %13, %17 : vector<16x32xf32>
    %c0_5 = arith.constant 0 : index
    %c0_6 = arith.constant 0 : index
    %19 = vector.load %arg2[%c0_5, %c0_6] : memref<1x32xf32, #tpu.memory_space<vmem>>, vector<1x32xf32>
    %20 = vector.broadcast %19 : vector<1x32xf32> to vector<16x32xf32>
    %21 = arith.mulf %18, %20 : vector<16x32xf32>
    %c0_7 = arith.constant 0 : index
    %c0_8 = arith.constant 0 : index
    %22 = vector.load %arg3[%c0_7, %c0_8] : memref<1x32xf32, #tpu.memory_space<vmem>>, vector<1x32xf32>
    %23 = vector.broadcast %22 : vector<1x32xf32> to vector<16x32xf32>
    %24 = arith.addf %21, %23 : vector<16x32xf32>
    %c0_9 = arith.constant 0 : index
    %c0_10 = arith.constant 0 : index
    %25 = vector.load %arg4[%c0_9, %c0_10] : memref<16x32xf32, #tpu.memory_space<vmem>>, vector<16x32xf32>
    tpu.vector_store %arg4[%c0_9, %c0_10], %24 {strides = array<i32>} : memref<16x32xf32, #tpu.memory_space<vmem>>, vector<16x32xf32>,
    return
  }
  func.func @transform_0(%arg0: i32) -> (i32, i32) {
    %c0_i32 = arith.constant 0 : i32
    %c0_i32_0 = arith.constant 0 : i32
    return %arg0, %c0_i32 : i32, i32
  }
  func.func @transform_1(%arg0: i32) -> (i32, i32) {
    %c0_i32 = arith.constant 0 : i32
    %c0_i32_0 = arith.constant 0 : i32
    %c0_i32_1 = arith.constant 0 : i32
    return %c0_i32, %c0_i32_0 : i32, i32
  }
  func.func @transform_2(%arg0: i32) -> (i32, i32) {
    %c0_i32 = arith.constant 0 : i32
    %c0_i32_0 = arith.constant 0 : i32
    %c0_i32_1 = arith.constant 0 : i32
    return %c0_i32, %c0_i32_0 : i32, i32
  }
  func.func @transform_3(%arg0: i32) -> (i32, i32) {
    %c0_i32 = arith.constant 0 : i32
    %c0_i32_0 = arith.constant 0 : i32
    return %arg0, %c0_i32 : i32, i32
  }
}

module attributes {stable_mosaic.version = 11 : i64} {
  func.func @_ln_linear_kernel(%arg0: i32, %arg1: memref<16x32xf32, #tpu.memory_space<vmem>>, %arg2: memref<1x32xf32, #tpu.memory_space<vmem>>, %arg3: memref<1x32xf32, #tpu.memory_space<vmem>>, %arg4: memref<32x128xbf16, #tpu.memory_space<vmem>>, %arg5: memref<1x128xf32, #tpu.memory_space<vmem>>, %arg6: memref<16x128xf32, #tpu.memory_space<vmem>>) attributes {dimension_semantics = [#tpu.dimension_semantics<parallel>], iteration_bounds = array<i64: 1>, scalar_prefetch = 0 : i64, scratch_operands = 0 : i64, tpu.core_type = #tpu.core_type<tc>, window_params = [{transform_indices = @transform_0, window_bounds = array<i64: 16, 32>}, {pipeline_mode = #tpu.pipeline_mode<synchronous>, transform_indices = @transform_1, window_bounds = array<i64: 1, 32>}, {pipeline_mode = #tpu.pipeline_mode<synchronous>, transform_indices = @transform_2, window_bounds = array<i64: 1, 32>}, {pipeline_mode = #tpu.pipeline_mode<synchronous>, transform_indices = @transform_3, window_bounds = array<i64: 32, 128>}, {pipeline_mode = #tpu.pipeline_mode<synchronous>, transform_indices = @transform_4, window_bounds = array<i64: 1, 128>}, {transform_indices = @transform_5, window_bounds = array<i64: 16, 128>}]} {
    %c0 = arith.constant 0 : index
    %c0_0 = arith.constant 0 : index
    %0 = vector.load %arg1[%c0, %c0_0] : memref<16x32xf32, #tpu.memory_space<vmem>>, vector<16x32xf32>
    %cst = arith.constant dense<0.000000e+00> : vector<16xf32>
    %1 = vector.multi_reduction <add>, %0, %cst [1] : vector<16x32xf32> to vector<16xf32>
    %2 = vector.shape_cast %1 : vector<16xf32> to vector<16x1xf32>
    %cst_1 = arith.constant 3.200000e+01 : f32
    %3 = vector.broadcast %cst_1 : f32 to vector<16x1xf32>
    %4 = arith.divf %2, %3 : vector<16x1xf32>
    %5 = vector.broadcast %4 : vector<16x1xf32> to vector<16x32xf32>
    %6 = arith.subf %0, %5 : vector<16x32xf32>
    %7 = arith.mulf %6, %6 : vector<16x32xf32>
    %cst_2 = arith.constant dense<0.000000e+00> : vector<16xf32>
    %8 = vector.multi_reduction <add>, %7, %cst_2 [1] : vector<16x32xf32> to vector<16xf32>
    %9 = vector.shape_cast %8 : vector<16xf32> to vector<16x1xf32>
    %cst_3 = arith.constant 3.200000e+01 : f32
    %10 = vector.broadcast %cst_3 : f32 to vector<16x1xf32>
    %11 = arith.divf %9, %10 : vector<16x1xf32>
    %12 = vector.broadcast %4 : vector<16x1xf32> to vector<16x32xf32>
    %13 = arith.subf %0, %12 : vector<16x32xf32>
    %cst_4 = arith.constant 9.99999974E-6 : f32
    %14 = vector.broadcast %cst_4 : f32 to vector<16x1xf32>
    %15 = arith.addf %11, %14 : vector<16x1xf32>
    %16 = math.rsqrt %15 : vector<16x1xf32>
    %17 = vector.broadcast %16 : vector<16x1xf32> to vector<16x32xf32>
    %18 = arith.mulf %13, %17 : vector<16x32xf32>
    %c0_5 = arith.constant 0 : index
    %c0_6 = arith.constant 0 : index
    %19 = vector.load %arg2[%c0_5, %c0_6] : memref<1x32xf32, #tpu.memory_space<vmem>>, vector<1x32xf32>
    %20 = vector.broadcast %19 : vector<1x32xf32> to vector<16x32xf32>
    %21 = arith.mulf %18, %20 : vector<16x32xf32>
    %c0_7 = arith.constant 0 : index
    %c0_8 = arith.constant 0 : index
    %22 = vector.load %arg3[%c0_7, %c0_8] : memref<1x32xf32, #tpu.memory_space<vmem>>, vector<1x32xf32>
    %23 = vector.broadcast %22 : vector<1x32xf32> to vector<16x32xf32>
    %24 = arith.addf %21, %23 : vector<16x32xf32>
    %25 = arith.truncf %24 : vector<16x32xf32> to vector<16x32xbf16>
    %c0_9 = arith.constant 0 : index
    %c0_10 = arith.constant 0 : index
    %26 = vector.load %arg4[%c0_9, %c0_10] : memref<32x128xbf16, #tpu.memory_space<vmem>>, vector<32x128xbf16>
    %cst_11 = arith.constant dense<0.000000e+00> : vector<16x128xf32>
    %27 = tpu.matmul %25, %26, %cst_11 {dimension_numbers = #tpu.dot_dimension_numbers<[1], [0], [0], [1], [0, 0, 1, 1], [], []>} : vector<16x32xbf16>, vector<32x128xbf16>, vector<16x128xf32> -> vector<16x128xf32>
    %c0_12 = arith.constant 0 : index
    %c0_13 = arith.constant 0 : index
    %28 = vector.load %arg5[%c0_12, %c0_13] : memref<1x128xf32, #tpu.memory_space<vmem>>, vector<1x128xf32>
    %29 = vector.broadcast %28 : vector<1x128xf32> to vector<16x128xf32>
    %30 = arith.addf %27, %29 : vector<16x128xf32>
    %c0_14 = arith.constant 0 : index
    %c0_15 = arith.constant 0 : index
    %31 = vector.load %arg6[%c0_14, %c0_15] : memref<16x128xf32, #tpu.memory_space<vmem>>, vector<16x128xf32>
    tpu.vector_store %arg6[%c0_14, %c0_15], %30 {strides = array<i32>} : memref<16x128xf32, #tpu.memory_space<vmem>>, vector<16x128xf32>,
    return
  }
  func.func @transform_0(%arg0: i32) -> (i32, i32) {
    %c0_i32 = arith.constant 0 : i32
    %c0_i32_0 = arith.constant 0 : i32
    return %arg0, %c0_i32 : i32, i32
  }
  func.func @transform_1(%arg0: i32) -> (i32, i32) {
    %c0_i32 = arith.constant 0 : i32
    %c0_i32_0 = arith.constant 0 : i32
    %c0_i32_1 = arith.constant 0 : i32
    return %c0_i32, %c0_i32_0 : i32, i32
  }
  func.func @transform_2(%arg0: i32) -> (i32, i32) {
    %c0_i32 = arith.constant 0 : i32
    %c0_i32_0 = arith.constant 0 : i32
    %c0_i32_1 = arith.constant 0 : i32
    return %c0_i32, %c0_i32_0 : i32, i32
  }
  func.func @transform_3(%arg0: i32) -> (i32, i32) {
    %c0_i32 = arith.constant 0 : i32
    %c0_i32_0 = arith.constant 0 : i32
    %c0_i32_1 = arith.constant 0 : i32
    return %c0_i32, %c0_i32_0 : i32, i32
  }
  func.func @transform_4(%arg0: i32) -> (i32, i32) {
    %c0_i32 = arith.constant 0 : i32
    %c0_i32_0 = arith.constant 0 : i32
    %c0_i32_1 = arith.constant 0 : i32
    return %c0_i32, %c0_i32_0 : i32, i32
  }
  func.func @transform_5(%arg0: i32) -> (i32, i32) {
    %c0_i32 = arith.constant 0 : i32
    %c0_i32_0 = arith.constant 0 : i32
    return %arg0, %c0_i32 : i32, i32
  }
}

module attributes {stable_mosaic.version = 11 : i64} {
  func.func @_mha_block_kernel(%arg0: i32, %arg1: memref<1x8x32xf32, #tpu.memory_space<vmem>>, %arg2: memref<1x8x32xf32, #tpu.memory_space<vmem>>, %arg3: memref<32x32xbf16, #tpu.memory_space<vmem>>, %arg4: memref<1x32xf32, #tpu.memory_space<vmem>>, %arg5: memref<32x64xbf16, #tpu.memory_space<vmem>>, %arg6: memref<1x64xf32, #tpu.memory_space<vmem>>, %arg7: memref<32x32xbf16, #tpu.memory_space<vmem>>, %arg8: memref<1x32xf32, #tpu.memory_space<vmem>>, %arg9: memref<1x32xf32, #tpu.memory_space<vmem>>, %arg10: memref<1x32xf32, #tpu.memory_space<vmem>>, %arg11: memref<1x8x32xf32, #tpu.memory_space<vmem>>) attributes {dimension_semantics = [#tpu.dimension_semantics<parallel>], iteration_bounds = array<i64: 2>, scalar_prefetch = 0 : i64, scratch_operands = 0 : i64, tpu.core_type = #tpu.core_type<tc>, window_params = [{transform_indices = @transform_0, window_bounds = array<i64: 1, 8, 32>}, {transform_indices = @transform_1, window_bounds = array<i64: 1, 8, 32>}, {pipeline_mode = #tpu.pipeline_mode<synchronous>, transform_indices = @transform_2, window_bounds = array<i64: 32, 32>}, {pipeline_mode = #tpu.pipeline_mode<synchronous>, transform_indices = @transform_3, window_bounds = array<i64: 1, 32>}, {pipeline_mode = #tpu.pipeline_mode<synchronous>, transform_indices = @transform_4, window_bounds = array<i64: 32, 64>}, {pipeline_mode = #tpu.pipeline_mode<synchronous>, transform_indices = @transform_5, window_bounds = array<i64: 1, 64>}, {pipeline_mode = #tpu.pipeline_mode<synchronous>, transform_indices = @transform_6, window_bounds = array<i64: 32, 32>}, {pipeline_mode = #tpu.pipeline_mode<synchronous>, transform_indices = @transform_7, window_bounds = array<i64: 1, 32>}, {pipeline_mode = #tpu.pipeline_mode<synchronous>, transform_indices = @transform_8, window_bounds = array<i64: 1, 32>}, {pipeline_mode = #tpu.pipeline_mode<synchronous>, transform_indices = @transform_9, window_bounds = array<i64: 1, 32>}, {transform_indices = @transform_10, window_bounds = array<i64: 1, 8, 32>}]} {
    %c0 = arith.constant 0 : index
    %c0_0 = arith.constant 0 : index
    %c0_1 = arith.constant 0 : index
    %0 = vector.load %arg1[%c0, %c0_0, %c0_1] : memref<1x8x32xf32, #tpu.memory_space<vmem>>, vector<1x8x32xf32>
    %1 = vector.shape_cast %0 : vector<1x8x32xf32> to vector<8x32xf32>
    %c0_2 = arith.constant 0 : index
    %c0_3 = arith.constant 0 : index
    %c0_4 = arith.constant 0 : index
    %2 = vector.load %arg2[%c0_2, %c0_3, %c0_4] : memref<1x8x32xf32, #tpu.memory_space<vmem>>, vector<1x8x32xf32>
    %3 = vector.shape_cast %2 : vector<1x8x32xf32> to vector<8x32xf32>
    %4 = arith.truncf %1 : vector<8x32xf32> to vector<8x32xbf16>
    %c0_5 = arith.constant 0 : index
    %c0_6 = arith.constant 0 : index
    %5 = vector.load %arg3[%c0_5, %c0_6] : memref<32x32xbf16, #tpu.memory_space<vmem>>, vector<32x32xbf16>
    %cst = arith.constant dense<0.000000e+00> : vector<8x32xf32>
    %6 = tpu.matmul %4, %5, %cst {dimension_numbers = #tpu.dot_dimension_numbers<[1], [0], [0], [1], [0, 0, 1, 1], [], []>} : vector<8x32xbf16>, vector<32x32xbf16>, vector<8x32xf32> -> vector<8x32xf32>
    %c0_7 = arith.constant 0 : index
    %c0_8 = arith.constant 0 : index
    %7 = vector.load %arg4[%c0_7, %c0_8] : memref<1x32xf32, #tpu.memory_space<vmem>>, vector<1x32xf32>
    %8 = vector.broadcast %7 : vector<1x32xf32> to vector<8x32xf32>
    %9 = arith.addf %6, %8 : vector<8x32xf32>
    %10 = arith.truncf %3 : vector<8x32xf32> to vector<8x32xbf16>
    %c0_9 = arith.constant 0 : index
    %c0_10 = arith.constant 0 : index
    %11 = vector.load %arg5[%c0_9, %c0_10] : memref<32x64xbf16, #tpu.memory_space<vmem>>, vector<32x64xbf16>
    %cst_11 = arith.constant dense<0.000000e+00> : vector<8x64xf32>
    %12 = tpu.matmul %10, %11, %cst_11 {dimension_numbers = #tpu.dot_dimension_numbers<[1], [0], [0], [1], [0, 0, 1, 1], [], []>} : vector<8x32xbf16>, vector<32x64xbf16>, vector<8x64xf32> -> vector<8x64xf32>
    %c0_12 = arith.constant 0 : index
    %c0_13 = arith.constant 0 : index
    %13 = vector.load %arg6[%c0_12, %c0_13] : memref<1x64xf32, #tpu.memory_space<vmem>>, vector<1x64xf32>
    %14 = vector.broadcast %13 : vector<1x64xf32> to vector<8x64xf32>
    %15 = arith.addf %12, %14 : vector<8x64xf32>
    %16 = vector.extract_strided_slice %15 {offsets = [0, 0], sizes = [8, 32], strides = [1, 1]} : vector<8x64xf32> to vector<8x32xf32>
    %17 = vector.extract_strided_slice %15 {offsets = [0, 32], sizes = [8, 32], strides = [1, 1]} : vector<8x64xf32> to vector<8x32xf32>
    %18 = tpu.iota {dimensions = array<i32: 0>} : vector<8x8xi32>
    %19 = tpu.iota {dimensions = array<i32: 1>} : vector<8x8xi32>
    %20 = arith.cmpi sle, %19, %18 : vector<8x8xi32>
    %cst_14 = arith.constant 0.000000e+00 : f32
    %cst_15 = arith.constant 0xFF800000 : f32
    %21 = vector.broadcast %cst_14 : f32 to vector<8x8xf32>
    %22 = vector.broadcast %cst_15 : f32 to vector<8x8xf32>
    %23 = arith.select %20, %21, %22 : vector<8x8xi1>, vector<8x8xf32>
    %c0_16 = arith.constant 0 : index
    %c0_17 = arith.constant 0 : index
    %24 = vector.load %arg7[%c0_16, %c0_17] : memref<32x32xbf16, #tpu.memory_space<vmem>>, vector<32x32xbf16>
    %cst_18 = arith.constant 0.000000e+00 : f32
    %25 = vector.broadcast %cst_18 : f32 to vector<8x32xf32>
    %26 = vector.extract_strided_slice %9 {offsets = [0, 0], sizes = [8, 16], strides = [1, 1]} : vector<8x32xf32> to vector<8x16xf32>
    %cst_19 = arith.constant 2.500000e-01 : f32
    %27 = vector.broadcast %cst_19 : f32 to vector<8x16xf32>
    %28 = arith.mulf %26, %27 : vector<8x16xf32>
    %29 = arith.truncf %28 : vector<8x16xf32> to vector<8x16xbf16>
    %30 = vector.extract_strided_slice %16 {offsets = [0, 0], sizes = [8, 16], strides = [1, 1]} : vector<8x32xf32> to vector<8x16xf32>
    %31 = arith.truncf %30 : vector<8x16xf32> to vector<8x16xbf16>
    %32 = vector.extract_strided_slice %17 {offsets = [0, 0], sizes = [8, 16], strides = [1, 1]} : vector<8x32xf32> to vector<8x16xf32>
    %33 = arith.truncf %32 : vector<8x16xf32> to vector<8x16xbf16>
    %cst_20 = arith.constant dense<0.000000e+00> : vector<8x8xf32>
    %34 = tpu.matmul %29, %31, %cst_20 {dimension_numbers = #tpu.dot_dimension_numbers<[1], [1], [0], [0], [0, 0, 1, 0], [], []>} : vector<8x16xbf16>, vector<8x16xbf16>, vector<8x8xf32> -> vector<8x8xf32>
    %35 = arith.addf %34, %23 : vector<8x8xf32>
    %cst_21 = arith.constant dense<0xFF800000> : vector<8xf32>
    %36 = vector.multi_reduction <maximumf>, %35, %cst_21 [1] : vector<8x8xf32> to vector<8xf32>
    %37 = vector.shape_cast %36 : vector<8xf32> to vector<8x1xf32>
    %38 = vector.broadcast %37 : vector<8x1xf32> to vector<8x8xf32>
    %39 = arith.subf %35, %38 : vector<8x8xf32>
    %40 = math.exp %39 : vector<8x8xf32>
    %cst_22 = arith.constant dense<0.000000e+00> : vector<8xf32>
    %41 = vector.multi_reduction <add>, %40, %cst_22 [1] : vector<8x8xf32> to vector<8xf32>
    %42 = vector.shape_cast %41 : vector<8xf32> to vector<8x1xf32>
    %43 = tpu.reciprocal %42 {approx = true} : vector<8x1xf32> -> vector<8x1xf32>
    %44 = vector.broadcast %43 : vector<8x1xf32> to vector<8x8xf32>
    %45 = arith.mulf %40, %44 : vector<8x8xf32>
    %46 = arith.truncf %45 : vector<8x8xf32> to vector<8x8xbf16>
    %cst_23 = arith.constant dense<0.000000e+00> : vector<8x16xf32>
    %47 = tpu.matmul %46, %33, %cst_23 {dimension_numbers = #tpu.dot_dimension_numbers<[1], [0], [0], [1], [0, 0, 1, 1], [], []>} : vector<8x8xbf16>, vector<8x16xbf16>, vector<8x16xf32> -> vector<8x16xf32>
    %48 = arith.truncf %47 : vector<8x16xf32> to vector<8x16xbf16>
    %49 = vector.extract_strided_slice %24 {offsets = [0, 0], sizes = [16, 32], strides = [1, 1]} : vector<32x32xbf16> to vector<16x32xbf16>
    %cst_24 = arith.constant dense<0.000000e+00> : vector<8x32xf32>
    %50 = tpu.matmul %48, %49, %cst_24 {dimension_numbers = #tpu.dot_dimension_numbers<[1], [0], [0], [1], [0, 0, 1, 1], [], []>} : vector<8x16xbf16>, vector<16x32xbf16>, vector<8x32xf32> -> vector<8x32xf32>
    %51 = arith.addf %25, %50 : vector<8x32xf32>
    %52 = vector.extract_strided_slice %9 {offsets = [0, 16], sizes = [8, 16], strides = [1, 1]} : vector<8x32xf32> to vector<8x16xf32>
    %cst_25 = arith.constant 2.500000e-01 : f32
    %53 = vector.broadcast %cst_25 : f32 to vector<8x16xf32>
    %54 = arith.mulf %52, %53 : vector<8x16xf32>
    %55 = arith.truncf %54 : vector<8x16xf32> to vector<8x16xbf16>
    %56 = vector.extract_strided_slice %16 {offsets = [0, 16], sizes = [8, 16], strides = [1, 1]} : vector<8x32xf32> to vector<8x16xf32>
    %57 = arith.truncf %56 : vector<8x16xf32> to vector<8x16xbf16>
    %58 = vector.extract_strided_slice %17 {offsets = [0, 16], sizes = [8, 16], strides = [1, 1]} : vector<8x32xf32> to vector<8x16xf32>
    %59 = arith.truncf %58 : vector<8x16xf32> to vector<8x16xbf16>
    %cst_26 = arith.constant dense<0.000000e+00> : vector<8x8xf32>
    %60 = tpu.matmul %55, %57, %cst_26 {dimension_numbers = #tpu.dot_dimension_numbers<[1], [1], [0], [0], [0, 0, 1, 0], [], []>} : vector<8x16xbf16>, vector<8x16xbf16>, vector<8x8xf32> -> vector<8x8xf32>
    %61 = arith.addf %60, %23 : vector<8x8xf32>
    %cst_27 = arith.constant dense<0xFF800000> : vector<8xf32>
    %62 = vector.multi_reduction <maximumf>, %61, %cst_27 [1] : vector<8x8xf32> to vector<8xf32>
    %63 = vector.shape_cast %62 : vector<8xf32> to vector<8x1xf32>
    %64 = vector.broadcast %63 : vector<8x1xf32> to vector<8x8xf32>
    %65 = arith.subf %61, %64 : vector<8x8xf32>
    %66 = math.exp %65 : vector<8x8xf32>
    %cst_28 = arith.constant dense<0.000000e+00> : vector<8xf32>
    %67 = vector.multi_reduction <add>, %66, %cst_28 [1] : vector<8x8xf32> to vector<8xf32>
    %68 = vector.shape_cast %67 : vector<8xf32> to vector<8x1xf32>
    %69 = tpu.reciprocal %68 {approx = true} : vector<8x1xf32> -> vector<8x1xf32>
    %70 = vector.broadcast %69 : vector<8x1xf32> to vector<8x8xf32>
    %71 = arith.mulf %66, %70 : vector<8x8xf32>
    %72 = arith.truncf %71 : vector<8x8xf32> to vector<8x8xbf16>
    %cst_29 = arith.constant dense<0.000000e+00> : vector<8x16xf32>
    %73 = tpu.matmul %72, %59, %cst_29 {dimension_numbers = #tpu.dot_dimension_numbers<[1], [0], [0], [1], [0, 0, 1, 1], [], []>} : vector<8x8xbf16>, vector<8x16xbf16>, vector<8x16xf32> -> vector<8x16xf32>
    %74 = arith.truncf %73 : vector<8x16xf32> to vector<8x16xbf16>
    %75 = vector.extract_strided_slice %24 {offsets = [16, 0], sizes = [16, 32], strides = [1, 1]} : vector<32x32xbf16> to vector<16x32xbf16>
    %cst_30 = arith.constant dense<0.000000e+00> : vector<8x32xf32>
    %76 = tpu.matmul %74, %75, %cst_30 {dimension_numbers = #tpu.dot_dimension_numbers<[1], [0], [0], [1], [0, 0, 1, 1], [], []>} : vector<8x16xbf16>, vector<16x32xbf16>, vector<8x32xf32> -> vector<8x32xf32>
    %77 = arith.addf %51, %76 : vector<8x32xf32>
    %c0_31 = arith.constant 0 : index
    %c0_32 = arith.constant 0 : index
    %78 = vector.load %arg8[%c0_31, %c0_32] : memref<1x32xf32, #tpu.memory_space<vmem>>, vector<1x32xf32>
    %79 = vector.broadcast %78 : vector<1x32xf32> to vector<8x32xf32>
    %80 = arith.addf %77, %79 : vector<8x32xf32>
    %81 = arith.addf %1, %80 : vector<8x32xf32>
    %cst_33 = arith.constant dense<0.000000e+00> : vector<8xf32>
    %82 = vector.multi_reduction <add>, %81, %cst_33 [1] : vector<8x32xf32> to vector<8xf32>
    %83 = vector.shape_cast %82 : vector<8xf32> to vector<8x1xf32>
    %cst_34 = arith.constant 3.200000e+01 : f32
    %84 = vector.broadcast %cst_34 : f32 to vector<8x1xf32>
    %85 = arith.divf %83, %84 : vector<8x1xf32>
    %86 = vector.broadcast %85 : vector<8x1xf32> to vector<8x32xf32>
    %87 = arith.subf %81, %86 : vector<8x32xf32>
    %88 = arith.mulf %87, %87 : vector<8x32xf32>
    %cst_35 = arith.constant dense<0.000000e+00> : vector<8xf32>
    %89 = vector.multi_reduction <add>, %88, %cst_35 [1] : vector<8x32xf32> to vector<8xf32>
    %90 = vector.shape_cast %89 : vector<8xf32> to vector<8x1xf32>
    %cst_36 = arith.constant 3.200000e+01 : f32
    %91 = vector.broadcast %cst_36 : f32 to vector<8x1xf32>
    %92 = arith.divf %90, %91 : vector<8x1xf32>
    %93 = vector.broadcast %85 : vector<8x1xf32> to vector<8x32xf32>
    %94 = arith.subf %81, %93 : vector<8x32xf32>
    %cst_37 = arith.constant 9.99999974E-6 : f32
    %95 = vector.broadcast %cst_37 : f32 to vector<8x1xf32>
    %96 = arith.addf %92, %95 : vector<8x1xf32>
    %97 = math.rsqrt %96 : vector<8x1xf32>
    %98 = vector.broadcast %97 : vector<8x1xf32> to vector<8x32xf32>
    %99 = arith.mulf %94, %98 : vector<8x32xf32>
    %c0_38 = arith.constant 0 : index
    %c0_39 = arith.constant 0 : index
    %100 = vector.load %arg9[%c0_38, %c0_39] : memref<1x32xf32, #tpu.memory_space<vmem>>, vector<1x32xf32>
    %101 = vector.broadcast %100 : vector<1x32xf32> to vector<8x32xf32>
    %102 = arith.mulf %99, %101 : vector<8x32xf32>
    %c0_40 = arith.constant 0 : index
    %c0_41 = arith.constant 0 : index
    %103 = vector.load %arg10[%c0_40, %c0_41] : memref<1x32xf32, #tpu.memory_space<vmem>>, vector<1x32xf32>
    %104 = vector.broadcast %103 : vector<1x32xf32> to vector<8x32xf32>
    %105 = arith.addf %102, %104 : vector<8x32xf32>
    %c0_42 = arith.constant 0 : index
    %c0_43 = arith.constant 0 : index
    %c0_44 = arith.constant 0 : index
    %106 = vector.load %arg11[%c0_42, %c0_43, %c0_44] : memref<1x8x32xf32, #tpu.memory_space<vmem>>, vector<1x8x32xf32>
    %107 = vector.shape_cast %106 : vector<1x8x32xf32> to vector<8x32xf32>
    %108 = vector.shape_cast %105 : vector<8x32xf32> to vector<1x8x32xf32>
    tpu.vector_store %arg11[%c0_42, %c0_43, %c0_44], %108 {strides = array<i32>} : memref<1x8x32xf32, #tpu.memory_space<vmem>>, vector<1x8x32xf32>,
    return
  }
  func.func @transform_0(%arg0: i32) -> (i32, i32, i32) {
    %c0_i32 = arith.constant 0 : i32
    %c0_i32_0 = arith.constant 0 : i32
    %c0_i32_1 = arith.constant 0 : i32
    return %arg0, %c0_i32, %c0_i32_0 : i32, i32, i32
  }
  func.func @transform_1(%arg0: i32) -> (i32, i32, i32) {
    %c0_i32 = arith.constant 0 : i32
    %c0_i32_0 = arith.constant 0 : i32
    %c0_i32_1 = arith.constant 0 : i32
    return %arg0, %c0_i32, %c0_i32_0 : i32, i32, i32
  }
  func.func @transform_2(%arg0: i32) -> (i32, i32) {
    %c0_i32 = arith.constant 0 : i32
    %c0_i32_0 = arith.constant 0 : i32
    %c0_i32_1 = arith.constant 0 : i32
    return %c0_i32, %c0_i32_0 : i32, i32
  }
  func.func @transform_3(%arg0: i32) -> (i32, i32) {
    %c0_i32 = arith.constant 0 : i32
    %c0_i32_0 = arith.constant 0 : i32
    %c0_i32_1 = arith.constant 0 : i32
    return %c0_i32, %c0_i32_0 : i32, i32
  }
  func.func @transform_4(%arg0: i32) -> (i32, i32) {
    %c0_i32 = arith.constant 0 : i32
    %c0_i32_0 = arith.constant 0 : i32
    %c0_i32_1 = arith.constant 0 : i32
    return %c0_i32, %c0_i32_0 : i32, i32
  }
  func.func @transform_5(%arg0: i32) -> (i32, i32) {
    %c0_i32 = arith.constant 0 : i32
    %c0_i32_0 = arith.constant 0 : i32
    %c0_i32_1 = arith.constant 0 : i32
    return %c0_i32, %c0_i32_0 : i32, i32
  }
  func.func @transform_6(%arg0: i32) -> (i32, i32) {
    %c0_i32 = arith.constant 0 : i32
    %c0_i32_0 = arith.constant 0 : i32
    %c0_i32_1 = arith.constant 0 : i32
    return %c0_i32, %c0_i32_0 : i32, i32
  }
  func.func @transform_7(%arg0: i32) -> (i32, i32) {
    %c0_i32 = arith.constant 0 : i32
    %c0_i32_0 = arith.constant 0 : i32
    %c0_i32_1 = arith.constant 0 : i32
    return %c0_i32, %c0_i32_0 : i32, i32
  }
  func.func @transform_8(%arg0: i32) -> (i32, i32) {
    %c0_i32 = arith.constant 0 : i32
    %c0_i32_0 = arith.constant 0 : i32
    %c0_i32_1 = arith.constant 0 : i32
    return %c0_i32, %c0_i32_0 : i32, i32
  }
  func.func @transform_9(%arg0: i32) -> (i32, i32) {
    %c0_i32 = arith.constant 0 : i32
    %c0_i32_0 = arith.constant 0 : i32
    %c0_i32_1 = arith.constant 0 : i32
    return %c0_i32, %c0_i32_0 : i32, i32
  }
  func.func @transform_10(%arg0: i32) -> (i32, i32, i32) {
    %c0_i32 = arith.constant 0 : i32
    %c0_i32_0 = arith.constant 0 : i32
    %c0_i32_1 = arith.constant 0 : i32
    return %arg0, %c0_i32, %c0_i32_0 : i32, i32, i32
  }
}

</mosaic_0001>

<llo_original>
// kernel: transformer_forward.17
$region0: #{transformer_forward.17}
  #allocation0 [shape = 'u32[]', space=smem, size = 0x4, offset = 0x4, fixed_abs, tag = 'smem constant byte address 0x4 - core index']
  #allocation1 [shape = 'u32[144,128]{1,0:T(1,128)}', space=vmem, size = 0x12000, scoped, tag = 'internal scratch']
  %s0 = inlined_call_operand.vmem [shape: f32[16,32], index: 0, kind: input, shape index: {}]
  %s1 = inlined_call_operand.vmem [shape: bf16[32,64], index: 1, kind: input, shape index: {}]
  %s2 = inlined_call_operand.vmem [shape: f32[1,64], index: 2, kind: input, shape index: {}]
  %s3 = inlined_call_operand.vmem [shape: bf16[64,32], index: 3, kind: input, shape index: {}]
  %s4 = inlined_call_operand.vmem [shape: f32[1,32], index: 4, kind: input, shape index: {}]
  %s5 = inlined_call_operand.vmem [shape: f32[1,32], index: 5, kind: input, shape index: {}]
  %s6 = inlined_call_operand.vmem [shape: f32[1,32], index: 6, kind: input, shape index: {}]
  %s7 = inlined_call_operand.vmem [shape: f32[16,32], index: 7, kind: output, shape index: {}]
  %s8 = sld [smem:[#allocation0]]
  $region38: #{transformer_forward.17} parent=0
    _
  %s10 = ssub.s32 1, %s8
  %s11 = scalar_select 0, %s10, %s8
  // Predicated region
  $region2: #{transformer_forward.17} parent=0 // pred_check
    _
  $region3: #{transformer_forward.17} parent=0 // pred_check_branch
    %13 = sbr.rel (0) target = $region5
  $region4: #{transformer_forward.17} parent=0 // pred_region
    _
  $region5: #{transformer_forward.17} parent=0 // pred_fallthru
    _
  // Predicated region
  $region6: #{transformer_forward.17} parent=0 // pred_check
    _
  $region7: #{transformer_forward.17} parent=0 // pred_check_branch
    %15 = sbr.rel (0) target = $region9
  $region8: #{transformer_forward.17} parent=0 // pred_region
    _
  $region9: #{transformer_forward.17} parent=0 // pred_fallthru
    _
  // Predicated region
  $region10: #{transformer_forward.17} parent=0 // pred_check
    _
  $region11: #{transformer_forward.17} parent=0 // pred_check_branch
    %17 = sbr.rel (0) target = $region13
  $region12: #{transformer_forward.17} parent=0 // pred_region
    _
  $region13: #{transformer_forward.17} parent=0 // pred_fallthru
    _
  // Predicated region
  $region14: #{transformer_forward.17} parent=0 // pred_check
    _
  $region15: #{transformer_forward.17} parent=0 // pred_check_branch
    %19 = sbr.rel (0) target = $region17
  $region16: #{transformer_forward.17} parent=0 // pred_region
    _
  $region17: #{transformer_forward.17} parent=0 // pred_fallthru
    _
  // Predicated region
  $region18: #{transformer_forward.17} parent=0 // pred_check
    _
  $region19: #{transformer_forward.17} parent=0 // pred_check_branch
    %21 = sbr.rel (0) target = $region21
  $region20: #{transformer_forward.17} parent=0 // pred_region
    _
  $region21: #{transformer_forward.17} parent=0 // pred_fallthru
    _
  // Predicated region
  $region22: #{transformer_forward.17} parent=0 // pred_check
    _
  $region23: #{transformer_forward.17} parent=0 // pred_check_branch
    %23 = sbr.rel (0) target = $region25
  $region24: #{transformer_forward.17} parent=0 // pred_region
    _
  $region25: #{transformer_forward.17} parent=0 // pred_fallthru
    _
  // Predicated region
  $region26: #{transformer_forward.17} parent=0 // pred_check
    _
  $region27: #{transformer_forward.17} parent=0 // pred_check_branch
    %25 = sbr.rel (0) target = $region29
  $region28: #{transformer_forward.17} parent=0 // pred_region
    _
  $region29: #{transformer_forward.17} parent=0 // pred_fallthru
    _
  %v27 = vld [vmem:[%s0] sm:$0xff]
  %v28 = vld [vmem:[%s0 + $0x8] sm:$0xff]
  %v29 = vpack.c.bf16 %v28, %v27
  %v30 = vld [vmem:[%s1] sm:$0xf]
  %v31 = vld [vmem:[%s1 + $0x4] sm:$0xf]
  %v32 = vld [vmem:[%s1 + $0x8] sm:$0xf]
  %v33 = vld [vmem:[%s1 + $0xc] sm:$0xf]
  %v34 = vld [vmem:[%s2] sm:$0x1]
  %v36 = vlaneseq
  %v37 = vshrl.u32 %v36, 7
  %v38 = vsub.s32 0, %v37
  %v39 = vrot.slane %v34, %v38
  %v45 = vunpack.c.l.b16 %v30
  %v46 = vunpack.c.l.b16 %v31
  %v47 = vunpack.c.l.b16 %v32
  %v48 = vunpack.c.l.b16 %v33
  %v49 = vpack.c.b16 %v46, %v45
  %v50 = vpack.c.b16 %v48, %v47
  %vm53 = vcmask 261120
  %v55 = vsel %vm53, %v29, 0
  %57 = vmatprep.subr.bf16.mxu0 0
  %58 = vmatpush1.bf16.msra.mxu0 0
  %59 = vmatprep.subr.bf16.mxu0 0
  %60 = vmatpush1.bf16.msra.mxu0 0
  %61 = vmatprep.subr.bf16.mxu0 0
  %62 = vmatpush1.bf16.msra.mxu0 0
  %63 = vmatprep.subr.bf16.mxu0 0
  %64 = vmatpush1.bf16.msra.mxu0 0
  %65 = vmatprep.subr.bf16.mxu0 0
  %66 = vmatpush1.bf16.msra.mxu0 0
  %67 = vmatprep.subr.bf16.mxu0 0
  %68 = vmatpush1.bf16.msra.mxu0 0
  %69 = vmatprep.subr.bf16.mxu0 0
  %70 = vmatpush1.bf16.msra.mxu0 %v50
  %71 = vmatprep.subr.bf16.mxu0 0
  %72 = vmatpush1.bf16.msra.mxu0 %v49
  %73 = vmatprep.subr.bf16.mxu0 0
  %74 = vmatpush2.bf16.msra.mxu0 0
  %75 = vmatprep.subr.bf16.mxu0 0
  %76 = vmatpush2.bf16.msra.mxu0 0
  %77 = vmatprep.subr.bf16.mxu0 0
  %78 = vmatpush2.bf16.msra.mxu0 0
  %79 = vmatprep.subr.bf16.mxu0 0
  %80 = vmatpush2.bf16.msra.mxu0 0
  %81 = vmatprep.subr.bf16.mxu0 0
  %82 = vmatpush2.bf16.msra.mxu0 0
  %83 = vmatprep.subr.bf16.mxu0 0
  %84 = vmatpush2.bf16.msra.mxu0 0
  %85 = vmatprep.subr.bf16.mxu0 0
  %86 = vmatpush2.bf16.msra.mxu0 0
  %87 = vmatprep.subr.bf16.mxu0 0
  %88 = vmatpush2.bf16.msra.mxu0 0
  %89 = vmatprep.mubr.bf16.mxu0 0
  %90 = vmatmul.mubr.bf16.gmra.mxu0 %v55
  %v91 = vpop.f32.mrf.mxu0
  %v92 = vadd.f32 %v39, %v91
  %v93 = vpop.f32.mrf.mxu0
  %v94 = vpop.f32.mrf.mxu0
  %v95 = vadd.f32 %v39, %v94
  %v96 = vpop.f32.mrf.mxu0
  %97 = vdwg.mxu0
  %v98 = vmax.f32 %v92, 0.0
  %v99 = vmax.f32 %v95, 0.0
  %v100 = vpack.c.bf16 %v99, %v98
  %v101 = vld [vmem:[%s3] sm:$0xf]
  %v102 = vld [vmem:[%s3 + $0x4] sm:$0xf]
  %v103 = vld [vmem:[%s3 + $0x8] sm:$0xf]
  %v104 = vld [vmem:[%s3 + $0xc] sm:$0xf]
  %v105 = vld [vmem:[%s3 + $0x10] sm:$0xf]
  %v106 = vld [vmem:[%s3 + $0x14] sm:$0xf]
  %v107 = vld [vmem:[%s3 + $0x18] sm:$0xf]
  %v108 = vld [vmem:[%s3 + $0x1c] sm:$0xf]
  %v109 = vld [vmem:[%s4] sm:$0x1]
  %v111 = vlaneseq
  %v112 = vshrl.u32 %v111, 7
  %v113 = vsub.s32 0, %v112
  %v114 = vrot.slane %v109, %v113
  %v124 = vunpack.c.l.b16 %v101
  %v125 = vunpack.c.l.b16 %v102
  %v126 = vunpack.c.l.b16 %v103
  %v127 = vunpack.c.l.b16 %v104
  %v128 = vunpack.c.l.b16 %v105
  %v129 = vunpack.c.l.b16 %v106
  %v130 = vunpack.c.l.b16 %v107
  %v131 = vunpack.c.l.b16 %v108
  %v132 = vpack.c.b16 %v125, %v124
  %v133 = vpack.c.b16 %v127, %v126
  %v134 = vpack.c.b16 %v129, %v128
  %v135 = vpack.c.b16 %v131, %v130
  %vm140 = vcmask 523264
  %v142 = vsel %vm140, %v100, 0
  %144 = vmatprep.subr.bf16.mxu0 0
  %145 = vmatpush1.bf16.msra.mxu0 0
  %146 = vmatprep.subr.bf16.mxu0 0
  %147 = vmatpush1.bf16.msra.mxu0 0
  %148 = vmatprep.subr.bf16.mxu0 0
  %149 = vmatpush1.bf16.msra.mxu0 0
  %150 = vmatprep.subr.bf16.mxu0 0
  %151 = vmatpush1.bf16.msra.mxu0 0
  %152 = vmatprep.subr.bf16.mxu0 0
  %153 = vmatpush1.bf16.msra.mxu0 %v135
  %154 = vmatprep.subr.bf16.mxu0 0
  %155 = vmatpush1.bf16.msra.mxu0 %v134
  %156 = vmatprep.subr.bf16.mxu0 0
  %157 = vmatpush1.bf16.msra.mxu0 %v133
  %158 = vmatprep.subr.bf16.mxu0 0
  %159 = vmatpush1.bf16.msra.mxu0 %v132
  %160 = vmatprep.subr.bf16.mxu0 0
  %161 = vmatpush2.bf16.msra.mxu0 0
  %162 = vmatprep.subr.bf16.mxu0 0
  %163 = vmatpush2.bf16.msra.mxu0 0
  %164 = vmatprep.subr.bf16.mxu0 0
  %165 = vmatpush2.bf16.msra.mxu0 0
  %166 = vmatprep.subr.bf16.mxu0 0
  %167 = vmatpush2.bf16.msra.mxu0 0
  %168 = vmatprep.subr.bf16.mxu0 0
  %169 = vmatpush2.bf16.msra.mxu0 0
  %170 = vmatprep.subr.bf16.mxu0 0
  %171 = vmatpush2.bf16.msra.mxu0 0
  %172 = vmatprep.subr.bf16.mxu0 0
  %173 = vmatpush2.bf16.msra.mxu0 0
  %174 = vmatprep.subr.bf16.mxu0 0
  %175 = vmatpush2.bf16.msra.mxu0 0
  %176 = vmatprep.mubr.bf16.mxu0 0
  %177 = vmatmul.mubr.bf16.gmra.mxu0 %v142
  %v178 = vpop.f32.mrf.mxu0
  %v179 = vadd.f32 %v114, %v178
  %v180 = vpop.f32.mrf.mxu0
  %v181 = vpop.f32.mrf.mxu0
  %v182 = vadd.f32 %v114, %v181
  %v183 = vpop.f32.mrf.mxu0
  %184 = vdwg.mxu0
  %v185 = vadd.f32 %v27, %v179
  %v186 = vadd.f32 %v28, %v182
  %v187 = vsel %vm53, %v185, 0.0
  %188 = vadd.xlane.f32.xlu0 %v187
  %v189 = vpop.xlane.xlu0 %188
  %v190 = vsel %vm53, %v186, 0.0
  %191 = vadd.xlane.f32.xlu0 %v190
  %v192 = vpop.xlane.xlu0 %191
  %v193 = vrcp.pop 32.0
  %v194 = vmul.f32 %v189, %v193
  %v195 = vmul.f32 %v192, %v193
  %v196 = vsub.f32 %v185, %v194
  %v197 = vsub.f32 %v186, %v195
  %v198 = vmul.f32 %v196, %v196
  %v199 = vmul.f32 %v197, %v197
  %v200 = vsel %vm53, %v198, 0.0
  %201 = vadd.xlane.f32.xlu0 %v200
  %v202 = vpop.xlane.xlu0 %201
  %v203 = vsel %vm53, %v199, 0.0
  %204 = vadd.xlane.f32.xlu0 %v203
  %v205 = vpop.xlane.xlu0 %204
  %v206 = vmul.f32 %v202, %v193
  %v207 = vmul.f32 %v205, %v193
  %v208 = vadd.f32 %v206, 1e-05
  %v209 = vadd.f32 %v207, 1e-05
  %v210 = vrsqrt.pop %v208
  %v211 = vrsqrt.pop %v209
  %v212 = vmul.f32 %v196, %v210
  %v213 = vmul.f32 %v197, %v211
  %v214 = vld [vmem:[%s5] sm:$0x1]
  %v216 = vlaneseq
  %v217 = vshrl.u32 %v216, 7
  %v218 = vsub.s32 0, %v217
  %v219 = vrot.slane %v214, %v218
  %v221 = vmul.f32 %v212, %v219
  %v222 = vmul.f32 %v213, %v219
  %v223 = vld [vmem:[%s6] sm:$0x1]
  %v225 = vlaneseq
  %v226 = vshrl.u32 %v225, 7
  %v227 = vsub.s32 0, %v226
  %v228 = vrot.slane %v223, %v227
  %v230 = vadd.f32 %v221, %v228
  %v231 = vadd.f32 %v222, %v228
  %232 = vst.msk [vmem:[%s7] sm:$0xff] %vm53, %v230
  %233 = vst.msk [vmem:[%s7 + $0x8] sm:$0xff] %vm53, %v231
  // Predicated region
  $region30: #{transformer_forward.17} parent=0 // pred_check
    _
  $region31: #{transformer_forward.17} parent=0 // pred_check_branch
    %235 = sbr.rel (0) target = $region33
  $region32: #{transformer_forward.17} parent=0 // pred_region
    _
  $region33: #{transformer_forward.17} parent=0 // pred_fallthru
    _
  // Predicated region
  $region34: #{transformer_forward.17} parent=0 // pred_check
    _
  $region35: #{transformer_forward.17} parent=0 // pred_check_branch
    %237 = sbr.rel (0) target = $region37
  $region36: #{transformer_forward.17} parent=0 // pred_region
    _
  $region37: #{transformer_forward.17} parent=0 // pred_fallthru
    _

// kernel: transformer_forward.14
$region0: #{transformer_forward.14}
  #allocation0 [shape = 'u32[]', space=smem, size = 0x4, offset = 0x4, fixed_abs, tag = 'smem constant byte address 0x4 - core index']
  #allocation1 [shape = 'u32[144,128]{1,0:T(1,128)}', space=vmem, size = 0x12000, scoped, tag = 'internal scratch']
  %s0 = inlined_call_operand.vmem [shape: f32[2,8,4], index: 0, kind: input, shape index: {}]
  %s1 = inlined_call_operand.vmem [shape: bf16[4,32], index: 1, kind: input, shape index: {}]
  %s2 = inlined_call_operand.vmem [shape: f32[1,32], index: 2, kind: input, shape index: {}]
  %s3 = inlined_call_operand.vmem [shape: f32[1,8,32], index: 3, kind: input, shape index: {}]
  %s4 = inlined_call_operand.vmem [shape: f32[2,8,32], index: 4, kind: output, shape index: {}]
  %s5 = sld [smem:[#allocation0]]
  $region49: #{transformer_forward.14} parent=0
    _
  %s7 = ssub.s32 1, %s5
  %s8 = scalar_select 0, %s7, %s5
  loop: start=0, step=1, limit=4
  $region2: #{transformer_forward.14} parent=0 // loop_pre_header
    _
  $region3: #{transformer_forward.14} parent=0 // loop_header
    %s10 = sphi 0, %s14
    %p11 = scmp.ge.s32.totalorder %s10, 4
    %s20 = sphi 0, %s22
    %s23 = sphi 0, %s20
    %s24 = sphi 0, %s23
    %s40 = sphi 0, %s24
    %s44 = sphi 0, %s44
    %s46 = sphi 0, %s44
    %s47 = sphi 0, %s46
    %s61 = sphi 0, %s47
    %s65 = sphi 0, %s65
    %s67 = sphi 0, %s65
    %s68 = sphi 0, %s67
    %s82 = sphi 0, %s68
    %s86 = sphi 0, %s86
    %s88 = sphi 0, %s86
    %s89 = sphi 0, %s88
    %s103 = sphi 0, %s89
    %s109 = sphi 0, %s111
    %s112 = sphi 0, %s109
    %s113 = sphi 0, %s112
    %s129 = sphi 0, %s113
  $region4: #{transformer_forward.14} parent=0 // loop_header_branch
    %13 = sbr.rel (%p11) target = $region8
  $region5: #{transformer_forward.14} parent=0 // loop_body
    %s15 = ssub.s32 %s10, 1
    %s16 = ssub.s32 %s10, 2
    %s17 = sadd.s32 %s10, 1
    %s18 = ssub.s32 %s10, %s17
    %p19 = scmp.eq.s32.totalorder %s18, 0
    %s21 = sadd.s32 %s20, 1
    %s22 = scalar_select %p19, %s20, %s21
    %p25 = pneg %p19
    %p26 = scmp.eq.s32.totalorder %s10, 1
    %p27 = por %p25, %p26
    %p28 = scmp.ne.s32.totalorder %s20, %s23
    %p29 = scmp.eq.s32.totalorder %s10, 0
    %p30 = por %p28, %p29
    %p31 = scmp.ne.s32.totalorder %s20, %s23
    %p32 = scmp.eq.s32.totalorder %s15, 1
    %p33 = por %p31, %p32
    %p34 = scmp.ne.s32.totalorder %s23, %s24
    %p35 = scmp.eq.s32.totalorder %s15, 0
    %p36 = por %p34, %p35
    %p37 = scmp.ne.s32.totalorder %s23, %s24
    %p38 = scmp.eq.s32.totalorder %s16, 1
    %p39 = por %p37, %p38
    %p41 = scmp.ne.s32.totalorder %s24, %s40
    %p42 = scmp.eq.s32.totalorder %s16, 0
    %p43 = por %p41, %p42
    %s45 = sadd.s32 %s44, 1
    %p48 = scmp.eq.s32.totalorder %s10, 1
    %p49 = scmp.ne.s32.totalorder %s44, %s46
    %p50 = scmp.eq.s32.totalorder %s10, 0
    %p51 = por %p49, %p50
    %p52 = scmp.ne.s32.totalorder %s44, %s46
    %p53 = scmp.eq.s32.totalorder %s15, 1
    %p54 = por %p52, %p53
    %p55 = scmp.ne.s32.totalorder %s46, %s47
    %p56 = scmp.eq.s32.totalorder %s15, 0
    %p57 = por %p55, %p56
    %p58 = scmp.ne.s32.totalorder %s46, %s47
    %p59 = scmp.eq.s32.totalorder %s16, 1
    %p60 = por %p58, %p59
    %p62 = scmp.ne.s32.totalorder %s47, %s61
    %p63 = scmp.eq.s32.totalorder %s16, 0
    %p64 = por %p62, %p63
    %s66 = sadd.s32 %s65, 1
    %p69 = scmp.eq.s32.totalorder %s10, 1
    %p70 = scmp.ne.s32.totalorder %s65, %s67
    %p71 = scmp.eq.s32.totalorder %s10, 0
    %p72 = por %p70, %p71
    %p73 = scmp.ne.s32.totalorder %s65, %s67
    %p74 = scmp.eq.s32.totalorder %s15, 1
    %p75 = por %p73, %p74
    %p76 = scmp.ne.s32.totalorder %s67, %s68
    %p77 = scmp.eq.s32.totalorder %s15, 0
    %p78 = por %p76, %p77
    %p79 = scmp.ne.s32.totalorder %s67, %s68
    %p80 = scmp.eq.s32.totalorder %s16, 1
    %p81 = por %p79, %p80
    %p83 = scmp.ne.s32.totalorder %s68, %s82
    %p84 = scmp.eq.s32.totalorder %s16, 0
    %p85 = por %p83, %p84
    %s87 = sadd.s32 %s86, 1
    %p90 = scmp.eq.s32.totalorder %s10, 1
    %p91 = scmp.ne.s32.totalorder %s86, %s88
    %p92 = scmp.eq.s32.totalorder %s10, 0
    %p93 = por %p91, %p92
    %p94 = scmp.ne.s32.totalorder %s86, %s88
    %p95 = scmp.eq.s32.totalorder %s15, 1
    %p96 = por %p94, %p95
    %p97 = scmp.ne.s32.totalorder %s88, %s89
    %p98 = scmp.eq.s32.totalorder %s15, 0
    %p99 = por %p97, %p98
    %p100 = scmp.ne.s32.totalorder %s88, %s89
    %p101 = scmp.eq.s32.totalorder %s16, 1
    %p102 = por %p100, %p101
    %p104 = scmp.ne.s32.totalorder %s89, %s103
    %p105 = scmp.eq.s32.totalorder %s16, 0
    %p106 = por %p104, %p105
    %s107 = ssub.s32 %s10, %s17
    %p108 = scmp.eq.s32.totalorder %s107, 0
    %s110 = sadd.s32 %s109, 1
    %s111 = scalar_select %p108, %s109, %s110
    %p114 = pneg %p108
    %p115 = scmp.eq.s32.totalorder %s10, 1
    %p116 = por %p114, %p115
    %p117 = scmp.ne.s32.totalorder %s109, %s112
    %p118 = scmp.eq.s32.totalorder %s10, 0
    %p119 = por %p117, %p118
    %p120 = scmp.ne.s32.totalorder %s109, %s112
    %p121 = scmp.eq.s32.totalorder %s15, 1
    %p122 = por %p120, %p121
    %p123 = scmp.ne.s32.totalorder %s112, %s113
    %p124 = scmp.eq.s32.totalorder %s15, 0
    %p125 = por %p123, %p124
    %p126 = scmp.ne.s32.totalorder %s112, %s113
    %p127 = scmp.eq.s32.totalorder %s16, 1
    %p128 = por %p126, %p127
    %p130 = scmp.ne.s32.totalorder %s113, %s129
    %p131 = scmp.eq.s32.totalorder %s16, 0
    %p132 = por %p130, %p131
    %p133 = scmp.le.s32.totalorder 1, %s10
    %p134 = scmp.lt.s32.totalorder %s10, 3
    %p135 = pnand %p133, %p134
    %p136 = pneg %p135
    // Predicated region
    $region9: #{transformer_forward.14} parent=5 // pred_check
      _
    $region10: #{transformer_forward.14} parent=5 // pred_check_branch
      %138 = sbr.rel (%p135) target = $region12
    $region11: #{transformer_forward.14} parent=5 // pred_region
      %s139 = ssub.s32 %s10, 1
      // Predicated region
      $region13: #{transformer_forward.14} parent=11 // pred_check
        %p140 = pneg %p57
      $region14: #{transformer_forward.14} parent=11 // pred_check_branch
        %142 = sbr.rel (%p140) target = $region16
      $region15: #{transformer_forward.14} parent=11 // pred_region
        _
      $region16: #{transformer_forward.14} parent=11 // pred_fallthru
        _
      // Predicated region
      $region17: #{transformer_forward.14} parent=11 // pred_check
        %p143 = pneg %p78
      $region18: #{transformer_forward.14} parent=11 // pred_check_branch
        %145 = sbr.rel (%p143) target = $region20
      $region19: #{transformer_forward.14} parent=11 // pred_region
        _
      $region20: #{transformer_forward.14} parent=11 // pred_fallthru
        _
      // Predicated region
      $region21: #{transformer_forward.14} parent=11 // pred_check
        %p146 = pneg %p99
      $region22: #{transformer_forward.14} parent=11 // pred_check_branch
        %148 = sbr.rel (%p146) target = $region24
      $region23: #{transformer_forward.14} parent=11 // pred_region
        _
      $region24: #{transformer_forward.14} parent=11 // pred_fallthru
        _
    $region12: #{transformer_forward.14} parent=5 // pred_fallthru
      _
    %p149 = scmp.lt.s32.totalorder %s10, 2
    // Predicated region
    $region25: #{transformer_forward.14} parent=5 // pred_check
      %p150 = pneg %p149
    $region26: #{transformer_forward.14} parent=5 // pred_check_branch
      %152 = sbr.rel (%p150) target = $region28
    $region27: #{transformer_forward.14} parent=5 // pred_region
      // Predicated region
      $region29: #{transformer_forward.14} parent=27 // pred_check
        %p153 = pneg %p30
      $region30: #{transformer_forward.14} parent=27 // pred_check_branch
        %155 = sbr.rel (%p153) target = $region32
      $region31: #{transformer_forward.14} parent=27 // pred_region
        %p156 = scmp.lt.s32.totalorder %s10, 1
        %s157 = scalar_select %p156, %s10, 1
        %s158 = smul.addr %s157, 8
        %s159 = scalar_lea.vmem %s0, %s158
      $region32: #{transformer_forward.14} parent=27 // pred_fallthru
        _
    $region28: #{transformer_forward.14} parent=5 // pred_fallthru
      _
    %p160 = scmp.le.s32.totalorder 1, %s10
    %p161 = scmp.lt.s32.totalorder %s10, 3
    %p162 = pnand %p160, %p161
    %p163 = pneg %p162
    // Predicated region
    $region33: #{transformer_forward.14} parent=5 // pred_check
      _
    $region34: #{transformer_forward.14} parent=5 // pred_check_branch
      %165 = sbr.rel (%p162) target = $region36
    $region35: #{transformer_forward.14} parent=5 // pred_region
      %s166 = ssub.s32 %s10, 1
      %p167 = scmp.lt.s32.totalorder %s15, 1
      %s168 = scalar_select %p167, %s15, 1
      %s169 = smul.addr %s168, 8
      %s170 = scalar_lea.vmem %s0, %s169
      %p171 = pneg %p36
      %p172 = pneg %p33
      %p173 = pneg %p57
      %p174 = pneg %p54
      %p175 = pneg %p78
      %p176 = pneg %p75
      %p177 = pneg %p99
      %p178 = pneg %p96
      %p179 = pneg %p125
      %p180 = pneg %p122
      %p181 = scmp.lt.s32.totalorder %s15, 1
      %s182 = scalar_select %p181, %s15, 1
      %s183 = smul.addr %s182, 8
      %s184 = scalar_lea.vmem %s4, %s183
      %p185 = scmp.lt.s32.totalorder %s15, 1
      %s186 = scalar_select %p185, %s15, 1
      %s187 = smul.addr %s186, 8
      %s188 = scalar_lea.vmem %s0, %s187
      %p189 = scmp.lt.s32.totalorder %s15, 1
      %s190 = scalar_select %p189, %s15, 1
      %s191 = smul.addr %s190, 8
      %s192 = scalar_lea.vmem %s4, %s191
      %v194 = vld [vmem:[%s188] sm:$0xff]
      %v195 = vpack.c.bf16 %v194, %v194
      %v196 = vld [vmem:[%s1] sm:$0x3]
      %v197 = vld [vmem:[%s2] sm:$0x1]
      %v199 = vlaneseq
      %v200 = vshrl.u32 %v199, 7
      %v201 = vsub.s32 0, %v200
      %v202 = vrot.slane %v197, %v201
      %vm204 = vcmask 31744
      %v206 = vsel %vm204, %v195, 0
      %vm208 = vcmask 1041408
      %v210 = vsel %vm208, %v196, 0
      %212 = vmatprep.subr.bf16.mxu0 0
      %213 = vmatpush1.bf16.msra.mxu0 0
      %214 = vmatprep.subr.bf16.mxu0 0
      %215 = vmatpush1.bf16.msra.mxu0 0
      %216 = vmatprep.subr.bf16.mxu0 0
      %217 = vmatpush1.bf16.msra.mxu0 0
      %218 = vmatprep.subr.bf16.mxu0 0
      %219 = vmatpush1.bf16.msra.mxu0 0
      %220 = vmatprep.subr.bf16.mxu0 0
      %221 = vmatpush1.bf16.msra.mxu0 0
      %222 = vmatprep.subr.bf16.mxu0 0
      %223 = vmatpush1.bf16.msra.mxu0 0
      %224 = vmatprep.subr.bf16.mxu0 0
      %225 = vmatpush1.bf16.msra.mxu0 0
      %226 = vmatprep.subr.bf16.mxu0 0
      %227 = vmatpush1.bf16.msra.mxu0 %v210
      %228 = vmatprep.subr.bf16.mxu0 0
      %229 = vmatpush2.bf16.msra.mxu0 0
      %230 = vmatprep.subr.bf16.mxu0 0
      %231 = vmatpush2.bf16.msra.mxu0 0
      %232 = vmatprep.subr.bf16.mxu0 0
      %233 = vmatpush2.bf16.msra.mxu0 0
      %234 = vmatprep.subr.bf16.mxu0 0
      %235 = vmatpush2.bf16.msra.mxu0 0
      %236 = vmatprep.subr.bf16.mxu0 0
      %237 = vmatpush2.bf16.msra.mxu0 0
      %238 = vmatprep.subr.bf16.mxu0 0
      %239 = vmatpush2.bf16.msra.mxu0 0
      %240 = vmatprep.subr.bf16.mxu0 0
      %241 = vmatpush2.bf16.msra.mxu0 0
      %242 = vmatprep.subr.bf16.mxu0 0
      %243 = vmatpush2.bf16.msra.mxu0 0
      %244 = vmatprep.mubr.bf16.mxu0 0
      %245 = vmatmul.mubr.bf16.gmra.mxu0 %v206
      %v246 = vpop.f32.mrf.mxu0
      %v247 = vadd.f32 %v202, %v246
      %v248 = vpop.f32.mrf.mxu0
      %v249 = vpop.f32.mrf.mxu0
      %v250 = vpop.f32.mrf.mxu0
      %251 = vdwg.mxu0
      %v252 = vmul.f32 %v247, 5.656854
      %v253 = vld [vmem:[%s3] sm:$0xff]
      %v254 = vadd.f32 %v252, %v253
      %vm255 = vcmask 261120
      %256 = vst.msk [vmem:[%s192] sm:$0xff] %vm255, %v254
      %p257 = scmp.lt.s32.totalorder %s15, 1
      %s258 = scalar_select %p257, %s15, 1
      %s259 = smul.addr %s258, 8
      %s260 = scalar_lea.vmem %s4, %s259
      // Predicated region
      $region37: #{transformer_forward.14} parent=35 // pred_check
        %p261 = pneg %p122
      $region38: #{transformer_forward.14} parent=35 // pred_check_branch
        %263 = sbr.rel (%p261) target = $region40
      $region39: #{transformer_forward.14} parent=35 // pred_region
        _
      $region40: #{transformer_forward.14} parent=35 // pred_fallthru
        _
    $region36: #{transformer_forward.14} parent=5 // pred_fallthru
      _
    %p264 = scmp.le.s32.totalorder 2, %s10
    // Predicated region
    $region41: #{transformer_forward.14} parent=5 // pred_check
      %p265 = pneg %p264
    $region42: #{transformer_forward.14} parent=5 // pred_check_branch
      %267 = sbr.rel (%p265) target = $region44
    $region43: #{transformer_forward.14} parent=5 // pred_region
      %s268 = ssub.s32 %s10, 2
      // Predicated region
      $region45: #{transformer_forward.14} parent=43 // pred_check
        %p269 = pneg %p128
      $region46: #{transformer_forward.14} parent=43 // pred_check_branch
        %271 = sbr.rel (%p269) target = $region48
      $region47: #{transformer_forward.14} parent=43 // pred_region
        %p272 = scmp.lt.s32.totalorder %s16, 1
        %s273 = scalar_select %p272, %s16, 1
        %s274 = smul.addr %s273, 8
        %s275 = scalar_lea.vmem %s4, %s274
      $region48: #{transformer_forward.14} parent=43 // pred_fallthru
        _
    $region44: #{transformer_forward.14} parent=5 // pred_fallthru
      _
  $region6: #{transformer_forward.14} parent=0 // loop_footer
    %s14 = sadd.s32 1, %s10
  $region7: #{transformer_forward.14} parent=0 // loop_footer_branch
    %9 = sbr.rel target = $region3
  $region8: #{transformer_forward.14} parent=0 // loop_exit
    _

// kernel: transformer_forward.16
$region0: #{transformer_forward.16}
  #allocation0 [shape = 'u32[]', space=smem, size = 0x4, offset = 0x4, fixed_abs, tag = 'smem constant byte address 0x4 - core index']
  #allocation1 [shape = 'u32[144,128]{1,0:T(1,128)}', space=vmem, size = 0x12000, scoped, tag = 'internal scratch']
  %s0 = inlined_call_operand.vmem [shape: f32[2,8,32], index: 0, kind: input, shape index: {}, may-alias: {0,1}]
  %s1 = inlined_call_operand.vmem [shape: f32[2,8,32], index: 1, kind: input, shape index: {}, may-alias: {0,1}]
  %s2 = inlined_call_operand.vmem [shape: bf16[32,32], index: 2, kind: input, shape index: {}]
  %s3 = inlined_call_operand.vmem [shape: f32[1,32], index: 3, kind: input, shape index: {}]
  %s4 = inlined_call_operand.vmem [shape: bf16[32,64], index: 4, kind: input, shape index: {}]
  %s5 = inlined_call_operand.vmem [shape: f32[1,64], index: 5, kind: input, shape index: {}]
  %s6 = inlined_call_operand.vmem [shape: bf16[32,32], index: 6, kind: input, shape index: {}]
  %s7 = inlined_call_operand.vmem [shape: f32[1,32], index: 7, kind: input, shape index: {}]
  %s8 = inlined_call_operand.vmem [shape: f32[1,32], index: 8, kind: input, shape index: {}]
  %s9 = inlined_call_operand.vmem [shape: f32[1,32], index: 9, kind: input, shape index: {}]
  %s10 = inlined_call_operand.vmem [shape: f32[2,8,32], index: 10, kind: output, shape index: {}]
  %s11 = sld [smem:[#allocation0]]
  $region73: #{transformer_forward.16} parent=0
    _
  %s13 = ssub.s32 1, %s11
  %s14 = scalar_select 0, %s13, %s11
  loop: start=0, step=1, limit=4
  $region2: #{transformer_forward.16} parent=0 // loop_pre_header
    _
  $region3: #{transformer_forward.16} parent=0 // loop_header
    %s16 = sphi 0, %s20
    %p17 = scmp.ge.s32.totalorder %s16, 4
    %s26 = sphi 0, %s28
    %s29 = sphi 0, %s26
    %s30 = sphi 0, %s29
    %s46 = sphi 0, %s30
    %s52 = sphi 0, %s54
    %s55 = sphi 0, %s52
    %s56 = sphi 0, %s55
    %s72 = sphi 0, %s56
    %s76 = sphi 0, %s76
    %s78 = sphi 0, %s76
    %s79 = sphi 0, %s78
    %s93 = sphi 0, %s79
    %s97 = sphi 0, %s97
    %s99 = sphi 0, %s97
    %s100 = sphi 0, %s99
    %s114 = sphi 0, %s100
    %s118 = sphi 0, %s118
    %s120 = sphi 0, %s118
    %s121 = sphi 0, %s120
    %s135 = sphi 0, %s121
    %s139 = sphi 0, %s139
    %s141 = sphi 0, %s139
    %s142 = sphi 0, %s141
    %s156 = sphi 0, %s142
    %s160 = sphi 0, %s160
    %s162 = sphi 0, %s160
    %s163 = sphi 0, %s162
    %s177 = sphi 0, %s163
    %s181 = sphi 0, %s181
    %s183 = sphi 0, %s181
    %s184 = sphi 0, %s183
    %s198 = sphi 0, %s184
    %s202 = sphi 0, %s202
    %s204 = sphi 0, %s202
    %s205 = sphi 0, %s204
    %s219 = sphi 0, %s205
    %s223 = sphi 0, %s223
    %s225 = sphi 0, %s223
    %s226 = sphi 0, %s225
    %s240 = sphi 0, %s226
    %s246 = sphi 0, %s248
    %s249 = sphi 0, %s246
    %s250 = sphi 0, %s249
    %s266 = sphi 0, %s250
  $region4: #{transformer_forward.16} parent=0 // loop_header_branch
    %19 = sbr.rel (%p17) target = $region8
  $region5: #{transformer_forward.16} parent=0 // loop_body
    %s21 = ssub.s32 %s16, 1
    %s22 = ssub.s32 %s16, 2
    %s23 = sadd.s32 %s16, 1
    %s24 = ssub.s32 %s16, %s23
    %p25 = scmp.eq.s32.totalorder %s24, 0
    %s27 = sadd.s32 %s26, 1
    %s28 = scalar_select %p25, %s26, %s27
    %p31 = pneg %p25
    %p32 = scmp.eq.s32.totalorder %s16, 1
    %p33 = por %p31, %p32
    %p34 = scmp.ne.s32.totalorder %s26, %s29
    %p35 = scmp.eq.s32.totalorder %s16, 0
    %p36 = por %p34, %p35
    %p37 = scmp.ne.s32.totalorder %s26, %s29
    %p38 = scmp.eq.s32.totalorder %s21, 1
    %p39 = por %p37, %p38
    %p40 = scmp.ne.s32.totalorder %s29, %s30
    %p41 = scmp.eq.s32.totalorder %s21, 0
    %p42 = por %p40, %p41
    %p43 = scmp.ne.s32.totalorder %s29, %s30
    %p44 = scmp.eq.s32.totalorder %s22, 1
    %p45 = por %p43, %p44
    %p47 = scmp.ne.s32.totalorder %s30, %s46
    %p48 = scmp.eq.s32.totalorder %s22, 0
    %p49 = por %p47, %p48
    %s50 = ssub.s32 %s16, %s23
    %p51 = scmp.eq.s32.totalorder %s50, 0
    %s53 = sadd.s32 %s52, 1
    %s54 = scalar_select %p51, %s52, %s53
    %p57 = pneg %p51
    %p58 = scmp.eq.s32.totalorder %s16, 1
    %p59 = por %p57, %p58
    %p60 = scmp.ne.s32.totalorder %s52, %s55
    %p61 = scmp.eq.s32.totalorder %s16, 0
    %p62 = por %p60, %p61
    %p63 = scmp.ne.s32.totalorder %s52, %s55
    %p64 = scmp.eq.s32.totalorder %s21, 1
    %p65 = por %p63, %p64
    %p66 = scmp.ne.s32.totalorder %s55, %s56
    %p67 = scmp.eq.s32.totalorder %s21, 0
    %p68 = por %p66, %p67
    %p69 = scmp.ne.s32.totalorder %s55, %s56
    %p70 = scmp.eq.s32.totalorder %s22, 1
    %p71 = por %p69, %p70
    %p73 = scmp.ne.s32.totalorder %s56, %s72
    %p74 = scmp.eq.s32.totalorder %s22, 0
    %p75 = por %p73, %p74
    %s77 = sadd.s32 %s76, 1
    %p80 = scmp.eq.s32.totalorder %s16, 1
    %p81 = scmp.ne.s32.totalorder %s76, %s78
    %p82 = scmp.eq.s32.totalorder %s16, 0
    %p83 = por %p81, %p82
    %p84 = scmp.ne.s32.totalorder %s76, %s78
    %p85 = scmp.eq.s32.totalorder %s21, 1
    %p86 = por %p84, %p85
    %p87 = scmp.ne.s32.totalorder %s78, %s79
    %p88 = scmp.eq.s32.totalorder %s21, 0
    %p89 = por %p87, %p88
    %p90 = scmp.ne.s32.totalorder %s78, %s79
    %p91 = scmp.eq.s32.totalorder %s22, 1
    %p92 = por %p90, %p91
    %p94 = scmp.ne.s32.totalorder %s79, %s93
    %p95 = scmp.eq.s32.totalorder %s22, 0
    %p96 = por %p94, %p95
    %s98 = sadd.s32 %s97, 1
    %p101 = scmp.eq.s32.totalorder %s16, 1
    %p102 = scmp.ne.s32.totalorder %s97, %s99
    %p103 = scmp.eq.s32.totalorder %s16, 0
    %p104 = por %p102, %p103
    %p105 = scmp.ne.s32.totalorder %s97, %s99
    %p106 = scmp.eq.s32.totalorder %s21, 1
    %p107 = por %p105, %p106
    %p108 = scmp.ne.s32.totalorder %s99, %s100
    %p109 = scmp.eq.s32.totalorder %s21, 0
    %p110 = por %p108, %p109
    %p111 = scmp.ne.s32.totalorder %s99, %s100
    %p112 = scmp.eq.s32.totalorder %s22, 1
    %p113 = por %p111, %p112
    %p115 = scmp.ne.s32.totalorder %s100, %s114
    %p116 = scmp.eq.s32.totalorder %s22, 0
    %p117 = por %p115, %p116
    %s119 = sadd.s32 %s118, 1
    %p122 = scmp.eq.s32.totalorder %s16, 1
    %p123 = scmp.ne.s32.totalorder %s118, %s120
    %p124 = scmp.eq.s32.totalorder %s16, 0
    %p125 = por %p123, %p124
    %p126 = scmp.ne.s32.totalorder %s118, %s120
    %p127 = scmp.eq.s32.totalorder %s21, 1
    %p128 = por %p126, %p127
    %p129 = scmp.ne.s32.totalorder %s120, %s121
    %p130 = scmp.eq.s32.totalorder %s21, 0
    %p131 = por %p129, %p130
    %p132 = scmp.ne.s32.totalorder %s120, %s121
    %p133 = scmp.eq.s32.totalorder %s22, 1
    %p134 = por %p132, %p133
    %p136 = scmp.ne.s32.totalorder %s121, %s135
    %p137 = scmp.eq.s32.totalorder %s22, 0
    %p138 = por %p136, %p137
    %s140 = sadd.s32 %s139, 1
    %p143 = scmp.eq.s32.totalorder %s16, 1
    %p144 = scmp.ne.s32.totalorder %s139, %s141
    %p145 = scmp.eq.s32.totalorder %s16, 0
    %p146 = por %p144, %p145
    %p147 = scmp.ne.s32.totalorder %s139, %s141
    %p148 = scmp.eq.s32.totalorder %s21, 1
    %p149 = por %p147, %p148
    %p150 = scmp.ne.s32.totalorder %s141, %s142
    %p151 = scmp.eq.s32.totalorder %s21, 0
    %p152 = por %p150, %p151
    %p153 = scmp.ne.s32.totalorder %s141, %s142
    %p154 = scmp.eq.s32.totalorder %s22, 1
    %p155 = por %p153, %p154
    %p157 = scmp.ne.s32.totalorder %s142, %s156
    %p158 = scmp.eq.s32.totalorder %s22, 0
    %p159 = por %p157, %p158
    %s161 = sadd.s32 %s160, 1
    %p164 = scmp.eq.s32.totalorder %s16, 1
    %p165 = scmp.ne.s32.totalorder %s160, %s162
    %p166 = scmp.eq.s32.totalorder %s16, 0
    %p167 = por %p165, %p166
    %p168 = scmp.ne.s32.totalorder %s160, %s162
    %p169 = scmp.eq.s32.totalorder %s21, 1
    %p170 = por %p168, %p169
    %p171 = scmp.ne.s32.totalorder %s162, %s163
    %p172 = scmp.eq.s32.totalorder %s21, 0
    %p173 = por %p171, %p172
    %p174 = scmp.ne.s32.totalorder %s162, %s163
    %p175 = scmp.eq.s32.totalorder %s22, 1
    %p176 = por %p174, %p175
    %p178 = scmp.ne.s32.totalorder %s163, %s177
    %p179 = scmp.eq.s32.totalorder %s22, 0
    %p180 = por %p178, %p179
    %s182 = sadd.s32 %s181, 1
    %p185 = scmp.eq.s32.totalorder %s16, 1
    %p186 = scmp.ne.s32.totalorder %s181, %s183
    %p187 = scmp.eq.s32.totalorder %s16, 0
    %p188 = por %p186, %p187
    %p189 = scmp.ne.s32.totalorder %s181, %s183
    %p190 = scmp.eq.s32.totalorder %s21, 1
    %p191 = por %p189, %p190
    %p192 = scmp.ne.s32.totalorder %s183, %s184
    %p193 = scmp.eq.s32.totalorder %s21, 0
    %p194 = por %p192, %p193
    %p195 = scmp.ne.s32.totalorder %s183, %s184
    %p196 = scmp.eq.s32.totalorder %s22, 1
    %p197 = por %p195, %p196
    %p199 = scmp.ne.s32.totalorder %s184, %s198
    %p200 = scmp.eq.s32.totalorder %s22, 0
    %p201 = por %p199, %p200
    %s203 = sadd.s32 %s202, 1
    %p206 = scmp.eq.s32.totalorder %s16, 1
    %p207 = scmp.ne.s32.totalorder %s202, %s204
    %p208 = scmp.eq.s32.totalorder %s16, 0
    %p209 = por %p207, %p208
    %p210 = scmp.ne.s32.totalorder %s202, %s204
    %p211 = scmp.eq.s32.totalorder %s21, 1
    %p212 = por %p210, %p211
    %p213 = scmp.ne.s32.totalorder %s204, %s205
    %p214 = scmp.eq.s32.totalorder %s21, 0
    %p215 = por %p213, %p214
    %p216 = scmp.ne.s32.totalorder %s204, %s205
    %p217 = scmp.eq.s32.totalorder %s22, 1
    %p218 = por %p216, %p217
    %p220 = scmp.ne.s32.totalorder %s205, %s219
    %p221 = scmp.eq.s32.totalorder %s22, 0
    %p222 = por %p220, %p221
    %s224 = sadd.s32 %s223, 1
    %p227 = scmp.eq.s32.totalorder %s16, 1
    %p228 = scmp.ne.s32.totalorder %s223, %s225
    %p229 = scmp.eq.s32.totalorder %s16, 0
    %p230 = por %p228, %p229
    %p231 = scmp.ne.s32.totalorder %s223, %s225
    %p232 = scmp.eq.s32.totalorder %s21, 1
    %p233 = por %p231, %p232
    %p234 = scmp.ne.s32.totalorder %s225, %s226
    %p235 = scmp.eq.s32.totalorder %s21, 0
    %p236 = por %p234, %p235
    %p237 = scmp.ne.s32.totalorder %s225, %s226
    %p238 = scmp.eq.s32.totalorder %s22, 1
    %p239 = por %p237, %p238
    %p241 = scmp.ne.s32.totalorder %s226, %s240
    %p242 = scmp.eq.s32.totalorder %s22, 0
    %p243 = por %p241, %p242
    %s244 = ssub.s32 %s16, %s23
    %p245 = scmp.eq.s32.totalorder %s244, 0
    %s247 = sadd.s32 %s246, 1
    %s248 = scalar_select %p245, %s246, %s247
    %p251 = pneg %p245
    %p252 = scmp.eq.s32.totalorder %s16, 1
    %p253 = por %p251, %p252
    %p254 = scmp.ne.s32.totalorder %s246, %s249
    %p255 = scmp.eq.s32.totalorder %s16, 0
    %p256 = por %p254, %p255
    %p257 = scmp.ne.s32.totalorder %s246, %s249
    %p258 = scmp.eq.s32.totalorder %s21, 1
    %p259 = por %p257, %p258
    %p260 = scmp.ne.s32.totalorder %s249, %s250
    %p261 = scmp.eq.s32.totalorder %s21, 0
    %p262 = por %p260, %p261
    %p263 = scmp.ne.s32.totalorder %s249, %s250
    %p264 = scmp.eq.s32.totalorder %s22, 1
    %p265 = por %p263, %p264
    %p267 = scmp.ne.s32.totalorder %s250, %s266
    %p268 = scmp.eq.s32.totalorder %s22, 0
    %p269 = por %p267, %p268
    %p270 = scmp.le.s32.totalorder 1, %s16
    %p271 = scmp.lt.s32.totalorder %s16, 3
    %p272 = pnand %p270, %p271
    %p273 = pneg %p272
    // Predicated region
    $region9: #{transformer_forward.16} parent=5 // pred_check
      _
    $region10: #{transformer_forward.16} parent=5 // pred_check_branch
      %275 = sbr.rel (%p272) target = $region12
    $region11: #{transformer_forward.16} parent=5 // pred_region
      %s276 = ssub.s32 %s16, 1
      // Predicated region
      $region13: #{transformer_forward.16} parent=11 // pred_check
        %p277 = pneg %p89
      $region14: #{transformer_forward.16} parent=11 // pred_check_branch
        %279 = sbr.rel (%p277) target = $region16
      $region15: #{transformer_forward.16} parent=11 // pred_region
        _
      $region16: #{transformer_forward.16} parent=11 // pred_fallthru
        _
      // Predicated region
      $region17: #{transformer_forward.16} parent=11 // pred_check
        %p280 = pneg %p110
      $region18: #{transformer_forward.16} parent=11 // pred_check_branch
        %282 = sbr.rel (%p280) target = $region20
      $region19: #{transformer_forward.16} parent=11 // pred_region
        _
      $region20: #{transformer_forward.16} parent=11 // pred_fallthru
        _
      // Predicated region
      $region21: #{transformer_forward.16} parent=11 // pred_check
        %p283 = pneg %p131
      $region22: #{transformer_forward.16} parent=11 // pred_check_branch
        %285 = sbr.rel (%p283) target = $region24
      $region23: #{transformer_forward.16} parent=11 // pred_region
        _
      $region24: #{transformer_forward.16} parent=11 // pred_fallthru
        _
      // Predicated region
      $region25: #{transformer_forward.16} parent=11 // pred_check
        %p286 = pneg %p152
      $region26: #{transformer_forward.16} parent=11 // pred_check_branch
        %288 = sbr.rel (%p286) target = $region28
      $region27: #{transformer_forward.16} parent=11 // pred_region
        _
      $region28: #{transformer_forward.16} parent=11 // pred_fallthru
        _
      // Predicated region
      $region29: #{transformer_forward.16} parent=11 // pred_check
        %p289 = pneg %p173
      $region30: #{transformer_forward.16} parent=11 // pred_check_branch
        %291 = sbr.rel (%p289) target = $region32
      $region31: #{transformer_forward.16} parent=11 // pred_region
        _
      $region32: #{transformer_forward.16} parent=11 // pred_fallthru
        _
      // Predicated region
      $region33: #{transformer_forward.16} parent=11 // pred_check
        %p292 = pneg %p194
      $region34: #{transformer_forward.16} parent=11 // pred_check_branch
        %294 = sbr.rel (%p292) target = $region36
      $region35: #{transformer_forward.16} parent=11 // pred_region
        _
      $region36: #{transformer_forward.16} parent=11 // pred_fallthru
        _
      // Predicated region
      $region37: #{transformer_forward.16} parent=11 // pred_check
        %p295 = pneg %p215
      $region38: #{transformer_forward.16} parent=11 // pred_check_branch
        %297 = sbr.rel (%p295) target = $region40
      $region39: #{transformer_forward.16} parent=11 // pred_region
        _
      $region40: #{transformer_forward.16} parent=11 // pred_fallthru
        _
      // Predicated region
      $region41: #{transformer_forward.16} parent=11 // pred_check
        %p298 = pneg %p236
      $region42: #{transformer_forward.16} parent=11 // pred_check_branch
        %300 = sbr.rel (%p298) target = $region44
      $region43: #{transformer_forward.16} parent=11 // pred_region
        _
      $region44: #{transformer_forward.16} parent=11 // pred_fallthru
        _
    $region12: #{transformer_forward.16} parent=5 // pred_fallthru
      _
    %p301 = scmp.lt.s32.totalorder %s16, 2
    // Predicated region
    $region45: #{transformer_forward.16} parent=5 // pred_check
      %p302 = pneg %p301
    $region46: #{transformer_forward.16} parent=5 // pred_check_branch
      %304 = sbr.rel (%p302) target = $region48
    $region47: #{transformer_forward.16} parent=5 // pred_region
      // Predicated region
      $region49: #{transformer_forward.16} parent=47 // pred_check
        %p305 = pneg %p36
      $region50: #{transformer_forward.16} parent=47 // pred_check_branch
        %307 = sbr.rel (%p305) target = $region52
      $region51: #{transformer_forward.16} parent=47 // pred_region
        %p308 = scmp.lt.s32.totalorder %s16, 1
        %s309 = scalar_select %p308, %s16, 1
        %s310 = smul.addr %s309, 8
        %s311 = scalar_lea.vmem %s0, %s310
      $region52: #{transformer_forward.16} parent=47 // pred_fallthru
        _
      // Predicated region
      $region53: #{transformer_forward.16} parent=47 // pred_check
        %p312 = pneg %p62
      $region54: #{transformer_forward.16} parent=47 // pred_check_branch
        %314 = sbr.rel (%p312) target = $region56
      $region55: #{transformer_forward.16} parent=47 // pred_region
        %p315 = scmp.lt.s32.totalorder %s16, 1
        %s316 = scalar_select %p315, %s16, 1
        %s317 = smul.addr %s316, 8
        %s318 = scalar_lea.vmem %s1, %s317
      $region56: #{transformer_forward.16} parent=47 // pred_fallthru
        _
    $region48: #{transformer_forward.16} parent=5 // pred_fallthru
      _
    %p319 = scmp.le.s32.totalorder 1, %s16
    %p320 = scmp.lt.s32.totalorder %s16, 3
    %p321 = pnand %p319, %p320
    %p322 = pneg %p321
    // Predicated region
    $region57: #{transformer_forward.16} parent=5 // pred_check
      _
    $region58: #{transformer_forward.16} parent=5 // pred_check_branch
      %324 = sbr.rel (%p321) target = $region60
    $region59: #{transformer_forward.16} parent=5 // pred_region
      %s325 = ssub.s32 %s16, 1
      %p326 = scmp.lt.s32.totalorder %s21, 1
      %s327 = scalar_select %p326, %s21, 1
      %s328 = smul.addr %s327, 8
      %s329 = scalar_lea.vmem %s0, %s328
      %p330 = pneg %p42
      %p331 = pneg %p39
      %p332 = scmp.lt.s32.totalorder %s21, 1
      %s333 = scalar_select %p332, %s21, 1
      %s334 = smul.addr %s333, 8
      %s335 = scalar_lea.vmem %s1, %s334
      %p336 = pneg %p68
      %p337 = pneg %p65
      %p338 = pneg %p89
      %p339 = pneg %p86
      %p340 = pneg %p110
      %p341 = pneg %p107
      %p342 = pneg %p131
      %p343 = pneg %p128
      %p344 = pneg %p152
      %p345 = pneg %p149
      %p346 = pneg %p173
      %p347 = pneg %p170
      %p348 = pneg %p194
      %p349 = pneg %p191
      %p350 = pneg %p215
      %p351 = pneg %p212
      %p352 = pneg %p236
      %p353 = pneg %p233
      %p354 = pneg %p262
      %p355 = pneg %p259
      %p356 = scmp.lt.s32.totalorder %s21, 1
      %s357 = scalar_select %p356, %s21, 1
      %s358 = smul.addr %s357, 8
      %s359 = scalar_lea.vmem %s10, %s358
      %p360 = scmp.lt.s32.totalorder %s21, 1
      %s361 = scalar_select %p360, %s21, 1
      %s362 = smul.addr %s361, 8
      %s363 = scalar_lea.vmem %s0, %s362
      %p364 = scmp.lt.s32.totalorder %s21, 1
      %s365 = scalar_select %p364, %s21, 1
      %s366 = smul.addr %s365, 8
      %s367 = scalar_lea.vmem %s1, %s366
      %p368 = scmp.lt.s32.totalorder %s21, 1
      %s369 = scalar_select %p368, %s21, 1
      %s370 = smul.addr %s369, 8
      %s371 = scalar_lea.vmem %s10, %s370
      %v373 = vld [vmem:[%s363] sm:$0xff]
      %v374 = vld [vmem:[%s367] sm:$0xff]
      %v375 = vpack.c.bf16 %v373, %v373
      %v376 = vld [vmem:[%s2] sm:$0xf]
      %v377 = vld [vmem:[%s2 + $0x4] sm:$0xf]
      %v378 = vld [vmem:[%s2 + $0x8] sm:$0xf]
      %v379 = vld [vmem:[%s2 + $0xc] sm:$0xf]
      %v380 = vld [vmem:[%s3] sm:$0x1]
      %v382 = vlaneseq
      %v383 = vshrl.u32 %v382, 7
      %v384 = vsub.s32 0, %v383
      %v385 = vrot.slane %v380, %v384
      %v391 = vunpack.c.l.b16 %v376
      %v392 = vunpack.c.l.b16 %v377
      %v393 = vunpack.c.l.b16 %v378
      %v394 = vunpack.c.l.b16 %v379
      %v395 = vpack.c.b16 %v392, %v391
      %v396 = vpack.c.b16 %v394, %v393
      %vm399 = vcmask 261120
      %v401 = vsel %vm399, %v375, 0
      %403 = vmatprep.subr.bf16.mxu0 0
      %404 = vmatpush1.bf16.msra.mxu0 0
      %405 = vmatprep.subr.bf16.mxu0 0
      %406 = vmatpush1.bf16.msra.mxu0 0
      %407 = vmatprep.subr.bf16.mxu0 0
      %408 = vmatpush1.bf16.msra.mxu0 0
      %409 = vmatprep.subr.bf16.mxu0 0
      %410 = vmatpush1.bf16.msra.mxu0 0
      %411 = vmatprep.subr.bf16.mxu0 0
      %412 = vmatpush1.bf16.msra.mxu0 0
      %413 = vmatprep.subr.bf16.mxu0 0
      %414 = vmatpush1.bf16.msra.mxu0 0
      %415 = vmatprep.subr.bf16.mxu0 0
      %416 = vmatpush1.bf16.msra.mxu0 %v396
      %417 = vmatprep.subr.bf16.mxu0 0
      %418 = vmatpush1.bf16.msra.mxu0 %v395
      %419 = vmatprep.subr.bf16.mxu0 0
      %420 = vmatpush2.bf16.msra.mxu0 0
      %421 = vmatprep.subr.bf16.mxu0 0
      %422 = vmatpush2.bf16.msra.mxu0 0
      %423 = vmatprep.subr.bf16.mxu0 0
      %424 = vmatpush2.bf16.msra.mxu0 0
      %425 = vmatprep.subr.bf16.mxu0 0
      %426 = vmatpush2.bf16.msra.mxu0 0
      %427 = vmatprep.subr.bf16.mxu0 0
      %428 = vmatpush2.bf16.msra.mxu0 0
      %429 = vmatprep.subr.bf16.mxu0 0
      %430 = vmatpush2.bf16.msra.mxu0 0
      %431 = vmatprep.subr.bf16.mxu0 0
      %432 = vmatpush2.bf16.msra.mxu0 0
      %433 = vmatprep.subr.bf16.mxu0 0
      %434 = vmatpush2.bf16.msra.mxu0 0
      %435 = vmatprep.mubr.bf16.mxu0 0
      %436 = vmatmul.mubr.bf16.gmra.mxu0 %v401
      %v437 = vpop.f32.mrf.mxu0
      %v438 = vadd.f32 %v385, %v437
      %v439 = vpop.f32.mrf.mxu0
      %v440 = vpop.f32.mrf.mxu0
      %v441 = vpop.f32.mrf.mxu0
      %442 = vdwg.mxu0
      %v443 = vpack.c.bf16 %v374, %v374
      %v444 = vld [vmem:[%s4] sm:$0xf]
      %v445 = vld [vmem:[%s4 + $0x4] sm:$0xf]
      %v446 = vld [vmem:[%s4 + $0x8] sm:$0xf]
      %v447 = vld [vmem:[%s4 + $0xc] sm:$0xf]
      %v448 = vld [vmem:[%s5] sm:$0x1]
      %v450 = vlaneseq
      %v451 = vshrl.u32 %v450, 7
      %v452 = vsub.s32 0, %v451
      %v453 = vrot.slane %v448, %v452
      %v459 = vunpack.c.l.b16 %v444
      %v460 = vunpack.c.l.b16 %v445
      %v461 = vunpack.c.l.b16 %v446
      %v462 = vunpack.c.l.b16 %v447
      %v463 = vpack.c.b16 %v460, %v459
      %v464 = vpack.c.b16 %v462, %v461
      %v468 = vsel %vm399, %v443, 0
      %470 = vmatprep.subr.bf16.mxu0 0
      %471 = vmatpush1.bf16.msra.mxu0 0
      %472 = vmatprep.subr.bf16.mxu0 0
      %473 = vmatpush1.bf16.msra.mxu0 0
      %474 = vmatprep.subr.bf16.mxu0 0
      %475 = vmatpush1.bf16.msra.mxu0 0
      %476 = vmatprep.subr.bf16.mxu0 0
      %477 = vmatpush1.bf16.msra.mxu0 0
      %478 = vmatprep.subr.bf16.mxu0 0
      %479 = vmatpush1.bf16.msra.mxu0 0
      %480 = vmatprep.subr.bf16.mxu0 0
      %481 = vmatpush1.bf16.msra.mxu0 0
      %482 = vmatprep.subr.bf16.mxu0 0
      %483 = vmatpush1.bf16.msra.mxu0 %v464
      %484 = vmatprep.subr.bf16.mxu0 0
      %485 = vmatpush1.bf16.msra.mxu0 %v463
      %486 = vmatprep.subr.bf16.mxu0 0
      %487 = vmatpush2.bf16.msra.mxu0 0
      %488 = vmatprep.subr.bf16.mxu0 0
      %489 = vmatpush2.bf16.msra.mxu0 0
      %490 = vmatprep.subr.bf16.mxu0 0
      %491 = vmatpush2.bf16.msra.mxu0 0
      %492 = vmatprep.subr.bf16.mxu0 0
      %493 = vmatpush2.bf16.msra.mxu0 0
      %494 = vmatprep.subr.bf16.mxu0 0
      %495 = vmatpush2.bf16.msra.mxu0 0
      %496 = vmatprep.subr.bf16.mxu0 0
      %497 = vmatpush2.bf16.msra.mxu0 0
      %498 = vmatprep.subr.bf16.mxu0 0
      %499 = vmatpush2.bf16.msra.mxu0 0
      %500 = vmatprep.subr.bf16.mxu0 0
      %501 = vmatpush2.bf16.msra.mxu0 0
      %502 = vmatprep.mubr.bf16.mxu0 0
      %503 = vmatmul.mubr.bf16.gmra.mxu0 %v468
      %v504 = vpop.f32.mrf.mxu0
      %v505 = vadd.f32 %v453, %v504
      %v506 = vpop.f32.mrf.mxu0
      %v507 = vpop.f32.mrf.mxu0
      %v508 = vpop.f32.mrf.mxu0
      %509 = vdwg.mxu0
      %v510 = vld [vmem:[%s6] sm:$0xf]
      %v511 = vld [vmem:[%s6 + $0x4] sm:$0xf]
      %v512 = vld [vmem:[%s6 + $0x8] sm:$0xf]
      %v513 = vld [vmem:[%s6 + $0xc] sm:$0xf]
      %v514 = vmul.f32 %v438, 0.25
      %v515 = vpack.c.bf16 %v514, %v514
      %v516 = vpack.c.bf16 %v505, %v505
      %vm517 = vcmask 130048
      %v519 = vsel %vm517, %v515, 0
      %v522 = vsel %vm517, %v516, 0
      %524 = vmatprep.subr.bf16.mxu0 0
      %525 = vmatpush1.bf16.xpose.msra.mxu0 0
      %526 = vmatprep.subr.bf16.mxu0 0
      %527 = vmatpush1.bf16.xpose.msra.mxu0 0
      %528 = vmatprep.subr.bf16.mxu0 0
      %529 = vmatpush1.bf16.xpose.msra.mxu0 0
      %530 = vmatprep.subr.bf16.mxu0 0
      %531 = vmatpush1.bf16.xpose.msra.mxu0 0
      %532 = vmatprep.subr.bf16.mxu0 0
      %533 = vmatpush1.bf16.xpose.msra.mxu0 0
      %534 = vmatprep.subr.bf16.mxu0 0
      %535 = vmatpush1.bf16.xpose.msra.mxu0 0
      %536 = vmatprep.subr.bf16.mxu0 0
      %537 = vmatpush1.bf16.xpose.msra.mxu0 0
      %538 = vmatprep.subr.bf16.mxu0 0
      %539 = vmatpush1.bf16.xpose.msra.mxu0 %v522
      %540 = vmatprep.subr.bf16.mxu0 0
      %541 = vmatpush2.bf16.xpose.msra.mxu0 0
      %542 = vmatprep.subr.bf16.mxu0 0
      %543 = vmatpush2.bf16.xpose.msra.mxu0 0
      %544 = vmatprep.subr.bf16.mxu0 0
      %545 = vmatpush2.bf16.xpose.msra.mxu0 0
      %546 = vmatprep.subr.bf16.mxu0 0
      %547 = vmatpush2.bf16.xpose.msra.mxu0 0
      %548 = vmatprep.subr.bf16.mxu0 0
      %549 = vmatpush2.bf16.xpose.msra.mxu0 0
      %550 = vmatprep.subr.bf16.mxu0 0
      %551 = vmatpush2.bf16.xpose.msra.mxu0 0
      %552 = vmatprep.subr.bf16.mxu0 0
      %553 = vmatpush2.bf16.xpose.msra.mxu0 0
      %554 = vmatprep.subr.bf16.mxu0 0
      %555 = vmatpush2.bf16.xpose.msra.mxu0 0
      %556 = vmatprep.mubr.bf16.mxu0 0
      %557 = vmatmul.mubr.bf16.gmra.mxu0 %v519
      %v558 = vpop.f32.mrf.mxu0
      %v559 = vadd.f32 0.0, %v558
      %v560 = vpop.f32.mrf.mxu0
      %v561 = vpop.f32.mrf.mxu0
      %v562 = vpop.f32.mrf.mxu0
      %563 = vdwg.mxu0
      %vm564 = vcmask 64512
      %v565 = vsel %vm564, %v559, -inf
      %566 = vmax.xlane.f32.xlu0 %v565
      %v567 = vpop.xlane.xlu0 %566
      %v568 = vsub.f32 %v559, %v567
      %v569 = vmul.f32 %v568, 1.442695
      %v570 = vpow.pop %v569
      %v571 = vsel %vm564, %v570, 0.0
      %572 = vadd.xlane.f32.xlu0 %v571
      %v573 = vpop.xlane.xlu0 %572
      %v574 = vrcp.pop %v573
      %v575 = vmul.f32 %v570, %v574
      %v576 = vpack.c.bf16 %v575, %v575
      %578 = vrot.lane.b32.xlu0 %v516, 96
      %v579 = vpop.permute.xlu0 %578
      %v581 = vsel %vm564, %v576, 0
      %vm583 = vcmask 1043456
      %v585 = vsel %vm583, %v579, 0
      %587 = vmatprep.subr.bf16.mxu0 0
      %588 = vmatpush1.bf16.msra.mxu0 0
      %589 = vmatprep.subr.bf16.mxu0 0
      %590 = vmatpush1.bf16.msra.mxu0 0
      %591 = vmatprep.subr.bf16.mxu0 0
      %592 = vmatpush1.bf16.msra.mxu0 0
      %593 = vmatprep.subr.bf16.mxu0 0
      %594 = vmatpush1.bf16.msra.mxu0 0
      %595 = vmatprep.subr.bf16.mxu0 0
      %596 = vmatpush1.bf16.msra.mxu0 0
      %597 = vmatprep.subr.bf16.mxu0 0
      %598 = vmatpush1.bf16.msra.mxu0 0
      %599 = vmatprep.subr.bf16.mxu0 0
      %600 = vmatpush1.bf16.msra.mxu0 0
      %601 = vmatprep.subr.bf16.mxu0 0
      %602 = vmatpush1.bf16.msra.mxu0 %v585
      %603 = vmatprep.subr.bf16.mxu0 0
      %604 = vmatpush2.bf16.msra.mxu0 0
      %605 = vmatprep.subr.bf16.mxu0 0
      %606 = vmatpush2.bf16.msra.mxu0 0
      %607 = vmatprep.subr.bf16.mxu0 0
      %608 = vmatpush2.bf16.msra.mxu0 0
      %609 = vmatprep.subr.bf16.mxu0 0
      %610 = vmatpush2.bf16.msra.mxu0 0
      %611 = vmatprep.subr.bf16.mxu0 0
      %612 = vmatpush2.bf16.msra.mxu0 0
      %613 = vmatprep.subr.bf16.mxu0 0
      %614 = vmatpush2.bf16.msra.mxu0 0
      %615 = vmatprep.subr.bf16.mxu0 0
      %616 = vmatpush2.bf16.msra.mxu0 0
      %617 = vmatprep.subr.bf16.mxu0 0
      %618 = vmatpush2.bf16.msra.mxu0 0
      %619 = vmatprep.mubr.bf16.mxu0 0
      %620 = vmatmul.mubr.bf16.gmra.mxu0 %v581
      %v621 = vpop.f32.mrf.mxu0
      %v622 = vadd.f32 0.0, %v621
      %v623 = vpop.f32.mrf.mxu0
      %v624 = vpop.f32.mrf.mxu0
      %v625 = vpop.f32.mrf.mxu0
      %626 = vdwg.mxu0
      %v627 = vpack.c.bf16 %v622, %v622
      %629 = vrot.lane.b32.xlu0 %v515, 112
      %v630 = vpop.permute.xlu0 %629
      %631 = vrot.lane.b32.xlu0 %v516, 112
      %v632 = vpop.permute.xlu0 %631
      %v634 = vsel %vm517, %v630, 0
      %v637 = vsel %vm517, %v632, 0
      %639 = vmatprep.subr.bf16.mxu0 0
      %640 = vmatpush1.bf16.xpose.msra.mxu0 0
      %641 = vmatprep.subr.bf16.mxu0 0
      %642 = vmatpush1.bf16.xpose.msra.mxu0 0
      %643 = vmatprep.subr.bf16.mxu0 0
      %644 = vmatpush1.bf16.xpose.msra.mxu0 0
      %645 = vmatprep.subr.bf16.mxu0 0
      %646 = vmatpush1.bf16.xpose.msra.mxu0 0
      %647 = vmatprep.subr.bf16.mxu0 0
      %648 = vmatpush1.bf16.xpose.msra.mxu0 0
      %649 = vmatprep.subr.bf16.mxu0 0
      %650 = vmatpush1.bf16.xpose.msra.mxu0 0
      %651 = vmatprep.subr.bf16.mxu0 0
      %652 = vmatpush1.bf16.xpose.msra.mxu0 0
      %653 = vmatprep.subr.bf16.mxu0 0
      %654 = vmatpush1.bf16.xpose.msra.mxu0 %v637
      %655 = vmatprep.subr.bf16.mxu0 0
      %656 = vmatpush2.bf16.xpose.msra.mxu0 0
      %657 = vmatprep.subr.bf16.mxu0 0
      %658 = vmatpush2.bf16.xpose.msra.mxu0 0
      %659 = vmatprep.subr.bf16.mxu0 0
      %660 = vmatpush2.bf16.xpose.msra.mxu0 0
      %661 = vmatprep.subr.bf16.mxu0 0
      %662 = vmatpush2.bf16.xpose.msra.mxu0 0
      %663 = vmatprep.subr.bf16.mxu0 0
      %664 = vmatpush2.bf16.xpose.msra.mxu0 0
      %665 = vmatprep.subr.bf16.mxu0 0
      %666 = vmatpush2.bf16.xpose.msra.mxu0 0
      %667 = vmatprep.subr.bf16.mxu0 0
      %668 = vmatpush2.bf16.xpose.msra.mxu0 0
      %669 = vmatprep.subr.bf16.mxu0 0
      %670 = vmatpush2.bf16.xpose.msra.mxu0 0
      %671 = vmatprep.mubr.bf16.mxu0 0
      %672 = vmatmul.mubr.bf16.gmra.mxu0 %v634
      %v673 = vpop.f32.mrf.mxu0
      %v674 = vadd.f32 0.0, %v673
      %v675 = vpop.f32.mrf.mxu0
      %v676 = vpop.f32.mrf.mxu0
      %v677 = vpop.f32.mrf.mxu0
      %678 = vdwg.mxu0
      %v679 = vsel %vm564, %v674, -inf
      %680 = vmax.xlane.f32.xlu0 %v679
      %v681 = vpop.xlane.xlu0 %680
      %v682 = vsub.f32 %v674, %v681
      %v683 = vmul.f32 %v682, 1.442695
      %v684 = vpow.pop %v683
      %v685 = vsel %vm564, %v684, 0.0
      %686 = vadd.xlane.f32.xlu0 %v685
      %v687 = vpop.xlane.xlu0 %686
      %v688 = vrcp.pop %v687
      %v689 = vmul.f32 %v684, %v688
      %v690 = vpack.c.bf16 %v689, %v689
      %691 = vrot.lane.b32.xlu0 %v516, 80
      %v692 = vpop.permute.xlu0 %691
      %v694 = vsel %vm564, %v690, 0
      %v697 = vsel %vm583, %v692, 0
      %699 = vmatprep.subr.bf16.mxu0 0
      %700 = vmatpush1.bf16.msra.mxu0 0
      %701 = vmatprep.subr.bf16.mxu0 0
      %702 = vmatpush1.bf16.msra.mxu0 0
      %703 = vmatprep.subr.bf16.mxu0 0
      %704 = vmatpush1.bf16.msra.mxu0 0
      %705 = vmatprep.subr.bf16.mxu0 0
      %706 = vmatpush1.bf16.msra.mxu0 0
      %707 = vmatprep.subr.bf16.mxu0 0
      %708 = vmatpush1.bf16.msra.mxu0 0
      %709 = vmatprep.subr.bf16.mxu0 0
      %710 = vmatpush1.bf16.msra.mxu0 0
      %711 = vmatprep.subr.bf16.mxu0 0
      %712 = vmatpush1.bf16.msra.mxu0 0
      %713 = vmatprep.subr.bf16.mxu0 0
      %714 = vmatpush1.bf16.msra.mxu0 %v697
      %715 = vmatprep.subr.bf16.mxu0 0
      %716 = vmatpush2.bf16.msra.mxu0 0
      %717 = vmatprep.subr.bf16.mxu0 0
      %718 = vmatpush2.bf16.msra.mxu0 0
      %719 = vmatprep.subr.bf16.mxu0 0
      %720 = vmatpush2.bf16.msra.mxu0 0
      %721 = vmatprep.subr.bf16.mxu0 0
      %722 = vmatpush2.bf16.msra.mxu0 0
      %723 = vmatprep.subr.bf16.mxu0 0
      %724 = vmatpush2.bf16.msra.mxu0 0
      %725 = vmatprep.subr.bf16.mxu0 0
      %726 = vmatpush2.bf16.msra.mxu0 0
      %727 = vmatprep.subr.bf16.mxu0 0
      %728 = vmatpush2.bf16.msra.mxu0 0
      %729 = vmatprep.subr.bf16.mxu0 0
      %730 = vmatpush2.bf16.msra.mxu0 0
      %731 = vmatprep.mubr.bf16.mxu0 0
      %732 = vmatmul.mubr.bf16.gmra.mxu0 %v694
      %v733 = vpop.f32.mrf.mxu0
      %v734 = vadd.f32 0.0, %v733
      %v735 = vpop.f32.mrf.mxu0
      %v736 = vpop.f32.mrf.mxu0
      %v737 = vpop.f32.mrf.mxu0
      %738 = vdwg.mxu0
      %v739 = vpack.c.bf16 %v734, %v734
      %v742 = vunpack.c.l.b16 %v512
      %v743 = vunpack.c.l.b16 %v513
      %v744 = vpack.c.b16 %v743, %v742
      %v747 = vsel %vm517, %v739, 0
      %749 = vmatprep.subr.bf16.mxu0 0
      %750 = vmatpush1.bf16.msra.mxu0 0
      %751 = vmatprep.subr.bf16.mxu0 0
      %752 = vmatpush1.bf16.msra.mxu0 0
      %753 = vmatprep.subr.bf16.mxu0 0
      %754 = vmatpush1.bf16.msra.mxu0 0
      %755 = vmatprep.subr.bf16.mxu0 0
      %756 = vmatpush1.bf16.msra.mxu0 0
      %757 = vmatprep.subr.bf16.mxu0 0
      %758 = vmatpush1.bf16.msra.mxu0 0
      %759 = vmatprep.subr.bf16.mxu0 0
      %760 = vmatpush1.bf16.msra.mxu0 0
      %761 = vmatprep.subr.bf16.mxu0 0
      %762 = vmatpush1.bf16.msra.mxu0 0
      %763 = vmatprep.subr.bf16.mxu0 0
      %764 = vmatpush1.bf16.msra.mxu0 %v744
      %765 = vmatprep.subr.bf16.mxu0 0
      %766 = vmatpush2.bf16.msra.mxu0 0
      %767 = vmatprep.subr.bf16.mxu0 0
      %768 = vmatpush2.bf16.msra.mxu0 0
      %769 = vmatprep.subr.bf16.mxu0 0
      %770 = vmatpush2.bf16.msra.mxu0 0
      %771 = vmatprep.subr.bf16.mxu0 0
      %772 = vmatpush2.bf16.msra.mxu0 0
      %773 = vmatprep.subr.bf16.mxu0 0
      %774 = vmatpush2.bf16.msra.mxu0 0
      %775 = vmatprep.subr.bf16.mxu0 0
      %776 = vmatpush2.bf16.msra.mxu0 0
      %777 = vmatprep.subr.bf16.mxu0 0
      %778 = vmatpush2.bf16.msra.mxu0 0
      %779 = vmatprep.subr.bf16.mxu0 0
      %780 = vmatpush2.bf16.msra.mxu0 0
      %781 = vmatprep.mubr.bf16.mxu0 0
      %782 = vmatmul.mubr.bf16.gmra.mxu0 %v747
      %v783 = vpop.f32.mrf.mxu0
      %v784 = vadd.f32 0.0, %v783
      %v785 = vpop.f32.mrf.mxu0
      %v786 = vpop.f32.mrf.mxu0
      %v787 = vpop.f32.mrf.mxu0
      %788 = vdwg.mxu0
      %v791 = vunpack.c.l.b16 %v510
      %v792 = vunpack.c.l.b16 %v511
      %v793 = vpack.c.b16 %v792, %v791
      %v796 = vsel %vm517, %v627, 0
      %798 = vmatprep.subr.bf16.mxu0 0
      %799 = vmatpush1.bf16.msra.mxu0 0
      %800 = vmatprep.subr.bf16.mxu0 0
      %801 = vmatpush1.bf16.msra.mxu0 0
      %802 = vmatprep.subr.bf16.mxu0 0
      %803 = vmatpush1.bf16.msra.mxu0 0
      %804 = vmatprep.subr.bf16.mxu0 0
      %805 = vmatpush1.bf16.msra.mxu0 0
      %806 = vmatprep.subr.bf16.mxu0 0
      %807 = vmatpush1.bf16.msra.mxu0 0
      %808 = vmatprep.subr.bf16.mxu0 0
      %809 = vmatpush1.bf16.msra.mxu0 0
      %810 = vmatprep.subr.bf16.mxu0 0
      %811 = vmatpush1.bf16.msra.mxu0 0
      %812 = vmatprep.subr.bf16.mxu0 0
      %813 = vmatpush1.bf16.msra.mxu0 %v793
      %814 = vmatprep.subr.bf16.mxu0 0
      %815 = vmatpush2.bf16.msra.mxu0 0
      %816 = vmatprep.subr.bf16.mxu0 0
      %817 = vmatpush2.bf16.msra.mxu0 0
      %818 = vmatprep.subr.bf16.mxu0 0
      %819 = vmatpush2.bf16.msra.mxu0 0
      %820 = vmatprep.subr.bf16.mxu0 0
      %821 = vmatpush2.bf16.msra.mxu0 0
      %822 = vmatprep.subr.bf16.mxu0 0
      %823 = vmatpush2.bf16.msra.mxu0 0
      %824 = vmatprep.subr.bf16.mxu0 0
      %825 = vmatpush2.bf16.msra.mxu0 0
      %826 = vmatprep.subr.bf16.mxu0 0
      %827 = vmatpush2.bf16.msra.mxu0 0
      %828 = vmatprep.subr.bf16.mxu0 0
      %829 = vmatpush2.bf16.msra.mxu0 0
      %830 = vmatprep.mubr.bf16.mxu0 0
      %831 = vmatmul.mubr.bf16.gmra.mxu0 %v796
      %v832 = vpop.f32.mrf.mxu0
      %v833 = vadd.f32 %v784, %v832
      %v834 = vpop.f32.mrf.mxu0
      %v835 = vpop.f32.mrf.mxu0
      %v836 = vpop.f32.mrf.mxu0
      %837 = vdwg.mxu0
      %v838 = vld [vmem:[%s7] sm:$0x1]
      %v840 = vlaneseq
      %v841 = vshrl.u32 %v840, 7
      %v842 = vsub.s32 0, %v841
      %v843 = vrot.slane %v838, %v842
      %v845 = vadd.f32 %v833, %v843
      %v846 = vadd.f32 %v373, %v845
      %v847 = vsel %vm399, %v846, 0.0
      %848 = vadd.xlane.f32.xlu0 %v847
      %v849 = vpop.xlane.xlu0 %848
      %v850 = vrcp.pop 32.0
      %v851 = vmul.f32 %v849, %v850
      %v852 = vsub.f32 %v846, %v851
      %v853 = vmul.f32 %v852, %v852
      %v854 = vsel %vm399, %v853, 0.0
      %855 = vadd.xlane.f32.xlu0 %v854
      %v856 = vpop.xlane.xlu0 %855
      %v857 = vmul.f32 %v856, %v850
      %v858 = vadd.f32 %v857, 1e-05
      %v859 = vrsqrt.pop %v858
      %v860 = vmul.f32 %v852, %v859
      %v861 = vld [vmem:[%s8] sm:$0x1]
      %v863 = vlaneseq
      %v864 = vshrl.u32 %v863, 7
      %v865 = vsub.s32 0, %v864
      %v866 = vrot.slane %v861, %v865
      %v868 = vmul.f32 %v860, %v866
      %v869 = vld [vmem:[%s9] sm:$0x1]
      %v871 = vlaneseq
      %v872 = vshrl.u32 %v871, 7
      %v873 = vsub.s32 0, %v872
      %v874 = vrot.slane %v869, %v873
      %v876 = vadd.f32 %v868, %v874
      %877 = vst.msk [vmem:[%s371] sm:$0xff] %vm399, %v876
      %p878 = scmp.lt.s32.totalorder %s21, 1
      %s879 = scalar_select %p878, %s21, 1
      %s880 = smul.addr %s879, 8
      %s881 = scalar_lea.vmem %s10, %s880
      // Predicated region
      $region61: #{transformer_forward.16} parent=59 // pred_check
        %p882 = pneg %p259
      $region62: #{transformer_forward.16} parent=59 // pred_check_branch
        %884 = sbr.rel (%p882) target = $region64
      $region63: #{transformer_forward.16} parent=59 // pred_region
        _
      $region64: #{transformer_forward.16} parent=59 // pred_fallthru
        _
    $region60: #{transformer_forward.16} parent=5 // pred_fallthru
      _
    %p885 = scmp.le.s32.totalorder 2, %s16
    // Predicated region
    $region65: #{transformer_forward.16} parent=5 // pred_check
      %p886 = pneg %p885
    $region66: #{transformer_forward.16} parent=5 // pred_check_branch
      %888 = sbr.rel (%p886) target = $region68
    $region67: #{transformer_forward.16} parent=5 // pred_region
      %s889 = ssub.s32 %s16, 2
      // Predicated region
      $region69: #{transformer_forward.16} parent=67 // pred_check
        %p890 = pneg %p265
      $region70: #{transformer_forward.16} parent=67 // pred_check_branch
        %892 = sbr.rel (%p890) target = $region72
      $region71: #{transformer_forward.16} parent=67 // pred_region
        %p893 = scmp.lt.s32.totalorder %s22, 1
        %s894 = scalar_select %p893, %s22, 1
        %s895 = smul.addr %s894, 8
        %s896 = scalar_lea.vmem %s10, %s895
      $region72: #{transformer_forward.16} parent=67 // pred_fallthru
        _
    $region68: #{transformer_forward.16} parent=5 // pred_fallthru
      _
  $region6: #{transformer_forward.16} parent=0 // loop_footer
    %s20 = sadd.s32 1, %s16
  $region7: #{transformer_forward.16} parent=0 // loop_footer_branch
    %15 = sbr.rel target = $region3
  $region8: #{transformer_forward.16} parent=0 // loop_exit
    _

// kernel: transformer_forward.20
$region0: #{transformer_forward.20}
  #allocation0 [shape = 'u32[]', space=smem, size = 0x4, offset = 0x4, fixed_abs, tag = 'smem constant byte address 0x4 - core index']
  #allocation1 [shape = 'u32[144,128]{1,0:T(1,128)}', space=vmem, size = 0x12000, scoped, tag = 'internal scratch']
  %s0 = inlined_call_operand.vmem [shape: f32[16,32], index: 0, kind: input, shape index: {}]
  %s1 = inlined_call_operand.vmem [shape: f32[1,32], index: 1, kind: input, shape index: {}]
  %s2 = inlined_call_operand.vmem [shape: f32[1,32], index: 2, kind: input, shape index: {}]
  %s3 = inlined_call_operand.vmem [shape: f32[16,32], index: 3, kind: output, shape index: {}]
  %s4 = sld [smem:[#allocation0]]
  $region22: #{transformer_forward.20} parent=0
    _
  %s6 = ssub.s32 1, %s4
  %s7 = scalar_select 0, %s6, %s4
  // Predicated region
  $region2: #{transformer_forward.20} parent=0 // pred_check
    _
  $region3: #{transformer_forward.20} parent=0 // pred_check_branch
    %9 = sbr.rel (0) target = $region5
  $region4: #{transformer_forward.20} parent=0 // pred_region
    _
  $region5: #{transformer_forward.20} parent=0 // pred_fallthru
    _
  // Predicated region
  $region6: #{transformer_forward.20} parent=0 // pred_check
    _
  $region7: #{transformer_forward.20} parent=0 // pred_check_branch
    %11 = sbr.rel (0) target = $region9
  $region8: #{transformer_forward.20} parent=0 // pred_region
    _
  $region9: #{transformer_forward.20} parent=0 // pred_fallthru
    _
  // Predicated region
  $region10: #{transformer_forward.20} parent=0 // pred_check
    _
  $region11: #{transformer_forward.20} parent=0 // pred_check_branch
    %13 = sbr.rel (0) target = $region13
  $region12: #{transformer_forward.20} parent=0 // pred_region
    _
  $region13: #{transformer_forward.20} parent=0 // pred_fallthru
    _
  %v14 = vld [vmem:[%s0] sm:$0xff]
  %v15 = vld [vmem:[%s0 + $0x8] sm:$0xff]
  %vm16 = vcmask 261120
  %v17 = vsel %vm16, %v14, 0.0
  %18 = vadd.xlane.f32.xlu0 %v17
  %v19 = vpop.xlane.xlu0 %18
  %v20 = vsel %vm16, %v15, 0.0
  %21 = vadd.xlane.f32.xlu0 %v20
  %v22 = vpop.xlane.xlu0 %21
  %v23 = vrcp.pop 32.0
  %v24 = vmul.f32 %v19, %v23
  %v25 = vmul.f32 %v22, %v23
  %v26 = vsub.f32 %v14, %v24
  %v27 = vsub.f32 %v15, %v25
  %v28 = vmul.f32 %v26, %v26
  %v29 = vmul.f32 %v27, %v27
  %v30 = vsel %vm16, %v28, 0.0
  %31 = vadd.xlane.f32.xlu0 %v30
  %v32 = vpop.xlane.xlu0 %31
  %v33 = vsel %vm16, %v29, 0.0
  %34 = vadd.xlane.f32.xlu0 %v33
  %v35 = vpop.xlane.xlu0 %34
  %v36 = vmul.f32 %v32, %v23
  %v37 = vmul.f32 %v35, %v23
  %v38 = vadd.f32 %v36, 1e-05
  %v39 = vadd.f32 %v37, 1e-05
  %v40 = vrsqrt.pop %v38
  %v41 = vrsqrt.pop %v39
  %v42 = vmul.f32 %v26, %v40
  %v43 = vmul.f32 %v27, %v41
  %v44 = vld [vmem:[%s1] sm:$0x1]
  %v46 = vlaneseq
  %v47 = vshrl.u32 %v46, 7
  %v48 = vsub.s32 0, %v47
  %v49 = vrot.slane %v44, %v48
  %v51 = vmul.f32 %v42, %v49
  %v52 = vmul.f32 %v43, %v49
  %v53 = vld [vmem:[%s2] sm:$0x1]
  %v55 = vlaneseq
  %v56 = vshrl.u32 %v55, 7
  %v57 = vsub.s32 0, %v56
  %v58 = vrot.slane %v53, %v57
  %v60 = vadd.f32 %v51, %v58
  %v61 = vadd.f32 %v52, %v58
  %62 = vst.msk [vmem:[%s3] sm:$0xff] %vm16, %v60
  %63 = vst.msk [vmem:[%s3 + $0x8] sm:$0xff] %vm16, %v61
  // Predicated region
  $region14: #{transformer_forward.20} parent=0 // pred_check
    _
  $region15: #{transformer_forward.20} parent=0 // pred_check_branch
    %65 = sbr.rel (0) target = $region17
  $region16: #{transformer_forward.20} parent=0 // pred_region
    _
  $region17: #{transformer_forward.20} parent=0 // pred_fallthru
    _
  // Predicated region
  $region18: #{transformer_forward.20} parent=0 // pred_check
    _
  $region19: #{transformer_forward.20} parent=0 // pred_check_branch
    %67 = sbr.rel (0) target = $region21
  $region20: #{transformer_forward.20} parent=0 // pred_region
    _
  $region21: #{transformer_forward.20} parent=0 // pred_fallthru
    _

// kernel: transformer_forward.27
$region0: #{transformer_forward.27}
  #allocation0 [shape = 'u32[]', space=smem, size = 0x4, offset = 0x4, fixed_abs, tag = 'smem constant byte address 0x4 - core index']
  #allocation1 [shape = 'u32[144,128]{1,0:T(1,128)}', space=vmem, size = 0x12000, scoped, tag = 'internal scratch']
  %s0 = inlined_call_operand.vmem [shape: f32[16,32], index: 0, kind: input, shape index: {}]
  %s1 = inlined_call_operand.vmem [shape: f32[1,32], index: 1, kind: input, shape index: {}]
  %s2 = inlined_call_operand.vmem [shape: f32[1,32], index: 2, kind: input, shape index: {}]
  %s3 = inlined_call_operand.vmem [shape: bf16[32,128], index: 3, kind: input, shape index: {}]
  %s4 = inlined_call_operand.vmem [shape: f32[1,128], index: 4, kind: input, shape index: {}]
  %s5 = inlined_call_operand.vmem [shape: f32[16,128], index: 5, kind: output, shape index: {}]
  %s6 = sld [smem:[#allocation0]]
  $region30: #{transformer_forward.27} parent=0
    _
  %s8 = ssub.s32 1, %s6
  %s9 = scalar_select 0, %s8, %s6
  // Predicated region
  $region2: #{transformer_forward.27} parent=0 // pred_check
    _
  $region3: #{transformer_forward.27} parent=0 // pred_check_branch
    %11 = sbr.rel (0) target = $region5
  $region4: #{transformer_forward.27} parent=0 // pred_region
    _
  $region5: #{transformer_forward.27} parent=0 // pred_fallthru
    _
  // Predicated region
  $region6: #{transformer_forward.27} parent=0 // pred_check
    _
  $region7: #{transformer_forward.27} parent=0 // pred_check_branch
    %13 = sbr.rel (0) target = $region9
  $region8: #{transformer_forward.27} parent=0 // pred_region
    _
  $region9: #{transformer_forward.27} parent=0 // pred_fallthru
    _
  // Predicated region
  $region10: #{transformer_forward.27} parent=0 // pred_check
    _
  $region11: #{transformer_forward.27} parent=0 // pred_check_branch
    %15 = sbr.rel (0) target = $region13
  $region12: #{transformer_forward.27} parent=0 // pred_region
    _
  $region13: #{transformer_forward.27} parent=0 // pred_fallthru
    _
  // Predicated region
  $region14: #{transformer_forward.27} parent=0 // pred_check
    _
  $region15: #{transformer_forward.27} parent=0 // pred_check_branch
    %17 = sbr.rel (0) target = $region17
  $region16: #{transformer_forward.27} parent=0 // pred_region
    _
  $region17: #{transformer_forward.27} parent=0 // pred_fallthru
    _
  // Predicated region
  $region18: #{transformer_forward.27} parent=0 // pred_check
    _
  $region19: #{transformer_forward.27} parent=0 // pred_check_branch
    %19 = sbr.rel (0) target = $region21
  $region20: #{transformer_forward.27} parent=0 // pred_region
    _
  $region21: #{transformer_forward.27} parent=0 // pred_fallthru
    _
  %v21 = vld [vmem:[%s0] sm:$0xff]
  %v22 = vld [vmem:[%s0 + $0x8] sm:$0xff]
  %vm23 = vcmask 261120
  %v24 = vsel %vm23, %v21, 0.0
  %25 = vadd.xlane.f32.xlu0 %v24
  %v26 = vpop.xlane.xlu0 %25
  %v27 = vsel %vm23, %v22, 0.0
  %28 = vadd.xlane.f32.xlu0 %v27
  %v29 = vpop.xlane.xlu0 %28
  %v30 = vrcp.pop 32.0
  %v31 = vmul.f32 %v26, %v30
  %v32 = vmul.f32 %v29, %v30
  %v33 = vsub.f32 %v21, %v31
  %v34 = vsub.f32 %v22, %v32
  %v35 = vmul.f32 %v33, %v33
  %v36 = vmul.f32 %v34, %v34
  %v37 = vsel %vm23, %v35, 0.0
  %38 = vadd.xlane.f32.xlu0 %v37
  %v39 = vpop.xlane.xlu0 %38
  %v40 = vsel %vm23, %v36, 0.0
  %41 = vadd.xlane.f32.xlu0 %v40
  %v42 = vpop.xlane.xlu0 %41
  %v43 = vmul.f32 %v39, %v30
  %v44 = vmul.f32 %v42, %v30
  %v45 = vadd.f32 %v43, 1e-05
  %v46 = vadd.f32 %v44, 1e-05
  %v47 = vrsqrt.pop %v45
  %v48 = vrsqrt.pop %v46
  %v49 = vmul.f32 %v33, %v47
  %v50 = vmul.f32 %v34, %v48
  %v51 = vld [vmem:[%s1] sm:$0x1]
  %v53 = vlaneseq
  %v54 = vshrl.u32 %v53, 7
  %v55 = vsub.s32 0, %v54
  %v56 = vrot.slane %v51, %v55
  %v58 = vmul.f32 %v49, %v56
  %v59 = vmul.f32 %v50, %v56
  %v60 = vld [vmem:[%s2] sm:$0x1]
  %v62 = vlaneseq
  %v63 = vshrl.u32 %v62, 7
  %v64 = vsub.s32 0, %v63
  %v65 = vrot.slane %v60, %v64
  %v67 = vadd.f32 %v58, %v65
  %v68 = vadd.f32 %v59, %v65
  %v69 = vpack.c.bf16 %v68, %v67
  %v70 = vld [vmem:[%s3] sm:$0xf]
  %v71 = vld [vmem:[%s3 + $0x4] sm:$0xf]
  %v72 = vld [vmem:[%s3 + $0x8] sm:$0xf]
  %v73 = vld [vmem:[%s3 + $0xc] sm:$0xf]
  %v74 = vld [vmem:[%s4] sm:$0x1]
  %v76 = vlaneseq
  %v77 = vshrl.u32 %v76, 7
  %v78 = vsub.s32 0, %v77
  %v79 = vrot.slane %v74, %v78
  %v85 = vunpack.c.l.b16 %v70
  %v86 = vunpack.c.l.b16 %v71
  %v87 = vunpack.c.l.b16 %v72
  %v88 = vunpack.c.l.b16 %v73
  %v89 = vpack.c.b16 %v86, %v85
  %v90 = vpack.c.b16 %v88, %v87
  %v94 = vsel %vm23, %v69, 0
  %96 = vmatprep.subr.bf16.mxu0 0
  %97 = vmatpush1.bf16.msra.mxu0 0
  %98 = vmatprep.subr.bf16.mxu0 0
  %99 = vmatpush1.bf16.msra.mxu0 0
  %100 = vmatprep.subr.bf16.mxu0 0
  %101 = vmatpush1.bf16.msra.mxu0 0
  %102 = vmatprep.subr.bf16.mxu0 0
  %103 = vmatpush1.bf16.msra.mxu0 0
  %104 = vmatprep.subr.bf16.mxu0 0
  %105 = vmatpush1.bf16.msra.mxu0 0
  %106 = vmatprep.subr.bf16.mxu0 0
  %107 = vmatpush1.bf16.msra.mxu0 0
  %108 = vmatprep.subr.bf16.mxu0 0
  %109 = vmatpush1.bf16.msra.mxu0 %v90
  %110 = vmatprep.subr.bf16.mxu0 0
  %111 = vmatpush1.bf16.msra.mxu0 %v89
  %112 = vmatprep.subr.bf16.mxu0 0
  %113 = vmatpush2.bf16.msra.mxu0 0
  %114 = vmatprep.subr.bf16.mxu0 0
  %115 = vmatpush2.bf16.msra.mxu0 0
  %116 = vmatprep.subr.bf16.mxu0 0
  %117 = vmatpush2.bf16.msra.mxu0 0
  %118 = vmatprep.subr.bf16.mxu0 0
  %119 = vmatpush2.bf16.msra.mxu0 0
  %120 = vmatprep.subr.bf16.mxu0 0
  %121 = vmatpush2.bf16.msra.mxu0 0
  %122 = vmatprep.subr.bf16.mxu0 0
  %123 = vmatpush2.bf16.msra.mxu0 0
  %124 = vmatprep.subr.bf16.mxu0 0
  %125 = vmatpush2.bf16.msra.mxu0 0
  %126 = vmatprep.subr.bf16.mxu0 0
  %127 = vmatpush2.bf16.msra.mxu0 0
  %128 = vmatprep.mubr.bf16.mxu0 0
  %129 = vmatmul.mubr.bf16.gmra.mxu0 %v94
  %v130 = vpop.f32.mrf.mxu0
  %v131 = vadd.f32 %v79, %v130
  %v132 = vpop.f32.mrf.mxu0
  %v133 = vpop.f32.mrf.mxu0
  %v134 = vadd.f32 %v79, %v133
  %v135 = vpop.f32.mrf.mxu0
  %136 = vdwg.mxu0
  %137 = vst [vmem:[%s5] sm:$0xff] %v131
  %138 = vst [vmem:[%s5 + $0x8] sm:$0xff] %v134
  // Predicated region
  $region22: #{transformer_forward.27} parent=0 // pred_check
    _
  $region23: #{transformer_forward.27} parent=0 // pred_check_branch
    %140 = sbr.rel (0) target = $region25
  $region24: #{transformer_forward.27} parent=0 // pred_region
    _
  $region25: #{transformer_forward.27} parent=0 // pred_fallthru
    _
  // Predicated region
  $region26: #{transformer_forward.27} parent=0 // pred_check
    _
  $region27: #{transformer_forward.27} parent=0 // pred_check_branch
    %142 = sbr.rel (0) target = $region29
  $region28: #{transformer_forward.27} parent=0 // pred_region
    _
  $region29: #{transformer_forward.27} parent=0 // pred_fallthru
    _

// kernel: transformer_forward.21
$region0: #{transformer_forward.21}
  #allocation0 [shape = 'u32[]', space=smem, size = 0x4, offset = 0x4, fixed_abs, tag = 'smem constant byte address 0x4 - core index']
  #allocation1 [shape = 'u32[144,128]{1,0:T(1,128)}', space=vmem, size = 0x12000, scoped, tag = 'internal scratch']
  %s0 = inlined_call_operand.vmem [shape: f32[2,8,32], index: 0, kind: input, shape index: {}, may-alias: {0,1}]
  %s1 = inlined_call_operand.vmem [shape: f32[2,8,32], index: 1, kind: input, shape index: {}, may-alias: {0,1}]
  %s2 = inlined_call_operand.vmem [shape: bf16[32,32], index: 2, kind: input, shape index: {}]
  %s3 = inlined_call_operand.vmem [shape: f32[1,32], index: 3, kind: input, shape index: {}]
  %s4 = inlined_call_operand.vmem [shape: bf16[32,64], index: 4, kind: input, shape index: {}]
  %s5 = inlined_call_operand.vmem [shape: f32[1,64], index: 5, kind: input, shape index: {}]
  %s6 = inlined_call_operand.vmem [shape: bf16[32,32], index: 6, kind: input, shape index: {}]
  %s7 = inlined_call_operand.vmem [shape: f32[1,32], index: 7, kind: input, shape index: {}]
  %s8 = inlined_call_operand.vmem [shape: f32[1,32], index: 8, kind: input, shape index: {}]
  %s9 = inlined_call_operand.vmem [shape: f32[1,32], index: 9, kind: input, shape index: {}]
  %s10 = inlined_call_operand.vmem [shape: f32[2,8,32], index: 10, kind: output, shape index: {}]
  %s11 = sld [smem:[#allocation0]]
  $region73: #{transformer_forward.21} parent=0
    _
  %s13 = ssub.s32 1, %s11
  %s14 = scalar_select 0, %s13, %s11
  loop: start=0, step=1, limit=4
  $region2: #{transformer_forward.21} parent=0 // loop_pre_header
    _
  $region3: #{transformer_forward.21} parent=0 // loop_header
    %s16 = sphi 0, %s20
    %p17 = scmp.ge.s32.totalorder %s16, 4
    %s26 = sphi 0, %s28
    %s29 = sphi 0, %s26
    %s30 = sphi 0, %s29
    %s46 = sphi 0, %s30
    %s52 = sphi 0, %s54
    %s55 = sphi 0, %s52
    %s56 = sphi 0, %s55
    %s72 = sphi 0, %s56
    %s76 = sphi 0, %s76
    %s78 = sphi 0, %s76
    %s79 = sphi 0, %s78
    %s93 = sphi 0, %s79
    %s97 = sphi 0, %s97
    %s99 = sphi 0, %s97
    %s100 = sphi 0, %s99
    %s114 = sphi 0, %s100
    %s118 = sphi 0, %s118
    %s120 = sphi 0, %s118
    %s121 = sphi 0, %s120
    %s135 = sphi 0, %s121
    %s139 = sphi 0, %s139
    %s141 = sphi 0, %s139
    %s142 = sphi 0, %s141
    %s156 = sphi 0, %s142
    %s160 = sphi 0, %s160
    %s162 = sphi 0, %s160
    %s163 = sphi 0, %s162
    %s177 = sphi 0, %s163
    %s181 = sphi 0, %s181
    %s183 = sphi 0, %s181
    %s184 = sphi 0, %s183
    %s198 = sphi 0, %s184
    %s202 = sphi 0, %s202
    %s204 = sphi 0, %s202
    %s205 = sphi 0, %s204
    %s219 = sphi 0, %s205
    %s223 = sphi 0, %s223
    %s225 = sphi 0, %s223
    %s226 = sphi 0, %s225
    %s240 = sphi 0, %s226
    %s246 = sphi 0, %s248
    %s249 = sphi 0, %s246
    %s250 = sphi 0, %s249
    %s266 = sphi 0, %s250
  $region4: #{transformer_forward.21} parent=0 // loop_header_branch
    %19 = sbr.rel (%p17) target = $region8
  $region5: #{transformer_forward.21} parent=0 // loop_body
    %s21 = ssub.s32 %s16, 1
    %s22 = ssub.s32 %s16, 2
    %s23 = sadd.s32 %s16, 1
    %s24 = ssub.s32 %s16, %s23
    %p25 = scmp.eq.s32.totalorder %s24, 0
    %s27 = sadd.s32 %s26, 1
    %s28 = scalar_select %p25, %s26, %s27
    %p31 = pneg %p25
    %p32 = scmp.eq.s32.totalorder %s16, 1
    %p33 = por %p31, %p32
    %p34 = scmp.ne.s32.totalorder %s26, %s29
    %p35 = scmp.eq.s32.totalorder %s16, 0
    %p36 = por %p34, %p35
    %p37 = scmp.ne.s32.totalorder %s26, %s29
    %p38 = scmp.eq.s32.totalorder %s21, 1
    %p39 = por %p37, %p38
    %p40 = scmp.ne.s32.totalorder %s29, %s30
    %p41 = scmp.eq.s32.totalorder %s21, 0
    %p42 = por %p40, %p41
    %p43 = scmp.ne.s32.totalorder %s29, %s30
    %p44 = scmp.eq.s32.totalorder %s22, 1
    %p45 = por %p43, %p44
    %p47 = scmp.ne.s32.totalorder %s30, %s46
    %p48 = scmp.eq.s32.totalorder %s22, 0
    %p49 = por %p47, %p48
    %s50 = ssub.s32 %s16, %s23
    %p51 = scmp.eq.s32.totalorder %s50, 0
    %s53 = sadd.s32 %s52, 1
    %s54 = scalar_select %p51, %s52, %s53
    %p57 = pneg %p51
    %p58 = scmp.eq.s32.totalorder %s16, 1
    %p59 = por %p57, %p58
    %p60 = scmp.ne.s32.totalorder %s52, %s55
    %p61 = scmp.eq.s32.totalorder %s16, 0
    %p62 = por %p60, %p61
    %p63 = scmp.ne.s32.totalorder %s52, %s55
    %p64 = scmp.eq.s32.totalorder %s21, 1
    %p65 = por %p63, %p64
    %p66 = scmp.ne.s32.totalorder %s55, %s56
    %p67 = scmp.eq.s32.totalorder %s21, 0
    %p68 = por %p66, %p67
    %p69 = scmp.ne.s32.totalorder %s55, %s56
    %p70 = scmp.eq.s32.totalorder %s22, 1
    %p71 = por %p69, %p70
    %p73 = scmp.ne.s32.totalorder %s56, %s72
    %p74 = scmp.eq.s32.totalorder %s22, 0
    %p75 = por %p73, %p74
    %s77 = sadd.s32 %s76, 1
    %p80 = scmp.eq.s32.totalorder %s16, 1
    %p81 = scmp.ne.s32.totalorder %s76, %s78
    %p82 = scmp.eq.s32.totalorder %s16, 0
    %p83 = por %p81, %p82
    %p84 = scmp.ne.s32.totalorder %s76, %s78
    %p85 = scmp.eq.s32.totalorder %s21, 1
    %p86 = por %p84, %p85
    %p87 = scmp.ne.s32.totalorder %s78, %s79
    %p88 = scmp.eq.s32.totalorder %s21, 0
    %p89 = por %p87, %p88
    %p90 = scmp.ne.s32.totalorder %s78, %s79
    %p91 = scmp.eq.s32.totalorder %s22, 1
    %p92 = por %p90, %p91
    %p94 = scmp.ne.s32.totalorder %s79, %s93
    %p95 = scmp.eq.s32.totalorder %s22, 0
    %p96 = por %p94, %p95
    %s98 = sadd.s32 %s97, 1
    %p101 = scmp.eq.s32.totalorder %s16, 1
    %p102 = scmp.ne.s32.totalorder %s97, %s99
    %p103 = scmp.eq.s32.totalorder %s16, 0
    %p104 = por %p102, %p103
    %p105 = scmp.ne.s32.totalorder %s97, %s99
    %p106 = scmp.eq.s32.totalorder %s21, 1
    %p107 = por %p105, %p106
    %p108 = scmp.ne.s32.totalorder %s99, %s100
    %p109 = scmp.eq.s32.totalorder %s21, 0
    %p110 = por %p108, %p109
    %p111 = scmp.ne.s32.totalorder %s99, %s100
    %p112 = scmp.eq.s32.totalorder %s22, 1
    %p113 = por %p111, %p112
    %p115 = scmp.ne.s32.totalorder %s100, %s114
    %p116 = scmp.eq.s32.totalorder %s22, 0
    %p117 = por %p115, %p116
    %s119 = sadd.s32 %s118, 1
    %p122 = scmp.eq.s32.totalorder %s16, 1
    %p123 = scmp.ne.s32.totalorder %s118, %s120
    %p124 = scmp.eq.s32.totalorder %s16, 0
    %p125 = por %p123, %p124
    %p126 = scmp.ne.s32.totalorder %s118, %s120
    %p127 = scmp.eq.s32.totalorder %s21, 1
    %p128 = por %p126, %p127
    %p129 = scmp.ne.s32.totalorder %s120, %s121
    %p130 = scmp.eq.s32.totalorder %s21, 0
    %p131 = por %p129, %p130
    %p132 = scmp.ne.s32.totalorder %s120, %s121
    %p133 = scmp.eq.s32.totalorder %s22, 1
    %p134 = por %p132, %p133
    %p136 = scmp.ne.s32.totalorder %s121, %s135
    %p137 = scmp.eq.s32.totalorder %s22, 0
    %p138 = por %p136, %p137
    %s140 = sadd.s32 %s139, 1
    %p143 = scmp.eq.s32.totalorder %s16, 1
    %p144 = scmp.ne.s32.totalorder %s139, %s141
    %p145 = scmp.eq.s32.totalorder %s16, 0
    %p146 = por %p144, %p145
    %p147 = scmp.ne.s32.totalorder %s139, %s141
    %p148 = scmp.eq.s32.totalorder %s21, 1
    %p149 = por %p147, %p148
    %p150 = scmp.ne.s32.totalorder %s141, %s142
    %p151 = scmp.eq.s32.totalorder %s21, 0
    %p152 = por %p150, %p151
    %p153 = scmp.ne.s32.totalorder %s141, %s142
    %p154 = scmp.eq.s32.totalorder %s22, 1
    %p155 = por %p153, %p154
    %p157 = scmp.ne.s32.totalorder %s142, %s156
    %p158 = scmp.eq.s32.totalorder %s22, 0
    %p159 = por %p157, %p158
    %s161 = sadd.s32 %s160, 1
    %p164 = scmp.eq.s32.totalorder %s16, 1
    %p165 = scmp.ne.s32.totalorder %s160, %s162
    %p166 = scmp.eq.s32.totalorder %s16, 0
    %p167 = por %p165, %p166
    %p168 = scmp.ne.s32.totalorder %s160, %s162
    %p169 = scmp.eq.s32.totalorder %s21, 1
    %p170 = por %p168, %p169
    %p171 = scmp.ne.s32.totalorder %s162, %s163
    %p172 = scmp.eq.s32.totalorder %s21, 0
    %p173 = por %p171, %p172
    %p174 = scmp.ne.s32.totalorder %s162, %s163
    %p175 = scmp.eq.s32.totalorder %s22, 1
    %p176 = por %p174, %p175
    %p178 = scmp.ne.s32.totalorder %s163, %s177
    %p179 = scmp.eq.s32.totalorder %s22, 0
    %p180 = por %p178, %p179
    %s182 = sadd.s32 %s181, 1
    %p185 = scmp.eq.s32.totalorder %s16, 1
    %p186 = scmp.ne.s32.totalorder %s181, %s183
    %p187 = scmp.eq.s32.totalorder %s16, 0
    %p188 = por %p186, %p187
    %p189 = scmp.ne.s32.totalorder %s181, %s183
    %p190 = scmp.eq.s32.totalorder %s21, 1
    %p191 = por %p189, %p190
    %p192 = scmp.ne.s32.totalorder %s183, %s184
    %p193 = scmp.eq.s32.totalorder %s21, 0
    %p194 = por %p192, %p193
    %p195 = scmp.ne.s32.totalorder %s183, %s184
    %p196 = scmp.eq.s32.totalorder %s22, 1
    %p197 = por %p195, %p196
    %p199 = scmp.ne.s32.totalorder %s184, %s198
    %p200 = scmp.eq.s32.totalorder %s22, 0
    %p201 = por %p199, %p200
    %s203 = sadd.s32 %s202, 1
    %p206 = scmp.eq.s32.totalorder %s16, 1
    %p207 = scmp.ne.s32.totalorder %s202, %s204
    %p208 = scmp.eq.s32.totalorder %s16, 0
    %p209 = por %p207, %p208
    %p210 = scmp.ne.s32.totalorder %s202, %s204
    %p211 = scmp.eq.s32.totalorder %s21, 1
    %p212 = por %p210, %p211
    %p213 = scmp.ne.s32.totalorder %s204, %s205
    %p214 = scmp.eq.s32.totalorder %s21, 0
    %p215 = por %p213, %p214
    %p216 = scmp.ne.s32.totalorder %s204, %s205
    %p217 = scmp.eq.s32.totalorder %s22, 1
    %p218 = por %p216, %p217
    %p220 = scmp.ne.s32.totalorder %s205, %s219
    %p221 = scmp.eq.s32.totalorder %s22, 0
    %p222 = por %p220, %p221
    %s224 = sadd.s32 %s223, 1
    %p227 = scmp.eq.s32.totalorder %s16, 1
    %p228 = scmp.ne.s32.totalorder %s223, %s225
    %p229 = scmp.eq.s32.totalorder %s16, 0
    %p230 = por %p228, %p229
    %p231 = scmp.ne.s32.totalorder %s223, %s225
    %p232 = scmp.eq.s32.totalorder %s21, 1
    %p233 = por %p231, %p232
    %p234 = scmp.ne.s32.totalorder %s225, %s226
    %p235 = scmp.eq.s32.totalorder %s21, 0
    %p236 = por %p234, %p235
    %p237 = scmp.ne.s32.totalorder %s225, %s226
    %p238 = scmp.eq.s32.totalorder %s22, 1
    %p239 = por %p237, %p238
    %p241 = scmp.ne.s32.totalorder %s226, %s240
    %p242 = scmp.eq.s32.totalorder %s22, 0
    %p243 = por %p241, %p242
    %s244 = ssub.s32 %s16, %s23
    %p245 = scmp.eq.s32.totalorder %s244, 0
    %s247 = sadd.s32 %s246, 1
    %s248 = scalar_select %p245, %s246, %s247
    %p251 = pneg %p245
    %p252 = scmp.eq.s32.totalorder %s16, 1
    %p253 = por %p251, %p252
    %p254 = scmp.ne.s32.totalorder %s246, %s249
    %p255 = scmp.eq.s32.totalorder %s16, 0
    %p256 = por %p254, %p255
    %p257 = scmp.ne.s32.totalorder %s246, %s249
    %p258 = scmp.eq.s32.totalorder %s21, 1
    %p259 = por %p257, %p258
    %p260 = scmp.ne.s32.totalorder %s249, %s250
    %p261 = scmp.eq.s32.totalorder %s21, 0
    %p262 = por %p260, %p261
    %p263 = scmp.ne.s32.totalorder %s249, %s250
    %p264 = scmp.eq.s32.totalorder %s22, 1
    %p265 = por %p263, %p264
    %p267 = scmp.ne.s32.totalorder %s250, %s266
    %p268 = scmp.eq.s32.totalorder %s22, 0
    %p269 = por %p267, %p268
    %p270 = scmp.le.s32.totalorder 1, %s16
    %p271 = scmp.lt.s32.totalorder %s16, 3
    %p272 = pnand %p270, %p271
    %p273 = pneg %p272
    // Predicated region
    $region9: #{transformer_forward.21} parent=5 // pred_check
      _
    $region10: #{transformer_forward.21} parent=5 // pred_check_branch
      %275 = sbr.rel (%p272) target = $region12
    $region11: #{transformer_forward.21} parent=5 // pred_region
      %s276 = ssub.s32 %s16, 1
      // Predicated region
      $region13: #{transformer_forward.21} parent=11 // pred_check
        %p277 = pneg %p89
      $region14: #{transformer_forward.21} parent=11 // pred_check_branch
        %279 = sbr.rel (%p277) target = $region16
      $region15: #{transformer_forward.21} parent=11 // pred_region
        _
      $region16: #{transformer_forward.21} parent=11 // pred_fallthru
        _
      // Predicated region
      $region17: #{transformer_forward.21} parent=11 // pred_check
        %p280 = pneg %p110
      $region18: #{transformer_forward.21} parent=11 // pred_check_branch
        %282 = sbr.rel (%p280) target = $region20
      $region19: #{transformer_forward.21} parent=11 // pred_region
        _
      $region20: #{transformer_forward.21} parent=11 // pred_fallthru
        _
      // Predicated region
      $region21: #{transformer_forward.21} parent=11 // pred_check
        %p283 = pneg %p131
      $region22: #{transformer_forward.21} parent=11 // pred_check_branch
        %285 = sbr.rel (%p283) target = $region24
      $region23: #{transformer_forward.21} parent=11 // pred_region
        _
      $region24: #{transformer_forward.21} parent=11 // pred_fallthru
        _
      // Predicated region
      $region25: #{transformer_forward.21} parent=11 // pred_check
        %p286 = pneg %p152
      $region26: #{transformer_forward.21} parent=11 // pred_check_branch
        %288 = sbr.rel (%p286) target = $region28
      $region27: #{transformer_forward.21} parent=11 // pred_region
        _
      $region28: #{transformer_forward.21} parent=11 // pred_fallthru
        _
      // Predicated region
      $region29: #{transformer_forward.21} parent=11 // pred_check
        %p289 = pneg %p173
      $region30: #{transformer_forward.21} parent=11 // pred_check_branch
        %291 = sbr.rel (%p289) target = $region32
      $region31: #{transformer_forward.21} parent=11 // pred_region
        _
      $region32: #{transformer_forward.21} parent=11 // pred_fallthru
        _
      // Predicated region
      $region33: #{transformer_forward.21} parent=11 // pred_check
        %p292 = pneg %p194
      $region34: #{transformer_forward.21} parent=11 // pred_check_branch
        %294 = sbr.rel (%p292) target = $region36
      $region35: #{transformer_forward.21} parent=11 // pred_region
        _
      $region36: #{transformer_forward.21} parent=11 // pred_fallthru
        _
      // Predicated region
      $region37: #{transformer_forward.21} parent=11 // pred_check
        %p295 = pneg %p215
      $region38: #{transformer_forward.21} parent=11 // pred_check_branch
        %297 = sbr.rel (%p295) target = $region40
      $region39: #{transformer_forward.21} parent=11 // pred_region
        _
      $region40: #{transformer_forward.21} parent=11 // pred_fallthru
        _
      // Predicated region
      $region41: #{transformer_forward.21} parent=11 // pred_check
        %p298 = pneg %p236
      $region42: #{transformer_forward.21} parent=11 // pred_check_branch
        %300 = sbr.rel (%p298) target = $region44
      $region43: #{transformer_forward.21} parent=11 // pred_region
        _
      $region44: #{transformer_forward.21} parent=11 // pred_fallthru
        _
    $region12: #{transformer_forward.21} parent=5 // pred_fallthru
      _
    %p301 = scmp.lt.s32.totalorder %s16, 2
    // Predicated region
    $region45: #{transformer_forward.21} parent=5 // pred_check
      %p302 = pneg %p301
    $region46: #{transformer_forward.21} parent=5 // pred_check_branch
      %304 = sbr.rel (%p302) target = $region48
    $region47: #{transformer_forward.21} parent=5 // pred_region
      // Predicated region
      $region49: #{transformer_forward.21} parent=47 // pred_check
        %p305 = pneg %p36
      $region50: #{transformer_forward.21} parent=47 // pred_check_branch
        %307 = sbr.rel (%p305) target = $region52
      $region51: #{transformer_forward.21} parent=47 // pred_region
        %p308 = scmp.lt.s32.totalorder %s16, 1
        %s309 = scalar_select %p308, %s16, 1
        %s310 = smul.addr %s309, 8
        %s311 = scalar_lea.vmem %s0, %s310
      $region52: #{transformer_forward.21} parent=47 // pred_fallthru
        _
      // Predicated region
      $region53: #{transformer_forward.21} parent=47 // pred_check
        %p312 = pneg %p62
      $region54: #{transformer_forward.21} parent=47 // pred_check_branch
        %314 = sbr.rel (%p312) target = $region56
      $region55: #{transformer_forward.21} parent=47 // pred_region
        %p315 = scmp.lt.s32.totalorder %s16, 1
        %s316 = scalar_select %p315, %s16, 1
        %s317 = smul.addr %s316, 8
        %s318 = scalar_lea.vmem %s1, %s317
      $region56: #{transformer_forward.21} parent=47 // pred_fallthru
        _
    $region48: #{transformer_forward.21} parent=5 // pred_fallthru
      _
    %p319 = scmp.le.s32.totalorder 1, %s16
    %p320 = scmp.lt.s32.totalorder %s16, 3
    %p321 = pnand %p319, %p320
    %p322 = pneg %p321
    // Predicated region
    $region57: #{transformer_forward.21} parent=5 // pred_check
      _
    $region58: #{transformer_forward.21} parent=5 // pred_check_branch
      %324 = sbr.rel (%p321) target = $region60
    $region59: #{transformer_forward.21} parent=5 // pred_region
      %s325 = ssub.s32 %s16, 1
      %p326 = scmp.lt.s32.totalorder %s21, 1
      %s327 = scalar_select %p326, %s21, 1
      %s328 = smul.addr %s327, 8
      %s329 = scalar_lea.vmem %s0, %s328
      %p330 = pneg %p42
      %p331 = pneg %p39
      %p332 = scmp.lt.s32.totalorder %s21, 1
      %s333 = scalar_select %p332, %s21, 1
      %s334 = smul.addr %s333, 8
      %s335 = scalar_lea.vmem %s1, %s334
      %p336 = pneg %p68
      %p337 = pneg %p65
      %p338 = pneg %p89
      %p339 = pneg %p86
      %p340 = pneg %p110
      %p341 = pneg %p107
      %p342 = pneg %p131
      %p343 = pneg %p128
      %p344 = pneg %p152
      %p345 = pneg %p149
      %p346 = pneg %p173
      %p347 = pneg %p170
      %p348 = pneg %p194
      %p349 = pneg %p191
      %p350 = pneg %p215
      %p351 = pneg %p212
      %p352 = pneg %p236
      %p353 = pneg %p233
      %p354 = pneg %p262
      %p355 = pneg %p259
      %p356 = scmp.lt.s32.totalorder %s21, 1
      %s357 = scalar_select %p356, %s21, 1
      %s358 = smul.addr %s357, 8
      %s359 = scalar_lea.vmem %s10, %s358
      %p360 = scmp.lt.s32.totalorder %s21, 1
      %s361 = scalar_select %p360, %s21, 1
      %s362 = smul.addr %s361, 8
      %s363 = scalar_lea.vmem %s0, %s362
      %p364 = scmp.lt.s32.totalorder %s21, 1
      %s365 = scalar_select %p364, %s21, 1
      %s366 = smul.addr %s365, 8
      %s367 = scalar_lea.vmem %s1, %s366
      %p368 = scmp.lt.s32.totalorder %s21, 1
      %s369 = scalar_select %p368, %s21, 1
      %s370 = smul.addr %s369, 8
      %s371 = scalar_lea.vmem %s10, %s370
      %v373 = vld [vmem:[%s363] sm:$0xff]
      %v374 = vld [vmem:[%s367] sm:$0xff]
      %v375 = vpack.c.bf16 %v373, %v373
      %v376 = vld [vmem:[%s2] sm:$0xf]
      %v377 = vld [vmem:[%s2 + $0x4] sm:$0xf]
      %v378 = vld [vmem:[%s2 + $0x8] sm:$0xf]
      %v379 = vld [vmem:[%s2 + $0xc] sm:$0xf]
      %v380 = vld [vmem:[%s3] sm:$0x1]
      %v382 = vlaneseq
      %v383 = vshrl.u32 %v382, 7
      %v384 = vsub.s32 0, %v383
      %v385 = vrot.slane %v380, %v384
      %v391 = vunpack.c.l.b16 %v376
      %v392 = vunpack.c.l.b16 %v377
      %v393 = vunpack.c.l.b16 %v378
      %v394 = vunpack.c.l.b16 %v379
      %v395 = vpack.c.b16 %v392, %v391
      %v396 = vpack.c.b16 %v394, %v393
      %vm399 = vcmask 261120
      %v401 = vsel %vm399, %v375, 0
      %403 = vmatprep.subr.bf16.mxu0 0
      %404 = vmatpush1.bf16.msra.mxu0 0
      %405 = vmatprep.subr.bf16.mxu0 0
      %406 = vmatpush1.bf16.msra.mxu0 0
      %407 = vmatprep.subr.bf16.mxu0 0
      %408 = vmatpush1.bf16.msra.mxu0 0
      %409 = vmatprep.subr.bf16.mxu0 0
      %410 = vmatpush1.bf16.msra.mxu0 0
      %411 = vmatprep.subr.bf16.mxu0 0
      %412 = vmatpush1.bf16.msra.mxu0 0
      %413 = vmatprep.subr.bf16.mxu0 0
      %414 = vmatpush1.bf16.msra.mxu0 0
      %415 = vmatprep.subr.bf16.mxu0 0
      %416 = vmatpush1.bf16.msra.mxu0 %v396
      %417 = vmatprep.subr.bf16.mxu0 0
      %418 = vmatpush1.bf16.msra.mxu0 %v395
      %419 = vmatprep.subr.bf16.mxu0 0
      %420 = vmatpush2.bf16.msra.mxu0 0
      %421 = vmatprep.subr.bf16.mxu0 0
      %422 = vmatpush2.bf16.msra.mxu0 0
      %423 = vmatprep.subr.bf16.mxu0 0
      %424 = vmatpush2.bf16.msra.mxu0 0
      %425 = vmatprep.subr.bf16.mxu0 0
      %426 = vmatpush2.bf16.msra.mxu0 0
      %427 = vmatprep.subr.bf16.mxu0 0
      %428 = vmatpush2.bf16.msra.mxu0 0
      %429 = vmatprep.subr.bf16.mxu0 0
      %430 = vmatpush2.bf16.msra.mxu0 0
      %431 = vmatprep.subr.bf16.mxu0 0
      %432 = vmatpush2.bf16.msra.mxu0 0
      %433 = vmatprep.subr.bf16.mxu0 0
      %434 = vmatpush2.bf16.msra.mxu0 0
      %435 = vmatprep.mubr.bf16.mxu0 0
      %436 = vmatmul.mubr.bf16.gmra.mxu0 %v401
      %v437 = vpop.f32.mrf.mxu0
      %v438 = vadd.f32 %v385, %v437
      %v439 = vpop.f32.mrf.mxu0
      %v440 = vpop.f32.mrf.mxu0
      %v441 = vpop.f32.mrf.mxu0
      %442 = vdwg.mxu0
      %v443 = vpack.c.bf16 %v374, %v374
      %v444 = vld [vmem:[%s4] sm:$0xf]
      %v445 = vld [vmem:[%s4 + $0x4] sm:$0xf]
      %v446 = vld [vmem:[%s4 + $0x8] sm:$0xf]
      %v447 = vld [vmem:[%s4 + $0xc] sm:$0xf]
      %v448 = vld [vmem:[%s5] sm:$0x1]
      %v450 = vlaneseq
      %v451 = vshrl.u32 %v450, 7
      %v452 = vsub.s32 0, %v451
      %v453 = vrot.slane %v448, %v452
      %v459 = vunpack.c.l.b16 %v444
      %v460 = vunpack.c.l.b16 %v445
      %v461 = vunpack.c.l.b16 %v446
      %v462 = vunpack.c.l.b16 %v447
      %v463 = vpack.c.b16 %v460, %v459
      %v464 = vpack.c.b16 %v462, %v461
      %v468 = vsel %vm399, %v443, 0
      %470 = vmatprep.subr.bf16.mxu0 0
      %471 = vmatpush1.bf16.msra.mxu0 0
      %472 = vmatprep.subr.bf16.mxu0 0
      %473 = vmatpush1.bf16.msra.mxu0 0
      %474 = vmatprep.subr.bf16.mxu0 0
      %475 = vmatpush1.bf16.msra.mxu0 0
      %476 = vmatprep.subr.bf16.mxu0 0
      %477 = vmatpush1.bf16.msra.mxu0 0
      %478 = vmatprep.subr.bf16.mxu0 0
      %479 = vmatpush1.bf16.msra.mxu0 0
      %480 = vmatprep.subr.bf16.mxu0 0
      %481 = vmatpush1.bf16.msra.mxu0 0
      %482 = vmatprep.subr.bf16.mxu0 0
      %483 = vmatpush1.bf16.msra.mxu0 %v464
      %484 = vmatprep.subr.bf16.mxu0 0
      %485 = vmatpush1.bf16.msra.mxu0 %v463
      %486 = vmatprep.subr.bf16.mxu0 0
      %487 = vmatpush2.bf16.msra.mxu0 0
      %488 = vmatprep.subr.bf16.mxu0 0
      %489 = vmatpush2.bf16.msra.mxu0 0
      %490 = vmatprep.subr.bf16.mxu0 0
      %491 = vmatpush2.bf16.msra.mxu0 0
      %492 = vmatprep.subr.bf16.mxu0 0
      %493 = vmatpush2.bf16.msra.mxu0 0
      %494 = vmatprep.subr.bf16.mxu0 0
      %495 = vmatpush2.bf16.msra.mxu0 0
      %496 = vmatprep.subr.bf16.mxu0 0
      %497 = vmatpush2.bf16.msra.mxu0 0
      %498 = vmatprep.subr.bf16.mxu0 0
      %499 = vmatpush2.bf16.msra.mxu0 0
      %500 = vmatprep.subr.bf16.mxu0 0
      %501 = vmatpush2.bf16.msra.mxu0 0
      %502 = vmatprep.mubr.bf16.mxu0 0
      %503 = vmatmul.mubr.bf16.gmra.mxu0 %v468
      %v504 = vpop.f32.mrf.mxu0
      %v505 = vadd.f32 %v453, %v504
      %v506 = vpop.f32.mrf.mxu0
      %v507 = vpop.f32.mrf.mxu0
      %v508 = vpop.f32.mrf.mxu0
      %509 = vdwg.mxu0
      %v510 = vlaneseq
      %v511 = vshrl.u32 %v510, 7
      %v512 = vlaneseq
      %v513 = vand.u32 %v512, 127
      %vm514 = vcmp.le.s32.totalorder %v513, %v511
      %v515 = vsel %vm514, 0.0, -inf
      %v516 = vld [vmem:[%s6] sm:$0xf]
      %v517 = vld [vmem:[%s6 + $0x4] sm:$0xf]
      %v518 = vld [vmem:[%s6 + $0x8] sm:$0xf]
      %v519 = vld [vmem:[%s6 + $0xc] sm:$0xf]
      %v520 = vmul.f32 %v438, 0.25
      %v521 = vpack.c.bf16 %v520, %v520
      %v522 = vpack.c.bf16 %v505, %v505
      %vm523 = vcmask 130048
      %v525 = vsel %vm523, %v521, 0
      %v528 = vsel %vm523, %v522, 0
      %530 = vmatprep.subr.bf16.mxu0 0
      %531 = vmatpush1.bf16.xpose.msra.mxu0 0
      %532 = vmatprep.subr.bf16.mxu0 0
      %533 = vmatpush1.bf16.xpose.msra.mxu0 0
      %534 = vmatprep.subr.bf16.mxu0 0
      %535 = vmatpush1.bf16.xpose.msra.mxu0 0
      %536 = vmatprep.subr.bf16.mxu0 0
      %537 = vmatpush1.bf16.xpose.msra.mxu0 0
      %538 = vmatprep.subr.bf16.mxu0 0
      %539 = vmatpush1.bf16.xpose.msra.mxu0 0
      %540 = vmatprep.subr.bf16.mxu0 0
      %541 = vmatpush1.bf16.xpose.msra.mxu0 0
      %542 = vmatprep.subr.bf16.mxu0 0
      %543 = vmatpush1.bf16.xpose.msra.mxu0 0
      %544 = vmatprep.subr.bf16.mxu0 0
      %545 = vmatpush1.bf16.xpose.msra.mxu0 %v528
      %546 = vmatprep.subr.bf16.mxu0 0
      %547 = vmatpush2.bf16.xpose.msra.mxu0 0
      %548 = vmatprep.subr.bf16.mxu0 0
      %549 = vmatpush2.bf16.xpose.msra.mxu0 0
      %550 = vmatprep.subr.bf16.mxu0 0
      %551 = vmatpush2.bf16.xpose.msra.mxu0 0
      %552 = vmatprep.subr.bf16.mxu0 0
      %553 = vmatpush2.bf16.xpose.msra.mxu0 0
      %554 = vmatprep.subr.bf16.mxu0 0
      %555 = vmatpush2.bf16.xpose.msra.mxu0 0
      %556 = vmatprep.subr.bf16.mxu0 0
      %557 = vmatpush2.bf16.xpose.msra.mxu0 0
      %558 = vmatprep.subr.bf16.mxu0 0
      %559 = vmatpush2.bf16.xpose.msra.mxu0 0
      %560 = vmatprep.subr.bf16.mxu0 0
      %561 = vmatpush2.bf16.xpose.msra.mxu0 0
      %562 = vmatprep.mubr.bf16.mxu0 0
      %563 = vmatmul.mubr.bf16.gmra.mxu0 %v525
      %v564 = vpop.f32.mrf.mxu0
      %v565 = vadd.f32 %v515, %v564
      %v566 = vpop.f32.mrf.mxu0
      %v567 = vpop.f32.mrf.mxu0
      %v568 = vpop.f32.mrf.mxu0
      %569 = vdwg.mxu0
      %vm570 = vcmask 64512
      %v571 = vsel %vm570, %v565, -inf
      %572 = vmax.xlane.f32.xlu0 %v571
      %v573 = vpop.xlane.xlu0 %572
      %v574 = vsub.f32 %v565, %v573
      %v575 = vmul.f32 %v574, 1.442695
      %v576 = vpow.pop %v575
      %v577 = vsel %vm570, %v576, 0.0
      %578 = vadd.xlane.f32.xlu0 %v577
      %v579 = vpop.xlane.xlu0 %578
      %v580 = vrcp.pop %v579
      %v581 = vmul.f32 %v576, %v580
      %v582 = vpack.c.bf16 %v581, %v581
      %584 = vrot.lane.b32.xlu0 %v522, 96
      %v585 = vpop.permute.xlu0 %584
      %v587 = vsel %vm570, %v582, 0
      %vm589 = vcmask 1043456
      %v591 = vsel %vm589, %v585, 0
      %593 = vmatprep.subr.bf16.mxu0 0
      %594 = vmatpush1.bf16.msra.mxu0 0
      %595 = vmatprep.subr.bf16.mxu0 0
      %596 = vmatpush1.bf16.msra.mxu0 0
      %597 = vmatprep.subr.bf16.mxu0 0
      %598 = vmatpush1.bf16.msra.mxu0 0
      %599 = vmatprep.subr.bf16.mxu0 0
      %600 = vmatpush1.bf16.msra.mxu0 0
      %601 = vmatprep.subr.bf16.mxu0 0
      %602 = vmatpush1.bf16.msra.mxu0 0
      %603 = vmatprep.subr.bf16.mxu0 0
      %604 = vmatpush1.bf16.msra.mxu0 0
      %605 = vmatprep.subr.bf16.mxu0 0
      %606 = vmatpush1.bf16.msra.mxu0 0
      %607 = vmatprep.subr.bf16.mxu0 0
      %608 = vmatpush1.bf16.msra.mxu0 %v591
      %609 = vmatprep.subr.bf16.mxu0 0
      %610 = vmatpush2.bf16.msra.mxu0 0
      %611 = vmatprep.subr.bf16.mxu0 0
      %612 = vmatpush2.bf16.msra.mxu0 0
      %613 = vmatprep.subr.bf16.mxu0 0
      %614 = vmatpush2.bf16.msra.mxu0 0
      %615 = vmatprep.subr.bf16.mxu0 0
      %616 = vmatpush2.bf16.msra.mxu0 0
      %617 = vmatprep.subr.bf16.mxu0 0
      %618 = vmatpush2.bf16.msra.mxu0 0
      %619 = vmatprep.subr.bf16.mxu0 0
      %620 = vmatpush2.bf16.msra.mxu0 0
      %621 = vmatprep.subr.bf16.mxu0 0
      %622 = vmatpush2.bf16.msra.mxu0 0
      %623 = vmatprep.subr.bf16.mxu0 0
      %624 = vmatpush2.bf16.msra.mxu0 0
      %625 = vmatprep.mubr.bf16.mxu0 0
      %626 = vmatmul.mubr.bf16.gmra.mxu0 %v587
      %v627 = vpop.f32.mrf.mxu0
      %v628 = vadd.f32 0.0, %v627
      %v629 = vpop.f32.mrf.mxu0
      %v630 = vpop.f32.mrf.mxu0
      %v631 = vpop.f32.mrf.mxu0
      %632 = vdwg.mxu0
      %v633 = vpack.c.bf16 %v628, %v628
      %635 = vrot.lane.b32.xlu0 %v521, 112
      %v636 = vpop.permute.xlu0 %635
      %637 = vrot.lane.b32.xlu0 %v522, 112
      %v638 = vpop.permute.xlu0 %637
      %v640 = vsel %vm523, %v636, 0
      %v643 = vsel %vm523, %v638, 0
      %645 = vmatprep.subr.bf16.mxu0 0
      %646 = vmatpush1.bf16.xpose.msra.mxu0 0
      %647 = vmatprep.subr.bf16.mxu0 0
      %648 = vmatpush1.bf16.xpose.msra.mxu0 0
      %649 = vmatprep.subr.bf16.mxu0 0
      %650 = vmatpush1.bf16.xpose.msra.mxu0 0
      %651 = vmatprep.subr.bf16.mxu0 0
      %652 = vmatpush1.bf16.xpose.msra.mxu0 0
      %653 = vmatprep.subr.bf16.mxu0 0
      %654 = vmatpush1.bf16.xpose.msra.mxu0 0
      %655 = vmatprep.subr.bf16.mxu0 0
      %656 = vmatpush1.bf16.xpose.msra.mxu0 0
      %657 = vmatprep.subr.bf16.mxu0 0
      %658 = vmatpush1.bf16.xpose.msra.mxu0 0
      %659 = vmatprep.subr.bf16.mxu0 0
      %660 = vmatpush1.bf16.xpose.msra.mxu0 %v643
      %661 = vmatprep.subr.bf16.mxu0 0
      %662 = vmatpush2.bf16.xpose.msra.mxu0 0
      %663 = vmatprep.subr.bf16.mxu0 0
      %664 = vmatpush2.bf16.xpose.msra.mxu0 0
      %665 = vmatprep.subr.bf16.mxu0 0
      %666 = vmatpush2.bf16.xpose.msra.mxu0 0
      %667 = vmatprep.subr.bf16.mxu0 0
      %668 = vmatpush2.bf16.xpose.msra.mxu0 0
      %669 = vmatprep.subr.bf16.mxu0 0
      %670 = vmatpush2.bf16.xpose.msra.mxu0 0
      %671 = vmatprep.subr.bf16.mxu0 0
      %672 = vmatpush2.bf16.xpose.msra.mxu0 0
      %673 = vmatprep.subr.bf16.mxu0 0
      %674 = vmatpush2.bf16.xpose.msra.mxu0 0
      %675 = vmatprep.subr.bf16.mxu0 0
      %676 = vmatpush2.bf16.xpose.msra.mxu0 0
      %677 = vmatprep.mubr.bf16.mxu0 0
      %678 = vmatmul.mubr.bf16.gmra.mxu0 %v640
      %v679 = vpop.f32.mrf.mxu0
      %v680 = vadd.f32 %v515, %v679
      %v681 = vpop.f32.mrf.mxu0
      %v682 = vpop.f32.mrf.mxu0
      %v683 = vpop.f32.mrf.mxu0
      %684 = vdwg.mxu0
      %v685 = vsel %vm570, %v680, -inf
      %686 = vmax.xlane.f32.xlu0 %v685
      %v687 = vpop.xlane.xlu0 %686
      %v688 = vsub.f32 %v680, %v687
      %v689 = vmul.f32 %v688, 1.442695
      %v690 = vpow.pop %v689
      %v691 = vsel %vm570, %v690, 0.0
      %692 = vadd.xlane.f32.xlu0 %v691
      %v693 = vpop.xlane.xlu0 %692
      %v694 = vrcp.pop %v693
      %v695 = vmul.f32 %v690, %v694
      %v696 = vpack.c.bf16 %v695, %v695
      %697 = vrot.lane.b32.xlu0 %v522, 80
      %v698 = vpop.permute.xlu0 %697
      %v700 = vsel %vm570, %v696, 0
      %v703 = vsel %vm589, %v698, 0
      %705 = vmatprep.subr.bf16.mxu0 0
      %706 = vmatpush1.bf16.msra.mxu0 0
      %707 = vmatprep.subr.bf16.mxu0 0
      %708 = vmatpush1.bf16.msra.mxu0 0
      %709 = vmatprep.subr.bf16.mxu0 0
      %710 = vmatpush1.bf16.msra.mxu0 0
      %711 = vmatprep.subr.bf16.mxu0 0
      %712 = vmatpush1.bf16.msra.mxu0 0
      %713 = vmatprep.subr.bf16.mxu0 0
      %714 = vmatpush1.bf16.msra.mxu0 0
      %715 = vmatprep.subr.bf16.mxu0 0
      %716 = vmatpush1.bf16.msra.mxu0 0
      %717 = vmatprep.subr.bf16.mxu0 0
      %718 = vmatpush1.bf16.msra.mxu0 0
      %719 = vmatprep.subr.bf16.mxu0 0
      %720 = vmatpush1.bf16.msra.mxu0 %v703
      %721 = vmatprep.subr.bf16.mxu0 0
      %722 = vmatpush2.bf16.msra.mxu0 0
      %723 = vmatprep.subr.bf16.mxu0 0
      %724 = vmatpush2.bf16.msra.mxu0 0
      %725 = vmatprep.subr.bf16.mxu0 0
      %726 = vmatpush2.bf16.msra.mxu0 0
      %727 = vmatprep.subr.bf16.mxu0 0
      %728 = vmatpush2.bf16.msra.mxu0 0
      %729 = vmatprep.subr.bf16.mxu0 0
      %730 = vmatpush2.bf16.msra.mxu0 0
      %731 = vmatprep.subr.bf16.mxu0 0
      %732 = vmatpush2.bf16.msra.mxu0 0
      %733 = vmatprep.subr.bf16.mxu0 0
      %734 = vmatpush2.bf16.msra.mxu0 0
      %735 = vmatprep.subr.bf16.mxu0 0
      %736 = vmatpush2.bf16.msra.mxu0 0
      %737 = vmatprep.mubr.bf16.mxu0 0
      %738 = vmatmul.mubr.bf16.gmra.mxu0 %v700
      %v739 = vpop.f32.mrf.mxu0
      %v740 = vadd.f32 0.0, %v739
      %v741 = vpop.f32.mrf.mxu0
      %v742 = vpop.f32.mrf.mxu0
      %v743 = vpop.f32.mrf.mxu0
      %744 = vdwg.mxu0
      %v745 = vpack.c.bf16 %v740, %v740
      %v748 = vunpack.c.l.b16 %v518
      %v749 = vunpack.c.l.b16 %v519
      %v750 = vpack.c.b16 %v749, %v748
      %v753 = vsel %vm523, %v745, 0
      %755 = vmatprep.subr.bf16.mxu0 0
      %756 = vmatpush1.bf16.msra.mxu0 0
      %757 = vmatprep.subr.bf16.mxu0 0
      %758 = vmatpush1.bf16.msra.mxu0 0
      %759 = vmatprep.subr.bf16.mxu0 0
      %760 = vmatpush1.bf16.msra.mxu0 0
      %761 = vmatprep.subr.bf16.mxu0 0
      %762 = vmatpush1.bf16.msra.mxu0 0
      %763 = vmatprep.subr.bf16.mxu0 0
      %764 = vmatpush1.bf16.msra.mxu0 0
      %765 = vmatprep.subr.bf16.mxu0 0
      %766 = vmatpush1.bf16.msra.mxu0 0
      %767 = vmatprep.subr.bf16.mxu0 0
      %768 = vmatpush1.bf16.msra.mxu0 0
      %769 = vmatprep.subr.bf16.mxu0 0
      %770 = vmatpush1.bf16.msra.mxu0 %v750
      %771 = vmatprep.subr.bf16.mxu0 0
      %772 = vmatpush2.bf16.msra.mxu0 0
      %773 = vmatprep.subr.bf16.mxu0 0
      %774 = vmatpush2.bf16.msra.mxu0 0
      %775 = vmatprep.subr.bf16.mxu0 0
      %776 = vmatpush2.bf16.msra.mxu0 0
      %777 = vmatprep.subr.bf16.mxu0 0
      %778 = vmatpush2.bf16.msra.mxu0 0
      %779 = vmatprep.subr.bf16.mxu0 0
      %780 = vmatpush2.bf16.msra.mxu0 0
      %781 = vmatprep.subr.bf16.mxu0 0
      %782 = vmatpush2.bf16.msra.mxu0 0
      %783 = vmatprep.subr.bf16.mxu0 0
      %784 = vmatpush2.bf16.msra.mxu0 0
      %785 = vmatprep.subr.bf16.mxu0 0
      %786 = vmatpush2.bf16.msra.mxu0 0
      %787 = vmatprep.mubr.bf16.mxu0 0
      %788 = vmatmul.mubr.bf16.gmra.mxu0 %v753
      %v789 = vpop.f32.mrf.mxu0
      %v790 = vadd.f32 0.0, %v789
      %v791 = vpop.f32.mrf.mxu0
      %v792 = vpop.f32.mrf.mxu0
      %v793 = vpop.f32.mrf.mxu0
      %794 = vdwg.mxu0
      %v797 = vunpack.c.l.b16 %v516
      %v798 = vunpack.c.l.b16 %v517
      %v799 = vpack.c.b16 %v798, %v797
      %v802 = vsel %vm523, %v633, 0
      %804 = vmatprep.subr.bf16.mxu0 0
      %805 = vmatpush1.bf16.msra.mxu0 0
      %806 = vmatprep.subr.bf16.mxu0 0
      %807 = vmatpush1.bf16.msra.mxu0 0
      %808 = vmatprep.subr.bf16.mxu0 0
      %809 = vmatpush1.bf16.msra.mxu0 0
      %810 = vmatprep.subr.bf16.mxu0 0
      %811 = vmatpush1.bf16.msra.mxu0 0
      %812 = vmatprep.subr.bf16.mxu0 0
      %813 = vmatpush1.bf16.msra.mxu0 0
      %814 = vmatprep.subr.bf16.mxu0 0
      %815 = vmatpush1.bf16.msra.mxu0 0
      %816 = vmatprep.subr.bf16.mxu0 0
      %817 = vmatpush1.bf16.msra.mxu0 0
      %818 = vmatprep.subr.bf16.mxu0 0
      %819 = vmatpush1.bf16.msra.mxu0 %v799
      %820 = vmatprep.subr.bf16.mxu0 0
      %821 = vmatpush2.bf16.msra.mxu0 0
      %822 = vmatprep.subr.bf16.mxu0 0
      %823 = vmatpush2.bf16.msra.mxu0 0
      %824 = vmatprep.subr.bf16.mxu0 0
      %825 = vmatpush2.bf16.msra.mxu0 0
      %826 = vmatprep.subr.bf16.mxu0 0
      %827 = vmatpush2.bf16.msra.mxu0 0
      %828 = vmatprep.subr.bf16.mxu0 0
      %829 = vmatpush2.bf16.msra.mxu0 0
      %830 = vmatprep.subr.bf16.mxu0 0
      %831 = vmatpush2.bf16.msra.mxu0 0
      %832 = vmatprep.subr.bf16.mxu0 0
      %833 = vmatpush2.bf16.msra.mxu0 0
      %834 = vmatprep.subr.bf16.mxu0 0
      %835 = vmatpush2.bf16.msra.mxu0 0
      %836 = vmatprep.mubr.bf16.mxu0 0
      %837 = vmatmul.mubr.bf16.gmra.mxu0 %v802
      %v838 = vpop.f32.mrf.mxu0
      %v839 = vadd.f32 %v790, %v838
      %v840 = vpop.f32.mrf.mxu0
      %v841 = vpop.f32.mrf.mxu0
      %v842 = vpop.f32.mrf.mxu0
      %843 = vdwg.mxu0
      %v844 = vld [vmem:[%s7] sm:$0x1]
      %v846 = vlaneseq
      %v847 = vshrl.u32 %v846, 7
      %v848 = vsub.s32 0, %v847
      %v849 = vrot.slane %v844, %v848
      %v851 = vadd.f32 %v839, %v849
      %v852 = vadd.f32 %v373, %v851
      %v853 = vsel %vm399, %v852, 0.0
      %854 = vadd.xlane.f32.xlu0 %v853
      %v855 = vpop.xlane.xlu0 %854
      %v856 = vrcp.pop 32.0
      %v857 = vmul.f32 %v855, %v856
      %v858 = vsub.f32 %v852, %v857
      %v859 = vmul.f32 %v858, %v858
      %v860 = vsel %vm399, %v859, 0.0
      %861 = vadd.xlane.f32.xlu0 %v860
      %v862 = vpop.xlane.xlu0 %861
      %v863 = vmul.f32 %v862, %v856
      %v864 = vadd.f32 %v863, 1e-05
      %v865 = vrsqrt.pop %v864
      %v866 = vmul.f32 %v858, %v865
      %v867 = vld [vmem:[%s8] sm:$0x1]
      %v869 = vlaneseq
      %v870 = vshrl.u32 %v869, 7
      %v871 = vsub.s32 0, %v870
      %v872 = vrot.slane %v867, %v871
      %v874 = vmul.f32 %v866, %v872
      %v875 = vld [vmem:[%s9] sm:$0x1]
      %v877 = vlaneseq
      %v878 = vshrl.u32 %v877, 7
      %v879 = vsub.s32 0, %v878
      %v880 = vrot.slane %v875, %v879
      %v882 = vadd.f32 %v874, %v880
      %883 = vst.msk [vmem:[%s371] sm:$0xff] %vm399, %v882
      %p884 = scmp.lt.s32.totalorder %s21, 1
      %s885 = scalar_select %p884, %s21, 1
      %s886 = smul.addr %s885, 8
      %s887 = scalar_lea.vmem %s10, %s886
      // Predicated region
      $region61: #{transformer_forward.21} parent=59 // pred_check
        %p888 = pneg %p259
      $region62: #{transformer_forward.21} parent=59 // pred_check_branch
        %890 = sbr.rel (%p888) target = $region64
      $region63: #{transformer_forward.21} parent=59 // pred_region
        _
      $region64: #{transformer_forward.21} parent=59 // pred_fallthru
        _
    $region60: #{transformer_forward.21} parent=5 // pred_fallthru
      _
    %p891 = scmp.le.s32.totalorder 2, %s16
    // Predicated region
    $region65: #{transformer_forward.21} parent=5 // pred_check
      %p892 = pneg %p891
    $region66: #{transformer_forward.21} parent=5 // pred_check_branch
      %894 = sbr.rel (%p892) target = $region68
    $region67: #{transformer_forward.21} parent=5 // pred_region
      %s895 = ssub.s32 %s16, 2
      // Predicated region
      $region69: #{transformer_forward.21} parent=67 // pred_check
        %p896 = pneg %p265
      $region70: #{transformer_forward.21} parent=67 // pred_check_branch
        %898 = sbr.rel (%p896) target = $region72
      $region71: #{transformer_forward.21} parent=67 // pred_region
        %p899 = scmp.lt.s32.totalorder %s22, 1
        %s900 = scalar_select %p899, %s22, 1
        %s901 = smul.addr %s900, 8
        %s902 = scalar_lea.vmem %s10, %s901
      $region72: #{transformer_forward.21} parent=67 // pred_fallthru
        _
    $region68: #{transformer_forward.21} parent=5 // pred_fallthru
      _
  $region6: #{transformer_forward.21} parent=0 // loop_footer
    %s20 = sadd.s32 1, %s16
  $region7: #{transformer_forward.21} parent=0 // loop_footer_branch
    %15 = sbr.rel target = $region3
  $region8: #{transformer_forward.21} parent=0 // loop_exit
    _

</llo_original>
